<compile_context>
chip_gen: v7x
topology: tpu7x:2x2x1
jax: 0.10.0
libtpu: 0.0.40
codegen_flags: <defaults>
</compile_context>

<pallas_src>
import numpy as np
import jax
import jax.numpy as jnp
from jax.experimental import pallas as pl
from jax.experimental.pallas import tpu as pltpu

# det_box.scale_xy = 0.1, det_box.scale_wh = 0.2 (standard SSD defaults)
SCALE_XY_INV = 10.0   # = 1.0 / det_box.scale_xy
SCALE_WH_INV = 5.0    # = 1.0 / det_box.scale_wh


def _ssd_loss_kernel(daux_ref, pbox_ref, plbl_ref, gbox_ref, glbl_ref, out_ref):
    Nb = pbox_ref.shape[0]
    C = plbl_ref.shape[1]
    M = plbl_ref.shape[2]

    det = daux_ref[...]                    # (1, 8, M)
    sub = det[:, 0:4, :]                   # [det_x, det_y, log(det_w), log(det_h)]
    mul = det[:, 4:8, :]                   # [sxy/det_w, sxy/det_h, swh, swh]

    gb = gbox_ref[...]                     # (Nb, 4, M)
    pb = pbox_ref[...]                     # (Nb, 4, M)

    # ---- localization target + SmoothL1, one fused (Nb,4,M) pass ------------
    # target_xy = sxy*(g_xy - det_xy)/det_wh ; target_wh = swh*(log g_wh - log det_wh)
    row = jax.lax.broadcasted_iota(jnp.int32, (Nb, 4, M), 1)
    g_t = jnp.where(row >= 2, jnp.log(gb), gb)      # log only kept for w/h rows
    target = (g_t - sub) * mul
    d = pb - target
    ad = jnp.abs(d)
    sl1 = jnp.where(ad < 1.0, 0.5 * d * d, ad - 0.5)
    sl1_sum = jnp.sum(sl1, axis=1)                  # (Nb, M)

    lbl = glbl_ref[...]                    # (Nb, 1, M) int32
    mask = lbl[:, 0, :] > 0                # (Nb, M) bool
    maskf = mask.astype(jnp.float32)
    pos_num = jnp.sum(maskf, axis=-1, keepdims=True)             # (Nb, 1)
    smooth_l1 = jnp.sum(maskf * sl1_sum, axis=-1, keepdims=True)  # (Nb, 1)

    # ---- per-anchor cross-entropy (log-softmax over class dim) --------------
    logits = plbl_ref[...]                 # (Nb, C, M)
    mx = jnp.max(logits, axis=1, keepdims=True)
    z = logits - mx
    lse = jnp.log(jnp.sum(jnp.exp(z), axis=1, keepdims=True))    # (Nb, 1, M)
    cls_ids = jax.lax.broadcasted_iota(jnp.int32, (Nb, C, M), 1)
    onehot = (cls_ids == lbl).astype(jnp.float32)
    zl = jnp.sum(onehot * z, axis=1, keepdims=True)              # (Nb, 1, M)
    con = (lse - zl)[:, 0, :]                                    # (Nb, M)

    # ---- hard-negative mining: exact top-k under stable descending sort -----
    con_neg = jnp.where(mask, 0.0, con)                          # (Nb, M)
    k = jnp.minimum(3.0 * pos_num, float(M))                     # (Nb, 1)

    # Order-preserving integer key: unsigned(key) ordering == float ordering.
    SIGN = jnp.int32(-2**31)
    bits = pltpu.bitcast(con_neg, jnp.int32)
    key = jnp.where(bits < 0, bits ^ jnp.int32(-1), bits ^ SIGN)

    Sf = jnp.ones((Nb, M), jnp.float32)      # candidates sharing decided prefix
    sel = jnp.zeros((Nb, M), jnp.float32)    # definitely in the top-k
    k_rem = k

    def rs_step(Sf, sel, k_rem, hasf):
        both = Sf * hasf                                         # S AND has-bit
        c1 = jnp.sum(both, axis=-1, keepdims=True)               # (Nb, 1)
        t1 = (c1 >= k_rem).astype(jnp.float32)                   # take 1-branch?
        Sf = t1 * both + (1.0 - t1) * (Sf - both)
        sel = sel + (1.0 - t1) * both        # 0-branch: all bit-set elems are > answer
        k_rem = k_rem - (1.0 - t1) * c1
        return Sf, sel, k_rem

    # Phase 1: 32 value bits (MSB -> LSB).
    for b in range(31, -1, -1):
        bm = SIGN if b == 31 else jnp.int32(1 << b)
        hasf = ((key & bm) != 0).astype(jnp.float32)
        Sf, sel, k_rem = rs_step(Sf, sel, k_rem, hasf)

    # Phase 2: tie-break by index (stable sort -> lower index first) via the
    # bits of the reversed index.
    nbits = max(1, (M - 1).bit_length())
    ridx = jnp.int32(M - 1) - jax.lax.broadcasted_iota(jnp.int32, (Nb, M), 1)
    for b in range(nbits - 1, -1, -1):
        hasf = ((ridx & jnp.int32(1 << b)) != 0).astype(jnp.float32)
        Sf, sel, k_rem = rs_step(Sf, sel, k_rem, hasf)

    # sel and Sf are disjoint 0/1 masks; guard k == 0 (no negatives selected).
    neg_maskf = (sel + Sf) * (k > 0.0).astype(jnp.float32)       # (Nb, M)

    closs = jnp.sum(con * (maskf + neg_maskf), axis=-1, keepdims=True)
    total = smooth_l1 + closs
    num_maskf = (pos_num > 0.0).astype(jnp.float32)
    pos_c = jnp.maximum(pos_num, 1e-6)
    val = total * num_maskf / pos_c                              # (Nb, 1)

    out_ref[...] = jnp.broadcast_to(val, out_ref.shape)


def ssd_loss(pred_box, pred_lbl, grd_box, grd_lbl, det_box, *, block_n=8):
    """Pallas implementation of Loss.forward. Returns a scalar (mean over batch)."""
    N, _, M = pred_box.shape
    C = pred_lbl.shape[1]
    glbl = grd_lbl.reshape(N, 1, M).astype(jnp.int32)

    # Hoist batch-invariant anchor math: rows 0-3 = subtract term, 4-7 = multiply term.
    det_xy = det_box[:, 0:2, :]
    det_wh = det_box[:, 2:4, :]
    inv_wh = 1.0 / det_wh
    det_aux = jnp.concatenate(
        [det_xy, jnp.log(det_wh),                       # sub: [dx, dy, log dw, log dh]
         SCALE_XY_INV * inv_wh,                         # mul: [sxy/dw, sxy/dh,
         jnp.full_like(inv_wh, SCALE_WH_INV)],          #       swh,    swh]
        axis=1).astype(jnp.float32)                     # (1, 8, M)

    Nb = N if N <= block_n else block_n
    grid_n = pl.cdiv(N, Nb)

    per_sample = pl.pallas_call(
        _ssd_loss_kernel,
        out_shape=jax.ShapeDtypeStruct((N, 128), jnp.float32),
        grid_spec=pltpu.PrefetchScalarGridSpec(
            num_scalar_prefetch=0,
            grid=(grid_n,),
            in_specs=[
                pl.BlockSpec((1, 8, M), lambda b: (0, 0, 0)),    # det_aux (shared)
                pl.BlockSpec((Nb, 4, M), lambda b: (b, 0, 0)),   # pred_box
                pl.BlockSpec((Nb, C, M), lambda b: (b, 0, 0)),   # pred_lbl
                pl.BlockSpec((Nb, 4, M), lambda b: (b, 0, 0)),   # grd_box
                pl.BlockSpec((Nb, 1, M), lambda b: (b, 0, 0)),   # grd_lbl
            ],
            out_specs=pl.BlockSpec((Nb, 128), lambda b: (b, 0)),
        ),
        compiler_params=pltpu.CompilerParams(
            dimension_semantics=("parallel",)),
    )(det_aux, pred_box, pred_lbl, grd_box, glbl)

    return jnp.mean(per_sample[:, 0])


def ssd_loss_ref(pred_box, pred_lbl, grd_box, grd_lbl, det_box):
    """Pure-JAX reference mirroring the PyTorch module."""
    mask = grd_lbl > 0
    pos_num = mask.sum(axis=1)

    gxy = SCALE_XY_INV * (grd_box[:, :2, :] - det_box[:, :2, :]) / det_box[:, 2:, :]
    gwh = SCALE_WH_INV * jnp.log(grd_box[:, 2:, :] / det_box[:, 2:, :])
    target = jnp.concatenate([gxy, gwh], axis=1)

    d = pred_box - target
    ad = jnp.abs(d)
    sl1 = jnp.where(ad < 1.0, 0.5 * d * d, ad - 0.5).sum(axis=1)
    smooth_l1 = (mask.astype(jnp.float32) * sl1).sum(axis=1)

    logp = jax.nn.log_softmax(pred_lbl, axis=1)
    con = -jnp.take_along_axis(logp, grd_lbl[:, None, :], axis=1)[:, 0, :]
    con_neg = jnp.where(mask, 0.0, con)
    con_idx = jnp.argsort(-con_neg, axis=1)      # stable descending
    con_rank = jnp.argsort(con_idx, axis=1)
    neg_num = jnp.minimum(3 * pos_num, mask.shape[1])[:, None]
    neg_mask = con_rank < neg_num

    closs = (con * (mask.astype(jnp.float32) + neg_mask.astype(jnp.float32))).sum(axis=1)
    total = smooth_l1 + closs
    num_mask = (pos_num > 0).astype(jnp.float32)
    pos = jnp.maximum(pos_num.astype(jnp.float32), 1e-6)
    return (total * num_mask / pos).mean()


if __name__ == "__main__":
    key = jax.random.PRNGKey(0)
    N, C, M = 2, 8, 256   # batch, num classes, num anchor boxes
    k1, k2, k3, k4, k5, k6, k7a, k7b = jax.random.split(key, 8)

    # deterministic anchors (replacing det_box(order='xywh').T.unsqueeze(0))
    axy = jax.random.uniform(k1, (1, 2, M), jnp.float32, 0.05, 0.95)
    awh = jax.random.uniform(k2, (1, 2, M), jnp.float32, 0.05, 0.5)
    det_box = jnp.concatenate([axy, awh], axis=1)                 # (1, 4, M)

    # ground-truth boxes (positive w/h so log() is well defined)
    gxy = jax.random.uniform(k3, (N, 2, M), jnp.float32, 0.05, 0.95)
    gwh = jax.random.uniform(k4, (N, 2, M), jnp.float32, 0.05, 0.9)
    grd_box = jnp.concatenate([gxy, gwh], axis=1)                 # (N, 4, M)

    pred_box = 0.5 * jax.random.normal(k5, (N, 4, M), jnp.float32)
    pred_lbl = jax.random.normal(k6, (N, C, M), jnp.float32)

    # sparse positive labels (background = 0), like a real SSD matching
    is_pos = jax.random.uniform(k7a, (N, M)) < 0.1
    grd_lbl = jnp.where(is_pos,
                        jax.random.randint(k7b, (N, M), 1, C),
                        0).astype(jnp.int32)

    out = jax.block_until_ready(
        ssd_loss(pred_box, pred_lbl, grd_box, grd_lbl, det_box))
    ref = ssd_loss_ref(pred_box, pred_lbl, grd_box, grd_lbl, det_box)
    np.testing.assert_allclose(np.asarray(out), np.asarray(ref),
                               rtol=2e-3, atol=1e-4)
    print("KERNEL_OK")
</pallas_src>

<mosaic_0001>
module attributes {stable_mosaic.version = 11 : i64} {
  func.func @_ssd_loss_kernel(%arg0: i32, %arg1: memref<1x8x256xf32, #tpu.memory_space<vmem>>, %arg2: memref<2x4x256xf32, #tpu.memory_space<vmem>>, %arg3: memref<2x8x256xf32, #tpu.memory_space<vmem>>, %arg4: memref<2x4x256xf32, #tpu.memory_space<vmem>>, %arg5: memref<2x1x256xi32, #tpu.memory_space<vmem>>, %arg6: memref<2x128xf32, #tpu.memory_space<vmem>>) attributes {dimension_semantics = [#tpu.dimension_semantics<parallel>], iteration_bounds = array<i64: 1>, scalar_prefetch = 0 : i64, scratch_operands = 0 : i64, tpu.core_type = #tpu.core_type<tc>, window_params = [{pipeline_mode = #tpu.pipeline_mode<synchronous>, transform_indices = @transform_0, window_bounds = array<i64: 1, 8, 256>}, {transform_indices = @transform_1, window_bounds = array<i64: 2, 4, 256>}, {transform_indices = @transform_2, window_bounds = array<i64: 2, 8, 256>}, {transform_indices = @transform_3, window_bounds = array<i64: 2, 4, 256>}, {transform_indices = @transform_4, window_bounds = array<i64: 2, 1, 256>}, {transform_indices = @transform_5, window_bounds = array<i64: 2, 128>}]} {
    %c0 = arith.constant 0 : index
    %c0_0 = arith.constant 0 : index
    %c0_1 = arith.constant 0 : index
    %0 = vector.load %arg1[%c0, %c0_0, %c0_1] : memref<1x8x256xf32, #tpu.memory_space<vmem>>, vector<1x8x256xf32>
    %1 = vector.extract_strided_slice %0 {offsets = [0, 0, 0], sizes = [1, 4, 256], strides = [1, 1, 1]} : vector<1x8x256xf32> to vector<1x4x256xf32>
    %2 = vector.extract_strided_slice %0 {offsets = [0, 4, 0], sizes = [1, 4, 256], strides = [1, 1, 1]} : vector<1x8x256xf32> to vector<1x4x256xf32>
    %c0_2 = arith.constant 0 : index
    %c0_3 = arith.constant 0 : index
    %c0_4 = arith.constant 0 : index
    %3 = vector.load %arg4[%c0_2, %c0_3, %c0_4] : memref<2x4x256xf32, #tpu.memory_space<vmem>>, vector<2x4x256xf32>
    %c0_5 = arith.constant 0 : index
    %c0_6 = arith.constant 0 : index
    %c0_7 = arith.constant 0 : index
    %4 = vector.load %arg2[%c0_5, %c0_6, %c0_7] : memref<2x4x256xf32, #tpu.memory_space<vmem>>, vector<2x4x256xf32>
    %5 = tpu.iota {dimensions = array<i32: 1>} : vector<2x4x256xi32>
    %c2_i32 = arith.constant 2 : i32
    %6 = vector.broadcast %c2_i32 : i32 to vector<2x4x256xi32>
    %7 = arith.cmpi sge, %5, %6 : vector<2x4x256xi32>
    %8 = math.log %3 : vector<2x4x256xf32>
    %9 = arith.select %7, %8, %3 : vector<2x4x256xi1>, vector<2x4x256xf32>
    %10 = vector.broadcast %1 : vector<1x4x256xf32> to vector<2x4x256xf32>
    %11 = arith.subf %9, %10 : vector<2x4x256xf32>
    %12 = vector.broadcast %2 : vector<1x4x256xf32> to vector<2x4x256xf32>
    %13 = arith.mulf %11, %12 : vector<2x4x256xf32>
    %14 = arith.subf %4, %13 : vector<2x4x256xf32>
    %15 = math.absf %14 : vector<2x4x256xf32>
    %cst = arith.constant 1.000000e+00 : f32
    %16 = vector.broadcast %cst : f32 to vector<2x4x256xf32>
    %17 = arith.cmpf olt, %15, %16 : vector<2x4x256xf32>
    %cst_8 = arith.constant 5.000000e-01 : f32
    %18 = vector.broadcast %cst_8 : f32 to vector<2x4x256xf32>
    %19 = arith.mulf %18, %14 : vector<2x4x256xf32>
    %20 = arith.mulf %19, %14 : vector<2x4x256xf32>
    %cst_9 = arith.constant 5.000000e-01 : f32
    %21 = vector.broadcast %cst_9 : f32 to vector<2x4x256xf32>
    %22 = arith.subf %15, %21 : vector<2x4x256xf32>
    %23 = arith.select %17, %20, %22 : vector<2x4x256xi1>, vector<2x4x256xf32>
    %cst_10 = arith.constant dense<0.000000e+00> : vector<2x256xf32>
    %24 = vector.multi_reduction <add>, %23, %cst_10 [1] : vector<2x4x256xf32> to vector<2x256xf32>
    %c0_11 = arith.constant 0 : index
    %c0_12 = arith.constant 0 : index
    %c0_13 = arith.constant 0 : index
    %25 = vector.load %arg5[%c0_11, %c0_12, %c0_13] : memref<2x1x256xi32, #tpu.memory_space<vmem>>, vector<2x1x256xi32>
    %26 = vector.shape_cast %25 : vector<2x1x256xi32> to vector<2x256xi32>
    %c0_i32 = arith.constant 0 : i32
    %27 = vector.broadcast %c0_i32 : i32 to vector<2x256xi32>
    %28 = arith.cmpi sgt, %26, %27 : vector<2x256xi32>
    %29 = arith.extui %28 : vector<2x256xi1> to vector<2x256xi32>
    %30 = arith.sitofp %29 : vector<2x256xi32> to vector<2x256xf32>
    %cst_14 = arith.constant dense<0.000000e+00> : vector<2xf32>
    %31 = vector.multi_reduction <add>, %30, %cst_14 [1] : vector<2x256xf32> to vector<2xf32>
    %32 = vector.shape_cast %31 : vector<2xf32> to vector<2x1xf32>
    %33 = arith.mulf %30, %24 : vector<2x256xf32>
    %cst_15 = arith.constant dense<0.000000e+00> : vector<2xf32>
    %34 = vector.multi_reduction <add>, %33, %cst_15 [1] : vector<2x256xf32> to vector<2xf32>
    %35 = vector.shape_cast %34 : vector<2xf32> to vector<2x1xf32>
    %c0_16 = arith.constant 0 : index
    %c0_17 = arith.constant 0 : index
    %c0_18 = arith.constant 0 : index
    %36 = vector.load %arg3[%c0_16, %c0_17, %c0_18] : memref<2x8x256xf32, #tpu.memory_space<vmem>>, vector<2x8x256xf32>
    %cst_19 = arith.constant dense<0xFF800000> : vector<2x256xf32>
    %37 = vector.multi_reduction <maximumf>, %36, %cst_19 [1] : vector<2x8x256xf32> to vector<2x256xf32>
    %38 = vector.shape_cast %37 : vector<2x256xf32> to vector<2x1x256xf32>
    %39 = vector.broadcast %38 : vector<2x1x256xf32> to vector<2x8x256xf32>
    %40 = arith.subf %36, %39 : vector<2x8x256xf32>
    %41 = math.exp %40 : vector<2x8x256xf32>
    %cst_20 = arith.constant dense<0.000000e+00> : vector<2x256xf32>
    %42 = vector.multi_reduction <add>, %41, %cst_20 [1] : vector<2x8x256xf32> to vector<2x256xf32>
    %43 = vector.shape_cast %42 : vector<2x256xf32> to vector<2x1x256xf32>
    %44 = math.log %43 : vector<2x1x256xf32>
    %45 = tpu.iota {dimensions = array<i32: 1>} : vector<2x8x256xi32>
    %46 = vector.broadcast %25 : vector<2x1x256xi32> to vector<2x8x256xi32>
    %47 = arith.cmpi eq, %45, %46 : vector<2x8x256xi32>
    %48 = arith.extui %47 : vector<2x8x256xi1> to vector<2x8x256xi32>
    %49 = arith.sitofp %48 : vector<2x8x256xi32> to vector<2x8x256xf32>
    %50 = arith.mulf %49, %40 : vector<2x8x256xf32>
    %cst_21 = arith.constant dense<0.000000e+00> : vector<2x256xf32>
    %51 = vector.multi_reduction <add>, %50, %cst_21 [1] : vector<2x8x256xf32> to vector<2x256xf32>
    %52 = vector.shape_cast %51 : vector<2x256xf32> to vector<2x1x256xf32>
    %53 = arith.subf %44, %52 : vector<2x1x256xf32>
    %54 = vector.shape_cast %53 : vector<2x1x256xf32> to vector<2x256xf32>
    %cst_22 = arith.constant 0.000000e+00 : f32
    %55 = vector.broadcast %cst_22 : f32 to vector<2x256xf32>
    %56 = arith.select %28, %55, %54 : vector<2x256xi1>, vector<2x256xf32>
    %cst_23 = arith.constant 3.000000e+00 : f32
    %57 = vector.broadcast %cst_23 : f32 to vector<2x1xf32>
    %58 = arith.mulf %57, %32 : vector<2x1xf32>
    %cst_24 = arith.constant 2.560000e+02 : f32
    %59 = vector.broadcast %cst_24 : f32 to vector<2x1xf32>
    %60 = arith.minimumf %58, %59 : vector<2x1xf32>
    %61 = tpu.bitcast %56 : vector<2x256xf32> -> vector<2x256xi32>
    %c0_i32_25 = arith.constant 0 : i32
    %62 = vector.broadcast %c0_i32_25 : i32 to vector<2x256xi32>
    %63 = arith.cmpi slt, %61, %62 : vector<2x256xi32>
    %c-1_i32 = arith.constant -1 : i32
    %64 = vector.broadcast %c-1_i32 : i32 to vector<2x256xi32>
    %65 = arith.xori %61, %64 : vector<2x256xi32>
    %c-2147483648_i32 = arith.constant -2147483648 : i32
    %66 = vector.broadcast %c-2147483648_i32 : i32 to vector<2x256xi32>
    %67 = arith.xori %61, %66 : vector<2x256xi32>
    %68 = arith.select %63, %65, %67 : vector<2x256xi1>, vector<2x256xi32>
    %cst_26 = arith.constant 1.000000e+00 : f32
    %69 = vector.broadcast %cst_26 : f32 to vector<2x256xf32>
    %cst_27 = arith.constant 0.000000e+00 : f32
    %70 = vector.broadcast %cst_27 : f32 to vector<2x256xf32>
    %c-2147483648_i32_28 = arith.constant -2147483648 : i32
    %71 = vector.broadcast %c-2147483648_i32_28 : i32 to vector<2x256xi32>
    %72 = arith.andi %68, %71 : vector<2x256xi32>
    %c0_i32_29 = arith.constant 0 : i32
    %73 = vector.broadcast %c0_i32_29 : i32 to vector<2x256xi32>
    %74 = arith.cmpi ne, %72, %73 : vector<2x256xi32>
    %75 = arith.extui %74 : vector<2x256xi1> to vector<2x256xi32>
    %76 = arith.sitofp %75 : vector<2x256xi32> to vector<2x256xf32>
    %77 = arith.mulf %69, %76 : vector<2x256xf32>
    %cst_30 = arith.constant dense<0.000000e+00> : vector<2xf32>
    %78 = vector.multi_reduction <add>, %77, %cst_30 [1] : vector<2x256xf32> to vector<2xf32>
    %79 = vector.shape_cast %78 : vector<2xf32> to vector<2x1xf32>
    %80 = arith.cmpf oge, %79, %60 : vector<2x1xf32>
    %81 = arith.extui %80 : vector<2x1xi1> to vector<2x1xi32>
    %82 = arith.sitofp %81 : vector<2x1xi32> to vector<2x1xf32>
    %83 = vector.broadcast %82 : vector<2x1xf32> to vector<2x256xf32>
    %84 = arith.mulf %83, %77 : vector<2x256xf32>
    %cst_31 = arith.constant 1.000000e+00 : f32
    %85 = vector.broadcast %cst_31 : f32 to vector<2x1xf32>
    %86 = arith.subf %85, %82 : vector<2x1xf32>
    %87 = arith.subf %69, %77 : vector<2x256xf32>
    %88 = vector.broadcast %86 : vector<2x1xf32> to vector<2x256xf32>
    %89 = arith.mulf %88, %87 : vector<2x256xf32>
    %90 = arith.addf %84, %89 : vector<2x256xf32>
    %cst_32 = arith.constant 1.000000e+00 : f32
    %91 = vector.broadcast %cst_32 : f32 to vector<2x1xf32>
    %92 = arith.subf %91, %82 : vector<2x1xf32>
    %93 = vector.broadcast %92 : vector<2x1xf32> to vector<2x256xf32>
    %94 = arith.mulf %93, %77 : vector<2x256xf32>
    %95 = arith.addf %70, %94 : vector<2x256xf32>
    %cst_33 = arith.constant 1.000000e+00 : f32
    %96 = vector.broadcast %cst_33 : f32 to vector<2x1xf32>
    %97 = arith.subf %96, %82 : vector<2x1xf32>
    %98 = arith.mulf %97, %79 : vector<2x1xf32>
    %99 = arith.subf %60, %98 : vector<2x1xf32>
    %c1073741824_i32 = arith.constant 1073741824 : i32
    %100 = vector.broadcast %c1073741824_i32 : i32 to vector<2x256xi32>
    %101 = arith.andi %68, %100 : vector<2x256xi32>
    %c0_i32_34 = arith.constant 0 : i32
    %102 = vector.broadcast %c0_i32_34 : i32 to vector<2x256xi32>
    %103 = arith.cmpi ne, %101, %102 : vector<2x256xi32>
    %104 = arith.extui %103 : vector<2x256xi1> to vector<2x256xi32>
    %105 = arith.sitofp %104 : vector<2x256xi32> to vector<2x256xf32>
    %106 = arith.mulf %90, %105 : vector<2x256xf32>
    %cst_35 = arith.constant dense<0.000000e+00> : vector<2xf32>
    %107 = vector.multi_reduction <add>, %106, %cst_35 [1] : vector<2x256xf32> to vector<2xf32>
    %108 = vector.shape_cast %107 : vector<2xf32> to vector<2x1xf32>
    %109 = arith.cmpf oge, %108, %99 : vector<2x1xf32>
    %110 = arith.extui %109 : vector<2x1xi1> to vector<2x1xi32>
    %111 = arith.sitofp %110 : vector<2x1xi32> to vector<2x1xf32>
    %112 = vector.broadcast %111 : vector<2x1xf32> to vector<2x256xf32>
    %113 = arith.mulf %112, %106 : vector<2x256xf32>
    %cst_36 = arith.constant 1.000000e+00 : f32
    %114 = vector.broadcast %cst_36 : f32 to vector<2x1xf32>
    %115 = arith.subf %114, %111 : vector<2x1xf32>
    %116 = arith.subf %90, %106 : vector<2x256xf32>
    %117 = vector.broadcast %115 : vector<2x1xf32> to vector<2x256xf32>
    %118 = arith.mulf %117, %116 : vector<2x256xf32>
    %119 = arith.addf %113, %118 : vector<2x256xf32>
    %cst_37 = arith.constant 1.000000e+00 : f32
    %120 = vector.broadcast %cst_37 : f32 to vector<2x1xf32>
    %121 = arith.subf %120, %111 : vector<2x1xf32>
    %122 = vector.broadcast %121 : vector<2x1xf32> to vector<2x256xf32>
    %123 = arith.mulf %122, %106 : vector<2x256xf32>
    %124 = arith.addf %95, %123 : vector<2x256xf32>
    %cst_38 = arith.constant 1.000000e+00 : f32
    %125 = vector.broadcast %cst_38 : f32 to vector<2x1xf32>
    %126 = arith.subf %125, %111 : vector<2x1xf32>
    %127 = arith.mulf %126, %108 : vector<2x1xf32>
    %128 = arith.subf %99, %127 : vector<2x1xf32>
    %c536870912_i32 = arith.constant 536870912 : i32
    %129 = vector.broadcast %c536870912_i32 : i32 to vector<2x256xi32>
    %130 = arith.andi %68, %129 : vector<2x256xi32>
    %c0_i32_39 = arith.constant 0 : i32
    %131 = vector.broadcast %c0_i32_39 : i32 to vector<2x256xi32>
    %132 = arith.cmpi ne, %130, %131 : vector<2x256xi32>
    %133 = arith.extui %132 : vector<2x256xi1> to vector<2x256xi32>
    %134 = arith.sitofp %133 : vector<2x256xi32> to vector<2x256xf32>
    %135 = arith.mulf %119, %134 : vector<2x256xf32>
    %cst_40 = arith.constant dense<0.000000e+00> : vector<2xf32>
    %136 = vector.multi_reduction <add>, %135, %cst_40 [1] : vector<2x256xf32> to vector<2xf32>
    %137 = vector.shape_cast %136 : vector<2xf32> to vector<2x1xf32>
    %138 = arith.cmpf oge, %137, %128 : vector<2x1xf32>
    %139 = arith.extui %138 : vector<2x1xi1> to vector<2x1xi32>
    %140 = arith.sitofp %139 : vector<2x1xi32> to vector<2x1xf32>
    %141 = vector.broadcast %140 : vector<2x1xf32> to vector<2x256xf32>
    %142 = arith.mulf %141, %135 : vector<2x256xf32>
    %cst_41 = arith.constant 1.000000e+00 : f32
    %143 = vector.broadcast %cst_41 : f32 to vector<2x1xf32>
    %144 = arith.subf %143, %140 : vector<2x1xf32>
    %145 = arith.subf %119, %135 : vector<2x256xf32>
    %146 = vector.broadcast %144 : vector<2x1xf32> to vector<2x256xf32>
    %147 = arith.mulf %146, %145 : vector<2x256xf32>
    %148 = arith.addf %142, %147 : vector<2x256xf32>
    %cst_42 = arith.constant 1.000000e+00 : f32
    %149 = vector.broadcast %cst_42 : f32 to vector<2x1xf32>
    %150 = arith.subf %149, %140 : vector<2x1xf32>
    %151 = vector.broadcast %150 : vector<2x1xf32> to vector<2x256xf32>
    %152 = arith.mulf %151, %135 : vector<2x256xf32>
    %153 = arith.addf %124, %152 : vector<2x256xf32>
    %cst_43 = arith.constant 1.000000e+00 : f32
    %154 = vector.broadcast %cst_43 : f32 to vector<2x1xf32>
    %155 = arith.subf %154, %140 : vector<2x1xf32>
    %156 = arith.mulf %155, %137 : vector<2x1xf32>
    %157 = arith.subf %128, %156 : vector<2x1xf32>
    %c268435456_i32 = arith.constant 268435456 : i32
    %158 = vector.broadcast %c268435456_i32 : i32 to vector<2x256xi32>
    %159 = arith.andi %68, %158 : vector<2x256xi32>
    %c0_i32_44 = arith.constant 0 : i32
    %160 = vector.broadcast %c0_i32_44 : i32 to vector<2x256xi32>
    %161 = arith.cmpi ne, %159, %160 : vector<2x256xi32>
    %162 = arith.extui %161 : vector<2x256xi1> to vector<2x256xi32>
    %163 = arith.sitofp %162 : vector<2x256xi32> to vector<2x256xf32>
    %164 = arith.mulf %148, %163 : vector<2x256xf32>
    %cst_45 = arith.constant dense<0.000000e+00> : vector<2xf32>
    %165 = vector.multi_reduction <add>, %164, %cst_45 [1] : vector<2x256xf32> to vector<2xf32>
    %166 = vector.shape_cast %165 : vector<2xf32> to vector<2x1xf32>
    %167 = arith.cmpf oge, %166, %157 : vector<2x1xf32>
    %168 = arith.extui %167 : vector<2x1xi1> to vector<2x1xi32>
    %169 = arith.sitofp %168 : vector<2x1xi32> to vector<2x1xf32>
    %170 = vector.broadcast %169 : vector<2x1xf32> to vector<2x256xf32>
    %171 = arith.mulf %170, %164 : vector<2x256xf32>
    %cst_46 = arith.constant 1.000000e+00 : f32
    %172 = vector.broadcast %cst_46 : f32 to vector<2x1xf32>
    %173 = arith.subf %172, %169 : vector<2x1xf32>
    %174 = arith.subf %148, %164 : vector<2x256xf32>
    %175 = vector.broadcast %173 : vector<2x1xf32> to vector<2x256xf32>
    %176 = arith.mulf %175, %174 : vector<2x256xf32>
    %177 = arith.addf %171, %176 : vector<2x256xf32>
    %cst_47 = arith.constant 1.000000e+00 : f32
    %178 = vector.broadcast %cst_47 : f32 to vector<2x1xf32>
    %179 = arith.subf %178, %169 : vector<2x1xf32>
    %180 = vector.broadcast %179 : vector<2x1xf32> to vector<2x256xf32>
    %181 = arith.mulf %180, %164 : vector<2x256xf32>
    %182 = arith.addf %153, %181 : vector<2x256xf32>
    %cst_48 = arith.constant 1.000000e+00 : f32
    %183 = vector.broadcast %cst_48 : f32 to vector<2x1xf32>
    %184 = arith.subf %183, %169 : vector<2x1xf32>
    %185 = arith.mulf %184, %166 : vector<2x1xf32>
    %186 = arith.subf %157, %185 : vector<2x1xf32>
    %c134217728_i32 = arith.constant 134217728 : i32
    %187 = vector.broadcast %c134217728_i32 : i32 to vector<2x256xi32>
    %188 = arith.andi %68, %187 : vector<2x256xi32>
    %c0_i32_49 = arith.constant 0 : i32
    %189 = vector.broadcast %c0_i32_49 : i32 to vector<2x256xi32>
    %190 = arith.cmpi ne, %188, %189 : vector<2x256xi32>
    %191 = arith.extui %190 : vector<2x256xi1> to vector<2x256xi32>
    %192 = arith.sitofp %191 : vector<2x256xi32> to vector<2x256xf32>
    %193 = arith.mulf %177, %192 : vector<2x256xf32>
    %cst_50 = arith.constant dense<0.000000e+00> : vector<2xf32>
    %194 = vector.multi_reduction <add>, %193, %cst_50 [1] : vector<2x256xf32> to vector<2xf32>
    %195 = vector.shape_cast %194 : vector<2xf32> to vector<2x1xf32>
    %196 = arith.cmpf oge, %195, %186 : vector<2x1xf32>
    %197 = arith.extui %196 : vector<2x1xi1> to vector<2x1xi32>
    %198 = arith.sitofp %197 : vector<2x1xi32> to vector<2x1xf32>
    %199 = vector.broadcast %198 : vector<2x1xf32> to vector<2x256xf32>
    %200 = arith.mulf %199, %193 : vector<2x256xf32>
    %cst_51 = arith.constant 1.000000e+00 : f32
    %201 = vector.broadcast %cst_51 : f32 to vector<2x1xf32>
    %202 = arith.subf %201, %198 : vector<2x1xf32>
    %203 = arith.subf %177, %193 : vector<2x256xf32>
    %204 = vector.broadcast %202 : vector<2x1xf32> to vector<2x256xf32>
    %205 = arith.mulf %204, %203 : vector<2x256xf32>
    %206 = arith.addf %200, %205 : vector<2x256xf32>
    %cst_52 = arith.constant 1.000000e+00 : f32
    %207 = vector.broadcast %cst_52 : f32 to vector<2x1xf32>
    %208 = arith.subf %207, %198 : vector<2x1xf32>
    %209 = vector.broadcast %208 : vector<2x1xf32> to vector<2x256xf32>
    %210 = arith.mulf %209, %193 : vector<2x256xf32>
    %211 = arith.addf %182, %210 : vector<2x256xf32>
    %cst_53 = arith.constant 1.000000e+00 : f32
    %212 = vector.broadcast %cst_53 : f32 to vector<2x1xf32>
    %213 = arith.subf %212, %198 : vector<2x1xf32>
    %214 = arith.mulf %213, %195 : vector<2x1xf32>
    %215 = arith.subf %186, %214 : vector<2x1xf32>
    %c67108864_i32 = arith.constant 67108864 : i32
    %216 = vector.broadcast %c67108864_i32 : i32 to vector<2x256xi32>
    %217 = arith.andi %68, %216 : vector<2x256xi32>
    %c0_i32_54 = arith.constant 0 : i32
    %218 = vector.broadcast %c0_i32_54 : i32 to vector<2x256xi32>
    %219 = arith.cmpi ne, %217, %218 : vector<2x256xi32>
    %220 = arith.extui %219 : vector<2x256xi1> to vector<2x256xi32>
    %221 = arith.sitofp %220 : vector<2x256xi32> to vector<2x256xf32>
    %222 = arith.mulf %206, %221 : vector<2x256xf32>
    %cst_55 = arith.constant dense<0.000000e+00> : vector<2xf32>
    %223 = vector.multi_reduction <add>, %222, %cst_55 [1] : vector<2x256xf32> to vector<2xf32>
    %224 = vector.shape_cast %223 : vector<2xf32> to vector<2x1xf32>
    %225 = arith.cmpf oge, %224, %215 : vector<2x1xf32>
    %226 = arith.extui %225 : vector<2x1xi1> to vector<2x1xi32>
    %227 = arith.sitofp %226 : vector<2x1xi32> to vector<2x1xf32>
    %228 = vector.broadcast %227 : vector<2x1xf32> to vector<2x256xf32>
    %229 = arith.mulf %228, %222 : vector<2x256xf32>
    %cst_56 = arith.constant 1.000000e+00 : f32
    %230 = vector.broadcast %cst_56 : f32 to vector<2x1xf32>
    %231 = arith.subf %230, %227 : vector<2x1xf32>
    %232 = arith.subf %206, %222 : vector<2x256xf32>
    %233 = vector.broadcast %231 : vector<2x1xf32> to vector<2x256xf32>
    %234 = arith.mulf %233, %232 : vector<2x256xf32>
    %235 = arith.addf %229, %234 : vector<2x256xf32>
    %cst_57 = arith.constant 1.000000e+00 : f32
    %236 = vector.broadcast %cst_57 : f32 to vector<2x1xf32>
    %237 = arith.subf %236, %227 : vector<2x1xf32>
    %238 = vector.broadcast %237 : vector<2x1xf32> to vector<2x256xf32>
    %239 = arith.mulf %238, %222 : vector<2x256xf32>
    %240 = arith.addf %211, %239 : vector<2x256xf32>
    %cst_58 = arith.constant 1.000000e+00 : f32
    %241 = vector.broadcast %cst_58 : f32 to vector<2x1xf32>
    %242 = arith.subf %241, %227 : vector<2x1xf32>
    %243 = arith.mulf %242, %224 : vector<2x1xf32>
    %244 = arith.subf %215, %243 : vector<2x1xf32>
    %c33554432_i32 = arith.constant 33554432 : i32
    %245 = vector.broadcast %c33554432_i32 : i32 to vector<2x256xi32>
    %246 = arith.andi %68, %245 : vector<2x256xi32>
    %c0_i32_59 = arith.constant 0 : i32
    %247 = vector.broadcast %c0_i32_59 : i32 to vector<2x256xi32>
    %248 = arith.cmpi ne, %246, %247 : vector<2x256xi32>
    %249 = arith.extui %248 : vector<2x256xi1> to vector<2x256xi32>
    %250 = arith.sitofp %249 : vector<2x256xi32> to vector<2x256xf32>
    %251 = arith.mulf %235, %250 : vector<2x256xf32>
    %cst_60 = arith.constant dense<0.000000e+00> : vector<2xf32>
    %252 = vector.multi_reduction <add>, %251, %cst_60 [1] : vector<2x256xf32> to vector<2xf32>
    %253 = vector.shape_cast %252 : vector<2xf32> to vector<2x1xf32>
    %254 = arith.cmpf oge, %253, %244 : vector<2x1xf32>
    %255 = arith.extui %254 : vector<2x1xi1> to vector<2x1xi32>
    %256 = arith.sitofp %255 : vector<2x1xi32> to vector<2x1xf32>
    %257 = vector.broadcast %256 : vector<2x1xf32> to vector<2x256xf32>
    %258 = arith.mulf %257, %251 : vector<2x256xf32>
    %cst_61 = arith.constant 1.000000e+00 : f32
    %259 = vector.broadcast %cst_61 : f32 to vector<2x1xf32>
    %260 = arith.subf %259, %256 : vector<2x1xf32>
    %261 = arith.subf %235, %251 : vector<2x256xf32>
    %262 = vector.broadcast %260 : vector<2x1xf32> to vector<2x256xf32>
    %263 = arith.mulf %262, %261 : vector<2x256xf32>
    %264 = arith.addf %258, %263 : vector<2x256xf32>
    %cst_62 = arith.constant 1.000000e+00 : f32
    %265 = vector.broadcast %cst_62 : f32 to vector<2x1xf32>
    %266 = arith.subf %265, %256 : vector<2x1xf32>
    %267 = vector.broadcast %266 : vector<2x1xf32> to vector<2x256xf32>
    %268 = arith.mulf %267, %251 : vector<2x256xf32>
    %269 = arith.addf %240, %268 : vector<2x256xf32>
    %cst_63 = arith.constant 1.000000e+00 : f32
    %270 = vector.broadcast %cst_63 : f32 to vector<2x1xf32>
    %271 = arith.subf %270, %256 : vector<2x1xf32>
    %272 = arith.mulf %271, %253 : vector<2x1xf32>
    %273 = arith.subf %244, %272 : vector<2x1xf32>
    %c16777216_i32 = arith.constant 16777216 : i32
    %274 = vector.broadcast %c16777216_i32 : i32 to vector<2x256xi32>
    %275 = arith.andi %68, %274 : vector<2x256xi32>
    %c0_i32_64 = arith.constant 0 : i32
    %276 = vector.broadcast %c0_i32_64 : i32 to vector<2x256xi32>
    %277 = arith.cmpi ne, %275, %276 : vector<2x256xi32>
    %278 = arith.extui %277 : vector<2x256xi1> to vector<2x256xi32>
    %279 = arith.sitofp %278 : vector<2x256xi32> to vector<2x256xf32>
    %280 = arith.mulf %264, %279 : vector<2x256xf32>
    %cst_65 = arith.constant dense<0.000000e+00> : vector<2xf32>
    %281 = vector.multi_reduction <add>, %280, %cst_65 [1] : vector<2x256xf32> to vector<2xf32>
    %282 = vector.shape_cast %281 : vector<2xf32> to vector<2x1xf32>
    %283 = arith.cmpf oge, %282, %273 : vector<2x1xf32>
    %284 = arith.extui %283 : vector<2x1xi1> to vector<2x1xi32>
    %285 = arith.sitofp %284 : vector<2x1xi32> to vector<2x1xf32>
    %286 = vector.broadcast %285 : vector<2x1xf32> to vector<2x256xf32>
    %287 = arith.mulf %286, %280 : vector<2x256xf32>
    %cst_66 = arith.constant 1.000000e+00 : f32
    %288 = vector.broadcast %cst_66 : f32 to vector<2x1xf32>
    %289 = arith.subf %288, %285 : vector<2x1xf32>
    %290 = arith.subf %264, %280 : vector<2x256xf32>
    %291 = vector.broadcast %289 : vector<2x1xf32> to vector<2x256xf32>
    %292 = arith.mulf %291, %290 : vector<2x256xf32>
    %293 = arith.addf %287, %292 : vector<2x256xf32>
    %cst_67 = arith.constant 1.000000e+00 : f32
    %294 = vector.broadcast %cst_67 : f32 to vector<2x1xf32>
    %295 = arith.subf %294, %285 : vector<2x1xf32>
    %296 = vector.broadcast %295 : vector<2x1xf32> to vector<2x256xf32>
    %297 = arith.mulf %296, %280 : vector<2x256xf32>
    %298 = arith.addf %269, %297 : vector<2x256xf32>
    %cst_68 = arith.constant 1.000000e+00 : f32
    %299 = vector.broadcast %cst_68 : f32 to vector<2x1xf32>
    %300 = arith.subf %299, %285 : vector<2x1xf32>
    %301 = arith.mulf %300, %282 : vector<2x1xf32>
    %302 = arith.subf %273, %301 : vector<2x1xf32>
    %c8388608_i32 = arith.constant 8388608 : i32
    %303 = vector.broadcast %c8388608_i32 : i32 to vector<2x256xi32>
    %304 = arith.andi %68, %303 : vector<2x256xi32>
    %c0_i32_69 = arith.constant 0 : i32
    %305 = vector.broadcast %c0_i32_69 : i32 to vector<2x256xi32>
    %306 = arith.cmpi ne, %304, %305 : vector<2x256xi32>
    %307 = arith.extui %306 : vector<2x256xi1> to vector<2x256xi32>
    %308 = arith.sitofp %307 : vector<2x256xi32> to vector<2x256xf32>
    %309 = arith.mulf %293, %308 : vector<2x256xf32>
    %cst_70 = arith.constant dense<0.000000e+00> : vector<2xf32>
    %310 = vector.multi_reduction <add>, %309, %cst_70 [1] : vector<2x256xf32> to vector<2xf32>
    %311 = vector.shape_cast %310 : vector<2xf32> to vector<2x1xf32>
    %312 = arith.cmpf oge, %311, %302 : vector<2x1xf32>
    %313 = arith.extui %312 : vector<2x1xi1> to vector<2x1xi32>
    %314 = arith.sitofp %313 : vector<2x1xi32> to vector<2x1xf32>
    %315 = vector.broadcast %314 : vector<2x1xf32> to vector<2x256xf32>
    %316 = arith.mulf %315, %309 : vector<2x256xf32>
    %cst_71 = arith.constant 1.000000e+00 : f32
    %317 = vector.broadcast %cst_71 : f32 to vector<2x1xf32>
    %318 = arith.subf %317, %314 : vector<2x1xf32>
    %319 = arith.subf %293, %309 : vector<2x256xf32>
    %320 = vector.broadcast %318 : vector<2x1xf32> to vector<2x256xf32>
    %321 = arith.mulf %320, %319 : vector<2x256xf32>
    %322 = arith.addf %316, %321 : vector<2x256xf32>
    %cst_72 = arith.constant 1.000000e+00 : f32
    %323 = vector.broadcast %cst_72 : f32 to vector<2x1xf32>
    %324 = arith.subf %323, %314 : vector<2x1xf32>
    %325 = vector.broadcast %324 : vector<2x1xf32> to vector<2x256xf32>
    %326 = arith.mulf %325, %309 : vector<2x256xf32>
    %327 = arith.addf %298, %326 : vector<2x256xf32>
    %cst_73 = arith.constant 1.000000e+00 : f32
    %328 = vector.broadcast %cst_73 : f32 to vector<2x1xf32>
    %329 = arith.subf %328, %314 : vector<2x1xf32>
    %330 = arith.mulf %329, %311 : vector<2x1xf32>
    %331 = arith.subf %302, %330 : vector<2x1xf32>
    %c4194304_i32 = arith.constant 4194304 : i32
    %332 = vector.broadcast %c4194304_i32 : i32 to vector<2x256xi32>
    %333 = arith.andi %68, %332 : vector<2x256xi32>
    %c0_i32_74 = arith.constant 0 : i32
    %334 = vector.broadcast %c0_i32_74 : i32 to vector<2x256xi32>
    %335 = arith.cmpi ne, %333, %334 : vector<2x256xi32>
    %336 = arith.extui %335 : vector<2x256xi1> to vector<2x256xi32>
    %337 = arith.sitofp %336 : vector<2x256xi32> to vector<2x256xf32>
    %338 = arith.mulf %322, %337 : vector<2x256xf32>
    %cst_75 = arith.constant dense<0.000000e+00> : vector<2xf32>
    %339 = vector.multi_reduction <add>, %338, %cst_75 [1] : vector<2x256xf32> to vector<2xf32>
    %340 = vector.shape_cast %339 : vector<2xf32> to vector<2x1xf32>
    %341 = arith.cmpf oge, %340, %331 : vector<2x1xf32>
    %342 = arith.extui %341 : vector<2x1xi1> to vector<2x1xi32>
    %343 = arith.sitofp %342 : vector<2x1xi32> to vector<2x1xf32>
    %344 = vector.broadcast %343 : vector<2x1xf32> to vector<2x256xf32>
    %345 = arith.mulf %344, %338 : vector<2x256xf32>
    %cst_76 = arith.constant 1.000000e+00 : f32
    %346 = vector.broadcast %cst_76 : f32 to vector<2x1xf32>
    %347 = arith.subf %346, %343 : vector<2x1xf32>
    %348 = arith.subf %322, %338 : vector<2x256xf32>
    %349 = vector.broadcast %347 : vector<2x1xf32> to vector<2x256xf32>
    %350 = arith.mulf %349, %348 : vector<2x256xf32>
    %351 = arith.addf %345, %350 : vector<2x256xf32>
    %cst_77 = arith.constant 1.000000e+00 : f32
    %352 = vector.broadcast %cst_77 : f32 to vector<2x1xf32>
    %353 = arith.subf %352, %343 : vector<2x1xf32>
    %354 = vector.broadcast %353 : vector<2x1xf32> to vector<2x256xf32>
    %355 = arith.mulf %354, %338 : vector<2x256xf32>
    %356 = arith.addf %327, %355 : vector<2x256xf32>
    %cst_78 = arith.constant 1.000000e+00 : f32
    %357 = vector.broadcast %cst_78 : f32 to vector<2x1xf32>
    %358 = arith.subf %357, %343 : vector<2x1xf32>
    %359 = arith.mulf %358, %340 : vector<2x1xf32>
    %360 = arith.subf %331, %359 : vector<2x1xf32>
    %c2097152_i32 = arith.constant 2097152 : i32
    %361 = vector.broadcast %c2097152_i32 : i32 to vector<2x256xi32>
    %362 = arith.andi %68, %361 : vector<2x256xi32>
    %c0_i32_79 = arith.constant 0 : i32
    %363 = vector.broadcast %c0_i32_79 : i32 to vector<2x256xi32>
    %364 = arith.cmpi ne, %362, %363 : vector<2x256xi32>
    %365 = arith.extui %364 : vector<2x256xi1> to vector<2x256xi32>
    %366 = arith.sitofp %365 : vector<2x256xi32> to vector<2x256xf32>
    %367 = arith.mulf %351, %366 : vector<2x256xf32>
    %cst_80 = arith.constant dense<0.000000e+00> : vector<2xf32>
    %368 = vector.multi_reduction <add>, %367, %cst_80 [1] : vector<2x256xf32> to vector<2xf32>
    %369 = vector.shape_cast %368 : vector<2xf32> to vector<2x1xf32>
    %370 = arith.cmpf oge, %369, %360 : vector<2x1xf32>
    %371 = arith.extui %370 : vector<2x1xi1> to vector<2x1xi32>
    %372 = arith.sitofp %371 : vector<2x1xi32> to vector<2x1xf32>
    %373 = vector.broadcast %372 : vector<2x1xf32> to vector<2x256xf32>
    %374 = arith.mulf %373, %367 : vector<2x256xf32>
    %cst_81 = arith.constant 1.000000e+00 : f32
    %375 = vector.broadcast %cst_81 : f32 to vector<2x1xf32>
    %376 = arith.subf %375, %372 : vector<2x1xf32>
    %377 = arith.subf %351, %367 : vector<2x256xf32>
    %378 = vector.broadcast %376 : vector<2x1xf32> to vector<2x256xf32>
    %379 = arith.mulf %378, %377 : vector<2x256xf32>
    %380 = arith.addf %374, %379 : vector<2x256xf32>
    %cst_82 = arith.constant 1.000000e+00 : f32
    %381 = vector.broadcast %cst_82 : f32 to vector<2x1xf32>
    %382 = arith.subf %381, %372 : vector<2x1xf32>
    %383 = vector.broadcast %382 : vector<2x1xf32> to vector<2x256xf32>
    %384 = arith.mulf %383, %367 : vector<2x256xf32>
    %385 = arith.addf %356, %384 : vector<2x256xf32>
    %cst_83 = arith.constant 1.000000e+00 : f32
    %386 = vector.broadcast %cst_83 : f32 to vector<2x1xf32>
    %387 = arith.subf %386, %372 : vector<2x1xf32>
    %388 = arith.mulf %387, %369 : vector<2x1xf32>
    %389 = arith.subf %360, %388 : vector<2x1xf32>
    %c1048576_i32 = arith.constant 1048576 : i32
    %390 = vector.broadcast %c1048576_i32 : i32 to vector<2x256xi32>
    %391 = arith.andi %68, %390 : vector<2x256xi32>
    %c0_i32_84 = arith.constant 0 : i32
    %392 = vector.broadcast %c0_i32_84 : i32 to vector<2x256xi32>
    %393 = arith.cmpi ne, %391, %392 : vector<2x256xi32>
    %394 = arith.extui %393 : vector<2x256xi1> to vector<2x256xi32>
    %395 = arith.sitofp %394 : vector<2x256xi32> to vector<2x256xf32>
    %396 = arith.mulf %380, %395 : vector<2x256xf32>
    %cst_85 = arith.constant dense<0.000000e+00> : vector<2xf32>
    %397 = vector.multi_reduction <add>, %396, %cst_85 [1] : vector<2x256xf32> to vector<2xf32>
    %398 = vector.shape_cast %397 : vector<2xf32> to vector<2x1xf32>
    %399 = arith.cmpf oge, %398, %389 : vector<2x1xf32>
    %400 = arith.extui %399 : vector<2x1xi1> to vector<2x1xi32>
    %401 = arith.sitofp %400 : vector<2x1xi32> to vector<2x1xf32>
    %402 = vector.broadcast %401 : vector<2x1xf32> to vector<2x256xf32>
    %403 = arith.mulf %402, %396 : vector<2x256xf32>
    %cst_86 = arith.constant 1.000000e+00 : f32
    %404 = vector.broadcast %cst_86 : f32 to vector<2x1xf32>
    %405 = arith.subf %404, %401 : vector<2x1xf32>
    %406 = arith.subf %380, %396 : vector<2x256xf32>
    %407 = vector.broadcast %405 : vector<2x1xf32> to vector<2x256xf32>
    %408 = arith.mulf %407, %406 : vector<2x256xf32>
    %409 = arith.addf %403, %408 : vector<2x256xf32>
    %cst_87 = arith.constant 1.000000e+00 : f32
    %410 = vector.broadcast %cst_87 : f32 to vector<2x1xf32>
    %411 = arith.subf %410, %401 : vector<2x1xf32>
    %412 = vector.broadcast %411 : vector<2x1xf32> to vector<2x256xf32>
    %413 = arith.mulf %412, %396 : vector<2x256xf32>
    %414 = arith.addf %385, %413 : vector<2x256xf32>
    %cst_88 = arith.constant 1.000000e+00 : f32
    %415 = vector.broadcast %cst_88 : f32 to vector<2x1xf32>
    %416 = arith.subf %415, %401 : vector<2x1xf32>
    %417 = arith.mulf %416, %398 : vector<2x1xf32>
    %418 = arith.subf %389, %417 : vector<2x1xf32>
    %c524288_i32 = arith.constant 524288 : i32
    %419 = vector.broadcast %c524288_i32 : i32 to vector<2x256xi32>
    %420 = arith.andi %68, %419 : vector<2x256xi32>
    %c0_i32_89 = arith.constant 0 : i32
    %421 = vector.broadcast %c0_i32_89 : i32 to vector<2x256xi32>
    %422 = arith.cmpi ne, %420, %421 : vector<2x256xi32>
    %423 = arith.extui %422 : vector<2x256xi1> to vector<2x256xi32>
    %424 = arith.sitofp %423 : vector<2x256xi32> to vector<2x256xf32>
    %425 = arith.mulf %409, %424 : vector<2x256xf32>
    %cst_90 = arith.constant dense<0.000000e+00> : vector<2xf32>
    %426 = vector.multi_reduction <add>, %425, %cst_90 [1] : vector<2x256xf32> to vector<2xf32>
    %427 = vector.shape_cast %426 : vector<2xf32> to vector<2x1xf32>
    %428 = arith.cmpf oge, %427, %418 : vector<2x1xf32>
    %429 = arith.extui %428 : vector<2x1xi1> to vector<2x1xi32>
    %430 = arith.sitofp %429 : vector<2x1xi32> to vector<2x1xf32>
    %431 = vector.broadcast %430 : vector<2x1xf32> to vector<2x256xf32>
    %432 = arith.mulf %431, %425 : vector<2x256xf32>
    %cst_91 = arith.constant 1.000000e+00 : f32
    %433 = vector.broadcast %cst_91 : f32 to vector<2x1xf32>
    %434 = arith.subf %433, %430 : vector<2x1xf32>
    %435 = arith.subf %409, %425 : vector<2x256xf32>
    %436 = vector.broadcast %434 : vector<2x1xf32> to vector<2x256xf32>
    %437 = arith.mulf %436, %435 : vector<2x256xf32>
    %438 = arith.addf %432, %437 : vector<2x256xf32>
    %cst_92 = arith.constant 1.000000e+00 : f32
    %439 = vector.broadcast %cst_92 : f32 to vector<2x1xf32>
    %440 = arith.subf %439, %430 : vector<2x1xf32>
    %441 = vector.broadcast %440 : vector<2x1xf32> to vector<2x256xf32>
    %442 = arith.mulf %441, %425 : vector<2x256xf32>
    %443 = arith.addf %414, %442 : vector<2x256xf32>
    %cst_93 = arith.constant 1.000000e+00 : f32
    %444 = vector.broadcast %cst_93 : f32 to vector<2x1xf32>
    %445 = arith.subf %444, %430 : vector<2x1xf32>
    %446 = arith.mulf %445, %427 : vector<2x1xf32>
    %447 = arith.subf %418, %446 : vector<2x1xf32>
    %c262144_i32 = arith.constant 262144 : i32
    %448 = vector.broadcast %c262144_i32 : i32 to vector<2x256xi32>
    %449 = arith.andi %68, %448 : vector<2x256xi32>
    %c0_i32_94 = arith.constant 0 : i32
    %450 = vector.broadcast %c0_i32_94 : i32 to vector<2x256xi32>
    %451 = arith.cmpi ne, %449, %450 : vector<2x256xi32>
    %452 = arith.extui %451 : vector<2x256xi1> to vector<2x256xi32>
    %453 = arith.sitofp %452 : vector<2x256xi32> to vector<2x256xf32>
    %454 = arith.mulf %438, %453 : vector<2x256xf32>
    %cst_95 = arith.constant dense<0.000000e+00> : vector<2xf32>
    %455 = vector.multi_reduction <add>, %454, %cst_95 [1] : vector<2x256xf32> to vector<2xf32>
    %456 = vector.shape_cast %455 : vector<2xf32> to vector<2x1xf32>
    %457 = arith.cmpf oge, %456, %447 : vector<2x1xf32>
    %458 = arith.extui %457 : vector<2x1xi1> to vector<2x1xi32>
    %459 = arith.sitofp %458 : vector<2x1xi32> to vector<2x1xf32>
    %460 = vector.broadcast %459 : vector<2x1xf32> to vector<2x256xf32>
    %461 = arith.mulf %460, %454 : vector<2x256xf32>
    %cst_96 = arith.constant 1.000000e+00 : f32
    %462 = vector.broadcast %cst_96 : f32 to vector<2x1xf32>
    %463 = arith.subf %462, %459 : vector<2x1xf32>
    %464 = arith.subf %438, %454 : vector<2x256xf32>
    %465 = vector.broadcast %463 : vector<2x1xf32> to vector<2x256xf32>
    %466 = arith.mulf %465, %464 : vector<2x256xf32>
    %467 = arith.addf %461, %466 : vector<2x256xf32>
    %cst_97 = arith.constant 1.000000e+00 : f32
    %468 = vector.broadcast %cst_97 : f32 to vector<2x1xf32>
    %469 = arith.subf %468, %459 : vector<2x1xf32>
    %470 = vector.broadcast %469 : vector<2x1xf32> to vector<2x256xf32>
    %471 = arith.mulf %470, %454 : vector<2x256xf32>
    %472 = arith.addf %443, %471 : vector<2x256xf32>
    %cst_98 = arith.constant 1.000000e+00 : f32
    %473 = vector.broadcast %cst_98 : f32 to vector<2x1xf32>
    %474 = arith.subf %473, %459 : vector<2x1xf32>
    %475 = arith.mulf %474, %456 : vector<2x1xf32>
    %476 = arith.subf %447, %475 : vector<2x1xf32>
    %c131072_i32 = arith.constant 131072 : i32
    %477 = vector.broadcast %c131072_i32 : i32 to vector<2x256xi32>
    %478 = arith.andi %68, %477 : vector<2x256xi32>
    %c0_i32_99 = arith.constant 0 : i32
    %479 = vector.broadcast %c0_i32_99 : i32 to vector<2x256xi32>
    %480 = arith.cmpi ne, %478, %479 : vector<2x256xi32>
    %481 = arith.extui %480 : vector<2x256xi1> to vector<2x256xi32>
    %482 = arith.sitofp %481 : vector<2x256xi32> to vector<2x256xf32>
    %483 = arith.mulf %467, %482 : vector<2x256xf32>
    %cst_100 = arith.constant dense<0.000000e+00> : vector<2xf32>
    %484 = vector.multi_reduction <add>, %483, %cst_100 [1] : vector<2x256xf32> to vector<2xf32>
    %485 = vector.shape_cast %484 : vector<2xf32> to vector<2x1xf32>
    %486 = arith.cmpf oge, %485, %476 : vector<2x1xf32>
    %487 = arith.extui %486 : vector<2x1xi1> to vector<2x1xi32>
    %488 = arith.sitofp %487 : vector<2x1xi32> to vector<2x1xf32>
    %489 = vector.broadcast %488 : vector<2x1xf32> to vector<2x256xf32>
    %490 = arith.mulf %489, %483 : vector<2x256xf32>
    %cst_101 = arith.constant 1.000000e+00 : f32
    %491 = vector.broadcast %cst_101 : f32 to vector<2x1xf32>
    %492 = arith.subf %491, %488 : vector<2x1xf32>
    %493 = arith.subf %467, %483 : vector<2x256xf32>
    %494 = vector.broadcast %492 : vector<2x1xf32> to vector<2x256xf32>
    %495 = arith.mulf %494, %493 : vector<2x256xf32>
    %496 = arith.addf %490, %495 : vector<2x256xf32>
    %cst_102 = arith.constant 1.000000e+00 : f32
    %497 = vector.broadcast %cst_102 : f32 to vector<2x1xf32>
    %498 = arith.subf %497, %488 : vector<2x1xf32>
    %499 = vector.broadcast %498 : vector<2x1xf32> to vector<2x256xf32>
    %500 = arith.mulf %499, %483 : vector<2x256xf32>
    %501 = arith.addf %472, %500 : vector<2x256xf32>
    %cst_103 = arith.constant 1.000000e+00 : f32
    %502 = vector.broadcast %cst_103 : f32 to vector<2x1xf32>
    %503 = arith.subf %502, %488 : vector<2x1xf32>
    %504 = arith.mulf %503, %485 : vector<2x1xf32>
    %505 = arith.subf %476, %504 : vector<2x1xf32>
    %c65536_i32 = arith.constant 65536 : i32
    %506 = vector.broadcast %c65536_i32 : i32 to vector<2x256xi32>
    %507 = arith.andi %68, %506 : vector<2x256xi32>
    %c0_i32_104 = arith.constant 0 : i32
    %508 = vector.broadcast %c0_i32_104 : i32 to vector<2x256xi32>
    %509 = arith.cmpi ne, %507, %508 : vector<2x256xi32>
    %510 = arith.extui %509 : vector<2x256xi1> to vector<2x256xi32>
    %511 = arith.sitofp %510 : vector<2x256xi32> to vector<2x256xf32>
    %512 = arith.mulf %496, %511 : vector<2x256xf32>
    %cst_105 = arith.constant dense<0.000000e+00> : vector<2xf32>
    %513 = vector.multi_reduction <add>, %512, %cst_105 [1] : vector<2x256xf32> to vector<2xf32>
    %514 = vector.shape_cast %513 : vector<2xf32> to vector<2x1xf32>
    %515 = arith.cmpf oge, %514, %505 : vector<2x1xf32>
    %516 = arith.extui %515 : vector<2x1xi1> to vector<2x1xi32>
    %517 = arith.sitofp %516 : vector<2x1xi32> to vector<2x1xf32>
    %518 = vector.broadcast %517 : vector<2x1xf32> to vector<2x256xf32>
    %519 = arith.mulf %518, %512 : vector<2x256xf32>
    %cst_106 = arith.constant 1.000000e+00 : f32
    %520 = vector.broadcast %cst_106 : f32 to vector<2x1xf32>
    %521 = arith.subf %520, %517 : vector<2x1xf32>
    %522 = arith.subf %496, %512 : vector<2x256xf32>
    %523 = vector.broadcast %521 : vector<2x1xf32> to vector<2x256xf32>
    %524 = arith.mulf %523, %522 : vector<2x256xf32>
    %525 = arith.addf %519, %524 : vector<2x256xf32>
    %cst_107 = arith.constant 1.000000e+00 : f32
    %526 = vector.broadcast %cst_107 : f32 to vector<2x1xf32>
    %527 = arith.subf %526, %517 : vector<2x1xf32>
    %528 = vector.broadcast %527 : vector<2x1xf32> to vector<2x256xf32>
    %529 = arith.mulf %528, %512 : vector<2x256xf32>
    %530 = arith.addf %501, %529 : vector<2x256xf32>
    %cst_108 = arith.constant 1.000000e+00 : f32
    %531 = vector.broadcast %cst_108 : f32 to vector<2x1xf32>
    %532 = arith.subf %531, %517 : vector<2x1xf32>
    %533 = arith.mulf %532, %514 : vector<2x1xf32>
    %534 = arith.subf %505, %533 : vector<2x1xf32>
    %c32768_i32 = arith.constant 32768 : i32
    %535 = vector.broadcast %c32768_i32 : i32 to vector<2x256xi32>
    %536 = arith.andi %68, %535 : vector<2x256xi32>
    %c0_i32_109 = arith.constant 0 : i32
    %537 = vector.broadcast %c0_i32_109 : i32 to vector<2x256xi32>
    %538 = arith.cmpi ne, %536, %537 : vector<2x256xi32>
    %539 = arith.extui %538 : vector<2x256xi1> to vector<2x256xi32>
    %540 = arith.sitofp %539 : vector<2x256xi32> to vector<2x256xf32>
    %541 = arith.mulf %525, %540 : vector<2x256xf32>
    %cst_110 = arith.constant dense<0.000000e+00> : vector<2xf32>
    %542 = vector.multi_reduction <add>, %541, %cst_110 [1] : vector<2x256xf32> to vector<2xf32>
    %543 = vector.shape_cast %542 : vector<2xf32> to vector<2x1xf32>
    %544 = arith.cmpf oge, %543, %534 : vector<2x1xf32>
    %545 = arith.extui %544 : vector<2x1xi1> to vector<2x1xi32>
    %546 = arith.sitofp %545 : vector<2x1xi32> to vector<2x1xf32>
    %547 = vector.broadcast %546 : vector<2x1xf32> to vector<2x256xf32>
    %548 = arith.mulf %547, %541 : vector<2x256xf32>
    %cst_111 = arith.constant 1.000000e+00 : f32
    %549 = vector.broadcast %cst_111 : f32 to vector<2x1xf32>
    %550 = arith.subf %549, %546 : vector<2x1xf32>
    %551 = arith.subf %525, %541 : vector<2x256xf32>
    %552 = vector.broadcast %550 : vector<2x1xf32> to vector<2x256xf32>
    %553 = arith.mulf %552, %551 : vector<2x256xf32>
    %554 = arith.addf %548, %553 : vector<2x256xf32>
    %cst_112 = arith.constant 1.000000e+00 : f32
    %555 = vector.broadcast %cst_112 : f32 to vector<2x1xf32>
    %556 = arith.subf %555, %546 : vector<2x1xf32>
    %557 = vector.broadcast %556 : vector<2x1xf32> to vector<2x256xf32>
    %558 = arith.mulf %557, %541 : vector<2x256xf32>
    %559 = arith.addf %530, %558 : vector<2x256xf32>
    %cst_113 = arith.constant 1.000000e+00 : f32
    %560 = vector.broadcast %cst_113 : f32 to vector<2x1xf32>
    %561 = arith.subf %560, %546 : vector<2x1xf32>
    %562 = arith.mulf %561, %543 : vector<2x1xf32>
    %563 = arith.subf %534, %562 : vector<2x1xf32>
    %c16384_i32 = arith.constant 16384 : i32
    %564 = vector.broadcast %c16384_i32 : i32 to vector<2x256xi32>
    %565 = arith.andi %68, %564 : vector<2x256xi32>
    %c0_i32_114 = arith.constant 0 : i32
    %566 = vector.broadcast %c0_i32_114 : i32 to vector<2x256xi32>
    %567 = arith.cmpi ne, %565, %566 : vector<2x256xi32>
    %568 = arith.extui %567 : vector<2x256xi1> to vector<2x256xi32>
    %569 = arith.sitofp %568 : vector<2x256xi32> to vector<2x256xf32>
    %570 = arith.mulf %554, %569 : vector<2x256xf32>
    %cst_115 = arith.constant dense<0.000000e+00> : vector<2xf32>
    %571 = vector.multi_reduction <add>, %570, %cst_115 [1] : vector<2x256xf32> to vector<2xf32>
    %572 = vector.shape_cast %571 : vector<2xf32> to vector<2x1xf32>
    %573 = arith.cmpf oge, %572, %563 : vector<2x1xf32>
    %574 = arith.extui %573 : vector<2x1xi1> to vector<2x1xi32>
    %575 = arith.sitofp %574 : vector<2x1xi32> to vector<2x1xf32>
    %576 = vector.broadcast %575 : vector<2x1xf32> to vector<2x256xf32>
    %577 = arith.mulf %576, %570 : vector<2x256xf32>
    %cst_116 = arith.constant 1.000000e+00 : f32
    %578 = vector.broadcast %cst_116 : f32 to vector<2x1xf32>
    %579 = arith.subf %578, %575 : vector<2x1xf32>
    %580 = arith.subf %554, %570 : vector<2x256xf32>
    %581 = vector.broadcast %579 : vector<2x1xf32> to vector<2x256xf32>
    %582 = arith.mulf %581, %580 : vector<2x256xf32>
    %583 = arith.addf %577, %582 : vector<2x256xf32>
    %cst_117 = arith.constant 1.000000e+00 : f32
    %584 = vector.broadcast %cst_117 : f32 to vector<2x1xf32>
    %585 = arith.subf %584, %575 : vector<2x1xf32>
    %586 = vector.broadcast %585 : vector<2x1xf32> to vector<2x256xf32>
    %587 = arith.mulf %586, %570 : vector<2x256xf32>
    %588 = arith.addf %559, %587 : vector<2x256xf32>
    %cst_118 = arith.constant 1.000000e+00 : f32
    %589 = vector.broadcast %cst_118 : f32 to vector<2x1xf32>
    %590 = arith.subf %589, %575 : vector<2x1xf32>
    %591 = arith.mulf %590, %572 : vector<2x1xf32>
    %592 = arith.subf %563, %591 : vector<2x1xf32>
    %c8192_i32 = arith.constant 8192 : i32
    %593 = vector.broadcast %c8192_i32 : i32 to vector<2x256xi32>
    %594 = arith.andi %68, %593 : vector<2x256xi32>
    %c0_i32_119 = arith.constant 0 : i32
    %595 = vector.broadcast %c0_i32_119 : i32 to vector<2x256xi32>
    %596 = arith.cmpi ne, %594, %595 : vector<2x256xi32>
    %597 = arith.extui %596 : vector<2x256xi1> to vector<2x256xi32>
    %598 = arith.sitofp %597 : vector<2x256xi32> to vector<2x256xf32>
    %599 = arith.mulf %583, %598 : vector<2x256xf32>
    %cst_120 = arith.constant dense<0.000000e+00> : vector<2xf32>
    %600 = vector.multi_reduction <add>, %599, %cst_120 [1] : vector<2x256xf32> to vector<2xf32>
    %601 = vector.shape_cast %600 : vector<2xf32> to vector<2x1xf32>
    %602 = arith.cmpf oge, %601, %592 : vector<2x1xf32>
    %603 = arith.extui %602 : vector<2x1xi1> to vector<2x1xi32>
    %604 = arith.sitofp %603 : vector<2x1xi32> to vector<2x1xf32>
    %605 = vector.broadcast %604 : vector<2x1xf32> to vector<2x256xf32>
    %606 = arith.mulf %605, %599 : vector<2x256xf32>
    %cst_121 = arith.constant 1.000000e+00 : f32
    %607 = vector.broadcast %cst_121 : f32 to vector<2x1xf32>
    %608 = arith.subf %607, %604 : vector<2x1xf32>
    %609 = arith.subf %583, %599 : vector<2x256xf32>
    %610 = vector.broadcast %608 : vector<2x1xf32> to vector<2x256xf32>
    %611 = arith.mulf %610, %609 : vector<2x256xf32>
    %612 = arith.addf %606, %611 : vector<2x256xf32>
    %cst_122 = arith.constant 1.000000e+00 : f32
    %613 = vector.broadcast %cst_122 : f32 to vector<2x1xf32>
    %614 = arith.subf %613, %604 : vector<2x1xf32>
    %615 = vector.broadcast %614 : vector<2x1xf32> to vector<2x256xf32>
    %616 = arith.mulf %615, %599 : vector<2x256xf32>
    %617 = arith.addf %588, %616 : vector<2x256xf32>
    %cst_123 = arith.constant 1.000000e+00 : f32
    %618 = vector.broadcast %cst_123 : f32 to vector<2x1xf32>
    %619 = arith.subf %618, %604 : vector<2x1xf32>
    %620 = arith.mulf %619, %601 : vector<2x1xf32>
    %621 = arith.subf %592, %620 : vector<2x1xf32>
    %c4096_i32 = arith.constant 4096 : i32
    %622 = vector.broadcast %c4096_i32 : i32 to vector<2x256xi32>
    %623 = arith.andi %68, %622 : vector<2x256xi32>
    %c0_i32_124 = arith.constant 0 : i32
    %624 = vector.broadcast %c0_i32_124 : i32 to vector<2x256xi32>
    %625 = arith.cmpi ne, %623, %624 : vector<2x256xi32>
    %626 = arith.extui %625 : vector<2x256xi1> to vector<2x256xi32>
    %627 = arith.sitofp %626 : vector<2x256xi32> to vector<2x256xf32>
    %628 = arith.mulf %612, %627 : vector<2x256xf32>
    %cst_125 = arith.constant dense<0.000000e+00> : vector<2xf32>
    %629 = vector.multi_reduction <add>, %628, %cst_125 [1] : vector<2x256xf32> to vector<2xf32>
    %630 = vector.shape_cast %629 : vector<2xf32> to vector<2x1xf32>
    %631 = arith.cmpf oge, %630, %621 : vector<2x1xf32>
    %632 = arith.extui %631 : vector<2x1xi1> to vector<2x1xi32>
    %633 = arith.sitofp %632 : vector<2x1xi32> to vector<2x1xf32>
    %634 = vector.broadcast %633 : vector<2x1xf32> to vector<2x256xf32>
    %635 = arith.mulf %634, %628 : vector<2x256xf32>
    %cst_126 = arith.constant 1.000000e+00 : f32
    %636 = vector.broadcast %cst_126 : f32 to vector<2x1xf32>
    %637 = arith.subf %636, %633 : vector<2x1xf32>
    %638 = arith.subf %612, %628 : vector<2x256xf32>
    %639 = vector.broadcast %637 : vector<2x1xf32> to vector<2x256xf32>
    %640 = arith.mulf %639, %638 : vector<2x256xf32>
    %641 = arith.addf %635, %640 : vector<2x256xf32>
    %cst_127 = arith.constant 1.000000e+00 : f32
    %642 = vector.broadcast %cst_127 : f32 to vector<2x1xf32>
    %643 = arith.subf %642, %633 : vector<2x1xf32>
    %644 = vector.broadcast %643 : vector<2x1xf32> to vector<2x256xf32>
    %645 = arith.mulf %644, %628 : vector<2x256xf32>
    %646 = arith.addf %617, %645 : vector<2x256xf32>
    %cst_128 = arith.constant 1.000000e+00 : f32
    %647 = vector.broadcast %cst_128 : f32 to vector<2x1xf32>
    %648 = arith.subf %647, %633 : vector<2x1xf32>
    %649 = arith.mulf %648, %630 : vector<2x1xf32>
    %650 = arith.subf %621, %649 : vector<2x1xf32>
    %c2048_i32 = arith.constant 2048 : i32
    %651 = vector.broadcast %c2048_i32 : i32 to vector<2x256xi32>
    %652 = arith.andi %68, %651 : vector<2x256xi32>
    %c0_i32_129 = arith.constant 0 : i32
    %653 = vector.broadcast %c0_i32_129 : i32 to vector<2x256xi32>
    %654 = arith.cmpi ne, %652, %653 : vector<2x256xi32>
    %655 = arith.extui %654 : vector<2x256xi1> to vector<2x256xi32>
    %656 = arith.sitofp %655 : vector<2x256xi32> to vector<2x256xf32>
    %657 = arith.mulf %641, %656 : vector<2x256xf32>
    %cst_130 = arith.constant dense<0.000000e+00> : vector<2xf32>
    %658 = vector.multi_reduction <add>, %657, %cst_130 [1] : vector<2x256xf32> to vector<2xf32>
    %659 = vector.shape_cast %658 : vector<2xf32> to vector<2x1xf32>
    %660 = arith.cmpf oge, %659, %650 : vector<2x1xf32>
    %661 = arith.extui %660 : vector<2x1xi1> to vector<2x1xi32>
    %662 = arith.sitofp %661 : vector<2x1xi32> to vector<2x1xf32>
    %663 = vector.broadcast %662 : vector<2x1xf32> to vector<2x256xf32>
    %664 = arith.mulf %663, %657 : vector<2x256xf32>
    %cst_131 = arith.constant 1.000000e+00 : f32
    %665 = vector.broadcast %cst_131 : f32 to vector<2x1xf32>
    %666 = arith.subf %665, %662 : vector<2x1xf32>
    %667 = arith.subf %641, %657 : vector<2x256xf32>
    %668 = vector.broadcast %666 : vector<2x1xf32> to vector<2x256xf32>
    %669 = arith.mulf %668, %667 : vector<2x256xf32>
    %670 = arith.addf %664, %669 : vector<2x256xf32>
    %cst_132 = arith.constant 1.000000e+00 : f32
    %671 = vector.broadcast %cst_132 : f32 to vector<2x1xf32>
    %672 = arith.subf %671, %662 : vector<2x1xf32>
    %673 = vector.broadcast %672 : vector<2x1xf32> to vector<2x256xf32>
    %674 = arith.mulf %673, %657 : vector<2x256xf32>
    %675 = arith.addf %646, %674 : vector<2x256xf32>
    %cst_133 = arith.constant 1.000000e+00 : f32
    %676 = vector.broadcast %cst_133 : f32 to vector<2x1xf32>
    %677 = arith.subf %676, %662 : vector<2x1xf32>
    %678 = arith.mulf %677, %659 : vector<2x1xf32>
    %679 = arith.subf %650, %678 : vector<2x1xf32>
    %c1024_i32 = arith.constant 1024 : i32
    %680 = vector.broadcast %c1024_i32 : i32 to vector<2x256xi32>
    %681 = arith.andi %68, %680 : vector<2x256xi32>
    %c0_i32_134 = arith.constant 0 : i32
    %682 = vector.broadcast %c0_i32_134 : i32 to vector<2x256xi32>
    %683 = arith.cmpi ne, %681, %682 : vector<2x256xi32>
    %684 = arith.extui %683 : vector<2x256xi1> to vector<2x256xi32>
    %685 = arith.sitofp %684 : vector<2x256xi32> to vector<2x256xf32>
    %686 = arith.mulf %670, %685 : vector<2x256xf32>
    %cst_135 = arith.constant dense<0.000000e+00> : vector<2xf32>
    %687 = vector.multi_reduction <add>, %686, %cst_135 [1] : vector<2x256xf32> to vector<2xf32>
    %688 = vector.shape_cast %687 : vector<2xf32> to vector<2x1xf32>
    %689 = arith.cmpf oge, %688, %679 : vector<2x1xf32>
    %690 = arith.extui %689 : vector<2x1xi1> to vector<2x1xi32>
    %691 = arith.sitofp %690 : vector<2x1xi32> to vector<2x1xf32>
    %692 = vector.broadcast %691 : vector<2x1xf32> to vector<2x256xf32>
    %693 = arith.mulf %692, %686 : vector<2x256xf32>
    %cst_136 = arith.constant 1.000000e+00 : f32
    %694 = vector.broadcast %cst_136 : f32 to vector<2x1xf32>
    %695 = arith.subf %694, %691 : vector<2x1xf32>
    %696 = arith.subf %670, %686 : vector<2x256xf32>
    %697 = vector.broadcast %695 : vector<2x1xf32> to vector<2x256xf32>
    %698 = arith.mulf %697, %696 : vector<2x256xf32>
    %699 = arith.addf %693, %698 : vector<2x256xf32>
    %cst_137 = arith.constant 1.000000e+00 : f32
    %700 = vector.broadcast %cst_137 : f32 to vector<2x1xf32>
    %701 = arith.subf %700, %691 : vector<2x1xf32>
    %702 = vector.broadcast %701 : vector<2x1xf32> to vector<2x256xf32>
    %703 = arith.mulf %702, %686 : vector<2x256xf32>
    %704 = arith.addf %675, %703 : vector<2x256xf32>
    %cst_138 = arith.constant 1.000000e+00 : f32
    %705 = vector.broadcast %cst_138 : f32 to vector<2x1xf32>
    %706 = arith.subf %705, %691 : vector<2x1xf32>
    %707 = arith.mulf %706, %688 : vector<2x1xf32>
    %708 = arith.subf %679, %707 : vector<2x1xf32>
    %c512_i32 = arith.constant 512 : i32
    %709 = vector.broadcast %c512_i32 : i32 to vector<2x256xi32>
    %710 = arith.andi %68, %709 : vector<2x256xi32>
    %c0_i32_139 = arith.constant 0 : i32
    %711 = vector.broadcast %c0_i32_139 : i32 to vector<2x256xi32>
    %712 = arith.cmpi ne, %710, %711 : vector<2x256xi32>
    %713 = arith.extui %712 : vector<2x256xi1> to vector<2x256xi32>
    %714 = arith.sitofp %713 : vector<2x256xi32> to vector<2x256xf32>
    %715 = arith.mulf %699, %714 : vector<2x256xf32>
    %cst_140 = arith.constant dense<0.000000e+00> : vector<2xf32>
    %716 = vector.multi_reduction <add>, %715, %cst_140 [1] : vector<2x256xf32> to vector<2xf32>
    %717 = vector.shape_cast %716 : vector<2xf32> to vector<2x1xf32>
    %718 = arith.cmpf oge, %717, %708 : vector<2x1xf32>
    %719 = arith.extui %718 : vector<2x1xi1> to vector<2x1xi32>
    %720 = arith.sitofp %719 : vector<2x1xi32> to vector<2x1xf32>
    %721 = vector.broadcast %720 : vector<2x1xf32> to vector<2x256xf32>
    %722 = arith.mulf %721, %715 : vector<2x256xf32>
    %cst_141 = arith.constant 1.000000e+00 : f32
    %723 = vector.broadcast %cst_141 : f32 to vector<2x1xf32>
    %724 = arith.subf %723, %720 : vector<2x1xf32>
    %725 = arith.subf %699, %715 : vector<2x256xf32>
    %726 = vector.broadcast %724 : vector<2x1xf32> to vector<2x256xf32>
    %727 = arith.mulf %726, %725 : vector<2x256xf32>
    %728 = arith.addf %722, %727 : vector<2x256xf32>
    %cst_142 = arith.constant 1.000000e+00 : f32
    %729 = vector.broadcast %cst_142 : f32 to vector<2x1xf32>
    %730 = arith.subf %729, %720 : vector<2x1xf32>
    %731 = vector.broadcast %730 : vector<2x1xf32> to vector<2x256xf32>
    %732 = arith.mulf %731, %715 : vector<2x256xf32>
    %733 = arith.addf %704, %732 : vector<2x256xf32>
    %cst_143 = arith.constant 1.000000e+00 : f32
    %734 = vector.broadcast %cst_143 : f32 to vector<2x1xf32>
    %735 = arith.subf %734, %720 : vector<2x1xf32>
    %736 = arith.mulf %735, %717 : vector<2x1xf32>
    %737 = arith.subf %708, %736 : vector<2x1xf32>
    %c256_i32 = arith.constant 256 : i32
    %738 = vector.broadcast %c256_i32 : i32 to vector<2x256xi32>
    %739 = arith.andi %68, %738 : vector<2x256xi32>
    %c0_i32_144 = arith.constant 0 : i32
    %740 = vector.broadcast %c0_i32_144 : i32 to vector<2x256xi32>
    %741 = arith.cmpi ne, %739, %740 : vector<2x256xi32>
    %742 = arith.extui %741 : vector<2x256xi1> to vector<2x256xi32>
    %743 = arith.sitofp %742 : vector<2x256xi32> to vector<2x256xf32>
    %744 = arith.mulf %728, %743 : vector<2x256xf32>
    %cst_145 = arith.constant dense<0.000000e+00> : vector<2xf32>
    %745 = vector.multi_reduction <add>, %744, %cst_145 [1] : vector<2x256xf32> to vector<2xf32>
    %746 = vector.shape_cast %745 : vector<2xf32> to vector<2x1xf32>
    %747 = arith.cmpf oge, %746, %737 : vector<2x1xf32>
    %748 = arith.extui %747 : vector<2x1xi1> to vector<2x1xi32>
    %749 = arith.sitofp %748 : vector<2x1xi32> to vector<2x1xf32>
    %750 = vector.broadcast %749 : vector<2x1xf32> to vector<2x256xf32>
    %751 = arith.mulf %750, %744 : vector<2x256xf32>
    %cst_146 = arith.constant 1.000000e+00 : f32
    %752 = vector.broadcast %cst_146 : f32 to vector<2x1xf32>
    %753 = arith.subf %752, %749 : vector<2x1xf32>
    %754 = arith.subf %728, %744 : vector<2x256xf32>
    %755 = vector.broadcast %753 : vector<2x1xf32> to vector<2x256xf32>
    %756 = arith.mulf %755, %754 : vector<2x256xf32>
    %757 = arith.addf %751, %756 : vector<2x256xf32>
    %cst_147 = arith.constant 1.000000e+00 : f32
    %758 = vector.broadcast %cst_147 : f32 to vector<2x1xf32>
    %759 = arith.subf %758, %749 : vector<2x1xf32>
    %760 = vector.broadcast %759 : vector<2x1xf32> to vector<2x256xf32>
    %761 = arith.mulf %760, %744 : vector<2x256xf32>
    %762 = arith.addf %733, %761 : vector<2x256xf32>
    %cst_148 = arith.constant 1.000000e+00 : f32
    %763 = vector.broadcast %cst_148 : f32 to vector<2x1xf32>
    %764 = arith.subf %763, %749 : vector<2x1xf32>
    %765 = arith.mulf %764, %746 : vector<2x1xf32>
    %766 = arith.subf %737, %765 : vector<2x1xf32>
    %c128_i32 = arith.constant 128 : i32
    %767 = vector.broadcast %c128_i32 : i32 to vector<2x256xi32>
    %768 = arith.andi %68, %767 : vector<2x256xi32>
    %c0_i32_149 = arith.constant 0 : i32
    %769 = vector.broadcast %c0_i32_149 : i32 to vector<2x256xi32>
    %770 = arith.cmpi ne, %768, %769 : vector<2x256xi32>
    %771 = arith.extui %770 : vector<2x256xi1> to vector<2x256xi32>
    %772 = arith.sitofp %771 : vector<2x256xi32> to vector<2x256xf32>
    %773 = arith.mulf %757, %772 : vector<2x256xf32>
    %cst_150 = arith.constant dense<0.000000e+00> : vector<2xf32>
    %774 = vector.multi_reduction <add>, %773, %cst_150 [1] : vector<2x256xf32> to vector<2xf32>
    %775 = vector.shape_cast %774 : vector<2xf32> to vector<2x1xf32>
    %776 = arith.cmpf oge, %775, %766 : vector<2x1xf32>
    %777 = arith.extui %776 : vector<2x1xi1> to vector<2x1xi32>
    %778 = arith.sitofp %777 : vector<2x1xi32> to vector<2x1xf32>
    %779 = vector.broadcast %778 : vector<2x1xf32> to vector<2x256xf32>
    %780 = arith.mulf %779, %773 : vector<2x256xf32>
    %cst_151 = arith.constant 1.000000e+00 : f32
    %781 = vector.broadcast %cst_151 : f32 to vector<2x1xf32>
    %782 = arith.subf %781, %778 : vector<2x1xf32>
    %783 = arith.subf %757, %773 : vector<2x256xf32>
    %784 = vector.broadcast %782 : vector<2x1xf32> to vector<2x256xf32>
    %785 = arith.mulf %784, %783 : vector<2x256xf32>
    %786 = arith.addf %780, %785 : vector<2x256xf32>
    %cst_152 = arith.constant 1.000000e+00 : f32
    %787 = vector.broadcast %cst_152 : f32 to vector<2x1xf32>
    %788 = arith.subf %787, %778 : vector<2x1xf32>
    %789 = vector.broadcast %788 : vector<2x1xf32> to vector<2x256xf32>
    %790 = arith.mulf %789, %773 : vector<2x256xf32>
    %791 = arith.addf %762, %790 : vector<2x256xf32>
    %cst_153 = arith.constant 1.000000e+00 : f32
    %792 = vector.broadcast %cst_153 : f32 to vector<2x1xf32>
    %793 = arith.subf %792, %778 : vector<2x1xf32>
    %794 = arith.mulf %793, %775 : vector<2x1xf32>
    %795 = arith.subf %766, %794 : vector<2x1xf32>
    %c64_i32 = arith.constant 64 : i32
    %796 = vector.broadcast %c64_i32 : i32 to vector<2x256xi32>
    %797 = arith.andi %68, %796 : vector<2x256xi32>
    %c0_i32_154 = arith.constant 0 : i32
    %798 = vector.broadcast %c0_i32_154 : i32 to vector<2x256xi32>
    %799 = arith.cmpi ne, %797, %798 : vector<2x256xi32>
    %800 = arith.extui %799 : vector<2x256xi1> to vector<2x256xi32>
    %801 = arith.sitofp %800 : vector<2x256xi32> to vector<2x256xf32>
    %802 = arith.mulf %786, %801 : vector<2x256xf32>
    %cst_155 = arith.constant dense<0.000000e+00> : vector<2xf32>
    %803 = vector.multi_reduction <add>, %802, %cst_155 [1] : vector<2x256xf32> to vector<2xf32>
    %804 = vector.shape_cast %803 : vector<2xf32> to vector<2x1xf32>
    %805 = arith.cmpf oge, %804, %795 : vector<2x1xf32>
    %806 = arith.extui %805 : vector<2x1xi1> to vector<2x1xi32>
    %807 = arith.sitofp %806 : vector<2x1xi32> to vector<2x1xf32>
    %808 = vector.broadcast %807 : vector<2x1xf32> to vector<2x256xf32>
    %809 = arith.mulf %808, %802 : vector<2x256xf32>
    %cst_156 = arith.constant 1.000000e+00 : f32
    %810 = vector.broadcast %cst_156 : f32 to vector<2x1xf32>
    %811 = arith.subf %810, %807 : vector<2x1xf32>
    %812 = arith.subf %786, %802 : vector<2x256xf32>
    %813 = vector.broadcast %811 : vector<2x1xf32> to vector<2x256xf32>
    %814 = arith.mulf %813, %812 : vector<2x256xf32>
    %815 = arith.addf %809, %814 : vector<2x256xf32>
    %cst_157 = arith.constant 1.000000e+00 : f32
    %816 = vector.broadcast %cst_157 : f32 to vector<2x1xf32>
    %817 = arith.subf %816, %807 : vector<2x1xf32>
    %818 = vector.broadcast %817 : vector<2x1xf32> to vector<2x256xf32>
    %819 = arith.mulf %818, %802 : vector<2x256xf32>
    %820 = arith.addf %791, %819 : vector<2x256xf32>
    %cst_158 = arith.constant 1.000000e+00 : f32
    %821 = vector.broadcast %cst_158 : f32 to vector<2x1xf32>
    %822 = arith.subf %821, %807 : vector<2x1xf32>
    %823 = arith.mulf %822, %804 : vector<2x1xf32>
    %824 = arith.subf %795, %823 : vector<2x1xf32>
    %c32_i32 = arith.constant 32 : i32
    %825 = vector.broadcast %c32_i32 : i32 to vector<2x256xi32>
    %826 = arith.andi %68, %825 : vector<2x256xi32>
    %c0_i32_159 = arith.constant 0 : i32
    %827 = vector.broadcast %c0_i32_159 : i32 to vector<2x256xi32>
    %828 = arith.cmpi ne, %826, %827 : vector<2x256xi32>
    %829 = arith.extui %828 : vector<2x256xi1> to vector<2x256xi32>
    %830 = arith.sitofp %829 : vector<2x256xi32> to vector<2x256xf32>
    %831 = arith.mulf %815, %830 : vector<2x256xf32>
    %cst_160 = arith.constant dense<0.000000e+00> : vector<2xf32>
    %832 = vector.multi_reduction <add>, %831, %cst_160 [1] : vector<2x256xf32> to vector<2xf32>
    %833 = vector.shape_cast %832 : vector<2xf32> to vector<2x1xf32>
    %834 = arith.cmpf oge, %833, %824 : vector<2x1xf32>
    %835 = arith.extui %834 : vector<2x1xi1> to vector<2x1xi32>
    %836 = arith.sitofp %835 : vector<2x1xi32> to vector<2x1xf32>
    %837 = vector.broadcast %836 : vector<2x1xf32> to vector<2x256xf32>
    %838 = arith.mulf %837, %831 : vector<2x256xf32>
    %cst_161 = arith.constant 1.000000e+00 : f32
    %839 = vector.broadcast %cst_161 : f32 to vector<2x1xf32>
    %840 = arith.subf %839, %836 : vector<2x1xf32>
    %841 = arith.subf %815, %831 : vector<2x256xf32>
    %842 = vector.broadcast %840 : vector<2x1xf32> to vector<2x256xf32>
    %843 = arith.mulf %842, %841 : vector<2x256xf32>
    %844 = arith.addf %838, %843 : vector<2x256xf32>
    %cst_162 = arith.constant 1.000000e+00 : f32
    %845 = vector.broadcast %cst_162 : f32 to vector<2x1xf32>
    %846 = arith.subf %845, %836 : vector<2x1xf32>
    %847 = vector.broadcast %846 : vector<2x1xf32> to vector<2x256xf32>
    %848 = arith.mulf %847, %831 : vector<2x256xf32>
    %849 = arith.addf %820, %848 : vector<2x256xf32>
    %cst_163 = arith.constant 1.000000e+00 : f32
    %850 = vector.broadcast %cst_163 : f32 to vector<2x1xf32>
    %851 = arith.subf %850, %836 : vector<2x1xf32>
    %852 = arith.mulf %851, %833 : vector<2x1xf32>
    %853 = arith.subf %824, %852 : vector<2x1xf32>
    %c16_i32 = arith.constant 16 : i32
    %854 = vector.broadcast %c16_i32 : i32 to vector<2x256xi32>
    %855 = arith.andi %68, %854 : vector<2x256xi32>
    %c0_i32_164 = arith.constant 0 : i32
    %856 = vector.broadcast %c0_i32_164 : i32 to vector<2x256xi32>
    %857 = arith.cmpi ne, %855, %856 : vector<2x256xi32>
    %858 = arith.extui %857 : vector<2x256xi1> to vector<2x256xi32>
    %859 = arith.sitofp %858 : vector<2x256xi32> to vector<2x256xf32>
    %860 = arith.mulf %844, %859 : vector<2x256xf32>
    %cst_165 = arith.constant dense<0.000000e+00> : vector<2xf32>
    %861 = vector.multi_reduction <add>, %860, %cst_165 [1] : vector<2x256xf32> to vector<2xf32>
    %862 = vector.shape_cast %861 : vector<2xf32> to vector<2x1xf32>
    %863 = arith.cmpf oge, %862, %853 : vector<2x1xf32>
    %864 = arith.extui %863 : vector<2x1xi1> to vector<2x1xi32>
    %865 = arith.sitofp %864 : vector<2x1xi32> to vector<2x1xf32>
    %866 = vector.broadcast %865 : vector<2x1xf32> to vector<2x256xf32>
    %867 = arith.mulf %866, %860 : vector<2x256xf32>
    %cst_166 = arith.constant 1.000000e+00 : f32
    %868 = vector.broadcast %cst_166 : f32 to vector<2x1xf32>
    %869 = arith.subf %868, %865 : vector<2x1xf32>
    %870 = arith.subf %844, %860 : vector<2x256xf32>
    %871 = vector.broadcast %869 : vector<2x1xf32> to vector<2x256xf32>
    %872 = arith.mulf %871, %870 : vector<2x256xf32>
    %873 = arith.addf %867, %872 : vector<2x256xf32>
    %cst_167 = arith.constant 1.000000e+00 : f32
    %874 = vector.broadcast %cst_167 : f32 to vector<2x1xf32>
    %875 = arith.subf %874, %865 : vector<2x1xf32>
    %876 = vector.broadcast %875 : vector<2x1xf32> to vector<2x256xf32>
    %877 = arith.mulf %876, %860 : vector<2x256xf32>
    %878 = arith.addf %849, %877 : vector<2x256xf32>
    %cst_168 = arith.constant 1.000000e+00 : f32
    %879 = vector.broadcast %cst_168 : f32 to vector<2x1xf32>
    %880 = arith.subf %879, %865 : vector<2x1xf32>
    %881 = arith.mulf %880, %862 : vector<2x1xf32>
    %882 = arith.subf %853, %881 : vector<2x1xf32>
    %c8_i32 = arith.constant 8 : i32
    %883 = vector.broadcast %c8_i32 : i32 to vector<2x256xi32>
    %884 = arith.andi %68, %883 : vector<2x256xi32>
    %c0_i32_169 = arith.constant 0 : i32
    %885 = vector.broadcast %c0_i32_169 : i32 to vector<2x256xi32>
    %886 = arith.cmpi ne, %884, %885 : vector<2x256xi32>
    %887 = arith.extui %886 : vector<2x256xi1> to vector<2x256xi32>
    %888 = arith.sitofp %887 : vector<2x256xi32> to vector<2x256xf32>
    %889 = arith.mulf %873, %888 : vector<2x256xf32>
    %cst_170 = arith.constant dense<0.000000e+00> : vector<2xf32>
    %890 = vector.multi_reduction <add>, %889, %cst_170 [1] : vector<2x256xf32> to vector<2xf32>
    %891 = vector.shape_cast %890 : vector<2xf32> to vector<2x1xf32>
    %892 = arith.cmpf oge, %891, %882 : vector<2x1xf32>
    %893 = arith.extui %892 : vector<2x1xi1> to vector<2x1xi32>
    %894 = arith.sitofp %893 : vector<2x1xi32> to vector<2x1xf32>
    %895 = vector.broadcast %894 : vector<2x1xf32> to vector<2x256xf32>
    %896 = arith.mulf %895, %889 : vector<2x256xf32>
    %cst_171 = arith.constant 1.000000e+00 : f32
    %897 = vector.broadcast %cst_171 : f32 to vector<2x1xf32>
    %898 = arith.subf %897, %894 : vector<2x1xf32>
    %899 = arith.subf %873, %889 : vector<2x256xf32>
    %900 = vector.broadcast %898 : vector<2x1xf32> to vector<2x256xf32>
    %901 = arith.mulf %900, %899 : vector<2x256xf32>
    %902 = arith.addf %896, %901 : vector<2x256xf32>
    %cst_172 = arith.constant 1.000000e+00 : f32
    %903 = vector.broadcast %cst_172 : f32 to vector<2x1xf32>
    %904 = arith.subf %903, %894 : vector<2x1xf32>
    %905 = vector.broadcast %904 : vector<2x1xf32> to vector<2x256xf32>
    %906 = arith.mulf %905, %889 : vector<2x256xf32>
    %907 = arith.addf %878, %906 : vector<2x256xf32>
    %cst_173 = arith.constant 1.000000e+00 : f32
    %908 = vector.broadcast %cst_173 : f32 to vector<2x1xf32>
    %909 = arith.subf %908, %894 : vector<2x1xf32>
    %910 = arith.mulf %909, %891 : vector<2x1xf32>
    %911 = arith.subf %882, %910 : vector<2x1xf32>
    %c4_i32 = arith.constant 4 : i32
    %912 = vector.broadcast %c4_i32 : i32 to vector<2x256xi32>
    %913 = arith.andi %68, %912 : vector<2x256xi32>
    %c0_i32_174 = arith.constant 0 : i32
    %914 = vector.broadcast %c0_i32_174 : i32 to vector<2x256xi32>
    %915 = arith.cmpi ne, %913, %914 : vector<2x256xi32>
    %916 = arith.extui %915 : vector<2x256xi1> to vector<2x256xi32>
    %917 = arith.sitofp %916 : vector<2x256xi32> to vector<2x256xf32>
    %918 = arith.mulf %902, %917 : vector<2x256xf32>
    %cst_175 = arith.constant dense<0.000000e+00> : vector<2xf32>
    %919 = vector.multi_reduction <add>, %918, %cst_175 [1] : vector<2x256xf32> to vector<2xf32>
    %920 = vector.shape_cast %919 : vector<2xf32> to vector<2x1xf32>
    %921 = arith.cmpf oge, %920, %911 : vector<2x1xf32>
    %922 = arith.extui %921 : vector<2x1xi1> to vector<2x1xi32>
    %923 = arith.sitofp %922 : vector<2x1xi32> to vector<2x1xf32>
    %924 = vector.broadcast %923 : vector<2x1xf32> to vector<2x256xf32>
    %925 = arith.mulf %924, %918 : vector<2x256xf32>
    %cst_176 = arith.constant 1.000000e+00 : f32
    %926 = vector.broadcast %cst_176 : f32 to vector<2x1xf32>
    %927 = arith.subf %926, %923 : vector<2x1xf32>
    %928 = arith.subf %902, %918 : vector<2x256xf32>
    %929 = vector.broadcast %927 : vector<2x1xf32> to vector<2x256xf32>
    %930 = arith.mulf %929, %928 : vector<2x256xf32>
    %931 = arith.addf %925, %930 : vector<2x256xf32>
    %cst_177 = arith.constant 1.000000e+00 : f32
    %932 = vector.broadcast %cst_177 : f32 to vector<2x1xf32>
    %933 = arith.subf %932, %923 : vector<2x1xf32>
    %934 = vector.broadcast %933 : vector<2x1xf32> to vector<2x256xf32>
    %935 = arith.mulf %934, %918 : vector<2x256xf32>
    %936 = arith.addf %907, %935 : vector<2x256xf32>
    %cst_178 = arith.constant 1.000000e+00 : f32
    %937 = vector.broadcast %cst_178 : f32 to vector<2x1xf32>
    %938 = arith.subf %937, %923 : vector<2x1xf32>
    %939 = arith.mulf %938, %920 : vector<2x1xf32>
    %940 = arith.subf %911, %939 : vector<2x1xf32>
    %c2_i32_179 = arith.constant 2 : i32
    %941 = vector.broadcast %c2_i32_179 : i32 to vector<2x256xi32>
    %942 = arith.andi %68, %941 : vector<2x256xi32>
    %c0_i32_180 = arith.constant 0 : i32
    %943 = vector.broadcast %c0_i32_180 : i32 to vector<2x256xi32>
    %944 = arith.cmpi ne, %942, %943 : vector<2x256xi32>
    %945 = arith.extui %944 : vector<2x256xi1> to vector<2x256xi32>
    %946 = arith.sitofp %945 : vector<2x256xi32> to vector<2x256xf32>
    %947 = arith.mulf %931, %946 : vector<2x256xf32>
    %cst_181 = arith.constant dense<0.000000e+00> : vector<2xf32>
    %948 = vector.multi_reduction <add>, %947, %cst_181 [1] : vector<2x256xf32> to vector<2xf32>
    %949 = vector.shape_cast %948 : vector<2xf32> to vector<2x1xf32>
    %950 = arith.cmpf oge, %949, %940 : vector<2x1xf32>
    %951 = arith.extui %950 : vector<2x1xi1> to vector<2x1xi32>
    %952 = arith.sitofp %951 : vector<2x1xi32> to vector<2x1xf32>
    %953 = vector.broadcast %952 : vector<2x1xf32> to vector<2x256xf32>
    %954 = arith.mulf %953, %947 : vector<2x256xf32>
    %cst_182 = arith.constant 1.000000e+00 : f32
    %955 = vector.broadcast %cst_182 : f32 to vector<2x1xf32>
    %956 = arith.subf %955, %952 : vector<2x1xf32>
    %957 = arith.subf %931, %947 : vector<2x256xf32>
    %958 = vector.broadcast %956 : vector<2x1xf32> to vector<2x256xf32>
    %959 = arith.mulf %958, %957 : vector<2x256xf32>
    %960 = arith.addf %954, %959 : vector<2x256xf32>
    %cst_183 = arith.constant 1.000000e+00 : f32
    %961 = vector.broadcast %cst_183 : f32 to vector<2x1xf32>
    %962 = arith.subf %961, %952 : vector<2x1xf32>
    %963 = vector.broadcast %962 : vector<2x1xf32> to vector<2x256xf32>
    %964 = arith.mulf %963, %947 : vector<2x256xf32>
    %965 = arith.addf %936, %964 : vector<2x256xf32>
    %cst_184 = arith.constant 1.000000e+00 : f32
    %966 = vector.broadcast %cst_184 : f32 to vector<2x1xf32>
    %967 = arith.subf %966, %952 : vector<2x1xf32>
    %968 = arith.mulf %967, %949 : vector<2x1xf32>
    %969 = arith.subf %940, %968 : vector<2x1xf32>
    %c1_i32 = arith.constant 1 : i32
    %970 = vector.broadcast %c1_i32 : i32 to vector<2x256xi32>
    %971 = arith.andi %68, %970 : vector<2x256xi32>
    %c0_i32_185 = arith.constant 0 : i32
    %972 = vector.broadcast %c0_i32_185 : i32 to vector<2x256xi32>
    %973 = arith.cmpi ne, %971, %972 : vector<2x256xi32>
    %974 = arith.extui %973 : vector<2x256xi1> to vector<2x256xi32>
    %975 = arith.sitofp %974 : vector<2x256xi32> to vector<2x256xf32>
    %976 = arith.mulf %960, %975 : vector<2x256xf32>
    %cst_186 = arith.constant dense<0.000000e+00> : vector<2xf32>
    %977 = vector.multi_reduction <add>, %976, %cst_186 [1] : vector<2x256xf32> to vector<2xf32>
    %978 = vector.shape_cast %977 : vector<2xf32> to vector<2x1xf32>
    %979 = arith.cmpf oge, %978, %969 : vector<2x1xf32>
    %980 = arith.extui %979 : vector<2x1xi1> to vector<2x1xi32>
    %981 = arith.sitofp %980 : vector<2x1xi32> to vector<2x1xf32>
    %982 = vector.broadcast %981 : vector<2x1xf32> to vector<2x256xf32>
    %983 = arith.mulf %982, %976 : vector<2x256xf32>
    %cst_187 = arith.constant 1.000000e+00 : f32
    %984 = vector.broadcast %cst_187 : f32 to vector<2x1xf32>
    %985 = arith.subf %984, %981 : vector<2x1xf32>
    %986 = arith.subf %960, %976 : vector<2x256xf32>
    %987 = vector.broadcast %985 : vector<2x1xf32> to vector<2x256xf32>
    %988 = arith.mulf %987, %986 : vector<2x256xf32>
    %989 = arith.addf %983, %988 : vector<2x256xf32>
    %cst_188 = arith.constant 1.000000e+00 : f32
    %990 = vector.broadcast %cst_188 : f32 to vector<2x1xf32>
    %991 = arith.subf %990, %981 : vector<2x1xf32>
    %992 = vector.broadcast %991 : vector<2x1xf32> to vector<2x256xf32>
    %993 = arith.mulf %992, %976 : vector<2x256xf32>
    %994 = arith.addf %965, %993 : vector<2x256xf32>
    %cst_189 = arith.constant 1.000000e+00 : f32
    %995 = vector.broadcast %cst_189 : f32 to vector<2x1xf32>
    %996 = arith.subf %995, %981 : vector<2x1xf32>
    %997 = arith.mulf %996, %978 : vector<2x1xf32>
    %998 = arith.subf %969, %997 : vector<2x1xf32>
    %999 = tpu.iota {dimensions = array<i32: 1>} : vector<2x256xi32>
    %c255_i32 = arith.constant 255 : i32
    %1000 = vector.broadcast %c255_i32 : i32 to vector<2x256xi32>
    %1001 = arith.subi %1000, %999 : vector<2x256xi32>
    %c128_i32_190 = arith.constant 128 : i32
    %1002 = vector.broadcast %c128_i32_190 : i32 to vector<2x256xi32>
    %1003 = arith.andi %1001, %1002 : vector<2x256xi32>
    %c0_i32_191 = arith.constant 0 : i32
    %1004 = vector.broadcast %c0_i32_191 : i32 to vector<2x256xi32>
    %1005 = arith.cmpi ne, %1003, %1004 : vector<2x256xi32>
    %1006 = arith.extui %1005 : vector<2x256xi1> to vector<2x256xi32>
    %1007 = arith.sitofp %1006 : vector<2x256xi32> to vector<2x256xf32>
    %1008 = arith.mulf %989, %1007 : vector<2x256xf32>
    %cst_192 = arith.constant dense<0.000000e+00> : vector<2xf32>
    %1009 = vector.multi_reduction <add>, %1008, %cst_192 [1] : vector<2x256xf32> to vector<2xf32>
    %1010 = vector.shape_cast %1009 : vector<2xf32> to vector<2x1xf32>
    %1011 = arith.cmpf oge, %1010, %998 : vector<2x1xf32>
    %1012 = arith.extui %1011 : vector<2x1xi1> to vector<2x1xi32>
    %1013 = arith.sitofp %1012 : vector<2x1xi32> to vector<2x1xf32>
    %1014 = vector.broadcast %1013 : vector<2x1xf32> to vector<2x256xf32>
    %1015 = arith.mulf %1014, %1008 : vector<2x256xf32>
    %cst_193 = arith.constant 1.000000e+00 : f32
    %1016 = vector.broadcast %cst_193 : f32 to vector<2x1xf32>
    %1017 = arith.subf %1016, %1013 : vector<2x1xf32>
    %1018 = arith.subf %989, %1008 : vector<2x256xf32>
    %1019 = vector.broadcast %1017 : vector<2x1xf32> to vector<2x256xf32>
    %1020 = arith.mulf %1019, %1018 : vector<2x256xf32>
    %1021 = arith.addf %1015, %1020 : vector<2x256xf32>
    %cst_194 = arith.constant 1.000000e+00 : f32
    %1022 = vector.broadcast %cst_194 : f32 to vector<2x1xf32>
    %1023 = arith.subf %1022, %1013 : vector<2x1xf32>
    %1024 = vector.broadcast %1023 : vector<2x1xf32> to vector<2x256xf32>
    %1025 = arith.mulf %1024, %1008 : vector<2x256xf32>
    %1026 = arith.addf %994, %1025 : vector<2x256xf32>
    %cst_195 = arith.constant 1.000000e+00 : f32
    %1027 = vector.broadcast %cst_195 : f32 to vector<2x1xf32>
    %1028 = arith.subf %1027, %1013 : vector<2x1xf32>
    %1029 = arith.mulf %1028, %1010 : vector<2x1xf32>
    %1030 = arith.subf %998, %1029 : vector<2x1xf32>
    %c64_i32_196 = arith.constant 64 : i32
    %1031 = vector.broadcast %c64_i32_196 : i32 to vector<2x256xi32>
    %1032 = arith.andi %1001, %1031 : vector<2x256xi32>
    %c0_i32_197 = arith.constant 0 : i32
    %1033 = vector.broadcast %c0_i32_197 : i32 to vector<2x256xi32>
    %1034 = arith.cmpi ne, %1032, %1033 : vector<2x256xi32>
    %1035 = arith.extui %1034 : vector<2x256xi1> to vector<2x256xi32>
    %1036 = arith.sitofp %1035 : vector<2x256xi32> to vector<2x256xf32>
    %1037 = arith.mulf %1021, %1036 : vector<2x256xf32>
    %cst_198 = arith.constant dense<0.000000e+00> : vector<2xf32>
    %1038 = vector.multi_reduction <add>, %1037, %cst_198 [1] : vector<2x256xf32> to vector<2xf32>
    %1039 = vector.shape_cast %1038 : vector<2xf32> to vector<2x1xf32>
    %1040 = arith.cmpf oge, %1039, %1030 : vector<2x1xf32>
    %1041 = arith.extui %1040 : vector<2x1xi1> to vector<2x1xi32>
    %1042 = arith.sitofp %1041 : vector<2x1xi32> to vector<2x1xf32>
    %1043 = vector.broadcast %1042 : vector<2x1xf32> to vector<2x256xf32>
    %1044 = arith.mulf %1043, %1037 : vector<2x256xf32>
    %cst_199 = arith.constant 1.000000e+00 : f32
    %1045 = vector.broadcast %cst_199 : f32 to vector<2x1xf32>
    %1046 = arith.subf %1045, %1042 : vector<2x1xf32>
    %1047 = arith.subf %1021, %1037 : vector<2x256xf32>
    %1048 = vector.broadcast %1046 : vector<2x1xf32> to vector<2x256xf32>
    %1049 = arith.mulf %1048, %1047 : vector<2x256xf32>
    %1050 = arith.addf %1044, %1049 : vector<2x256xf32>
    %cst_200 = arith.constant 1.000000e+00 : f32
    %1051 = vector.broadcast %cst_200 : f32 to vector<2x1xf32>
    %1052 = arith.subf %1051, %1042 : vector<2x1xf32>
    %1053 = vector.broadcast %1052 : vector<2x1xf32> to vector<2x256xf32>
    %1054 = arith.mulf %1053, %1037 : vector<2x256xf32>
    %1055 = arith.addf %1026, %1054 : vector<2x256xf32>
    %cst_201 = arith.constant 1.000000e+00 : f32
    %1056 = vector.broadcast %cst_201 : f32 to vector<2x1xf32>
    %1057 = arith.subf %1056, %1042 : vector<2x1xf32>
    %1058 = arith.mulf %1057, %1039 : vector<2x1xf32>
    %1059 = arith.subf %1030, %1058 : vector<2x1xf32>
    %c32_i32_202 = arith.constant 32 : i32
    %1060 = vector.broadcast %c32_i32_202 : i32 to vector<2x256xi32>
    %1061 = arith.andi %1001, %1060 : vector<2x256xi32>
    %c0_i32_203 = arith.constant 0 : i32
    %1062 = vector.broadcast %c0_i32_203 : i32 to vector<2x256xi32>
    %1063 = arith.cmpi ne, %1061, %1062 : vector<2x256xi32>
    %1064 = arith.extui %1063 : vector<2x256xi1> to vector<2x256xi32>
    %1065 = arith.sitofp %1064 : vector<2x256xi32> to vector<2x256xf32>
    %1066 = arith.mulf %1050, %1065 : vector<2x256xf32>
    %cst_204 = arith.constant dense<0.000000e+00> : vector<2xf32>
    %1067 = vector.multi_reduction <add>, %1066, %cst_204 [1] : vector<2x256xf32> to vector<2xf32>
    %1068 = vector.shape_cast %1067 : vector<2xf32> to vector<2x1xf32>
    %1069 = arith.cmpf oge, %1068, %1059 : vector<2x1xf32>
    %1070 = arith.extui %1069 : vector<2x1xi1> to vector<2x1xi32>
    %1071 = arith.sitofp %1070 : vector<2x1xi32> to vector<2x1xf32>
    %1072 = vector.broadcast %1071 : vector<2x1xf32> to vector<2x256xf32>
    %1073 = arith.mulf %1072, %1066 : vector<2x256xf32>
    %cst_205 = arith.constant 1.000000e+00 : f32
    %1074 = vector.broadcast %cst_205 : f32 to vector<2x1xf32>
    %1075 = arith.subf %1074, %1071 : vector<2x1xf32>
    %1076 = arith.subf %1050, %1066 : vector<2x256xf32>
    %1077 = vector.broadcast %1075 : vector<2x1xf32> to vector<2x256xf32>
    %1078 = arith.mulf %1077, %1076 : vector<2x256xf32>
    %1079 = arith.addf %1073, %1078 : vector<2x256xf32>
    %cst_206 = arith.constant 1.000000e+00 : f32
    %1080 = vector.broadcast %cst_206 : f32 to vector<2x1xf32>
    %1081 = arith.subf %1080, %1071 : vector<2x1xf32>
    %1082 = vector.broadcast %1081 : vector<2x1xf32> to vector<2x256xf32>
    %1083 = arith.mulf %1082, %1066 : vector<2x256xf32>
    %1084 = arith.addf %1055, %1083 : vector<2x256xf32>
    %cst_207 = arith.constant 1.000000e+00 : f32
    %1085 = vector.broadcast %cst_207 : f32 to vector<2x1xf32>
    %1086 = arith.subf %1085, %1071 : vector<2x1xf32>
    %1087 = arith.mulf %1086, %1068 : vector<2x1xf32>
    %1088 = arith.subf %1059, %1087 : vector<2x1xf32>
    %c16_i32_208 = arith.constant 16 : i32
    %1089 = vector.broadcast %c16_i32_208 : i32 to vector<2x256xi32>
    %1090 = arith.andi %1001, %1089 : vector<2x256xi32>
    %c0_i32_209 = arith.constant 0 : i32
    %1091 = vector.broadcast %c0_i32_209 : i32 to vector<2x256xi32>
    %1092 = arith.cmpi ne, %1090, %1091 : vector<2x256xi32>
    %1093 = arith.extui %1092 : vector<2x256xi1> to vector<2x256xi32>
    %1094 = arith.sitofp %1093 : vector<2x256xi32> to vector<2x256xf32>
    %1095 = arith.mulf %1079, %1094 : vector<2x256xf32>
    %cst_210 = arith.constant dense<0.000000e+00> : vector<2xf32>
    %1096 = vector.multi_reduction <add>, %1095, %cst_210 [1] : vector<2x256xf32> to vector<2xf32>
    %1097 = vector.shape_cast %1096 : vector<2xf32> to vector<2x1xf32>
    %1098 = arith.cmpf oge, %1097, %1088 : vector<2x1xf32>
    %1099 = arith.extui %1098 : vector<2x1xi1> to vector<2x1xi32>
    %1100 = arith.sitofp %1099 : vector<2x1xi32> to vector<2x1xf32>
    %1101 = vector.broadcast %1100 : vector<2x1xf32> to vector<2x256xf32>
    %1102 = arith.mulf %1101, %1095 : vector<2x256xf32>
    %cst_211 = arith.constant 1.000000e+00 : f32
    %1103 = vector.broadcast %cst_211 : f32 to vector<2x1xf32>
    %1104 = arith.subf %1103, %1100 : vector<2x1xf32>
    %1105 = arith.subf %1079, %1095 : vector<2x256xf32>
    %1106 = vector.broadcast %1104 : vector<2x1xf32> to vector<2x256xf32>
    %1107 = arith.mulf %1106, %1105 : vector<2x256xf32>
    %1108 = arith.addf %1102, %1107 : vector<2x256xf32>
    %cst_212 = arith.constant 1.000000e+00 : f32
    %1109 = vector.broadcast %cst_212 : f32 to vector<2x1xf32>
    %1110 = arith.subf %1109, %1100 : vector<2x1xf32>
    %1111 = vector.broadcast %1110 : vector<2x1xf32> to vector<2x256xf32>
    %1112 = arith.mulf %1111, %1095 : vector<2x256xf32>
    %1113 = arith.addf %1084, %1112 : vector<2x256xf32>
    %cst_213 = arith.constant 1.000000e+00 : f32
    %1114 = vector.broadcast %cst_213 : f32 to vector<2x1xf32>
    %1115 = arith.subf %1114, %1100 : vector<2x1xf32>
    %1116 = arith.mulf %1115, %1097 : vector<2x1xf32>
    %1117 = arith.subf %1088, %1116 : vector<2x1xf32>
    %c8_i32_214 = arith.constant 8 : i32
    %1118 = vector.broadcast %c8_i32_214 : i32 to vector<2x256xi32>
    %1119 = arith.andi %1001, %1118 : vector<2x256xi32>
    %c0_i32_215 = arith.constant 0 : i32
    %1120 = vector.broadcast %c0_i32_215 : i32 to vector<2x256xi32>
    %1121 = arith.cmpi ne, %1119, %1120 : vector<2x256xi32>
    %1122 = arith.extui %1121 : vector<2x256xi1> to vector<2x256xi32>
    %1123 = arith.sitofp %1122 : vector<2x256xi32> to vector<2x256xf32>
    %1124 = arith.mulf %1108, %1123 : vector<2x256xf32>
    %cst_216 = arith.constant dense<0.000000e+00> : vector<2xf32>
    %1125 = vector.multi_reduction <add>, %1124, %cst_216 [1] : vector<2x256xf32> to vector<2xf32>
    %1126 = vector.shape_cast %1125 : vector<2xf32> to vector<2x1xf32>
    %1127 = arith.cmpf oge, %1126, %1117 : vector<2x1xf32>
    %1128 = arith.extui %1127 : vector<2x1xi1> to vector<2x1xi32>
    %1129 = arith.sitofp %1128 : vector<2x1xi32> to vector<2x1xf32>
    %1130 = vector.broadcast %1129 : vector<2x1xf32> to vector<2x256xf32>
    %1131 = arith.mulf %1130, %1124 : vector<2x256xf32>
    %cst_217 = arith.constant 1.000000e+00 : f32
    %1132 = vector.broadcast %cst_217 : f32 to vector<2x1xf32>
    %1133 = arith.subf %1132, %1129 : vector<2x1xf32>
    %1134 = arith.subf %1108, %1124 : vector<2x256xf32>
    %1135 = vector.broadcast %1133 : vector<2x1xf32> to vector<2x256xf32>
    %1136 = arith.mulf %1135, %1134 : vector<2x256xf32>
    %1137 = arith.addf %1131, %1136 : vector<2x256xf32>
    %cst_218 = arith.constant 1.000000e+00 : f32
    %1138 = vector.broadcast %cst_218 : f32 to vector<2x1xf32>
    %1139 = arith.subf %1138, %1129 : vector<2x1xf32>
    %1140 = vector.broadcast %1139 : vector<2x1xf32> to vector<2x256xf32>
    %1141 = arith.mulf %1140, %1124 : vector<2x256xf32>
    %1142 = arith.addf %1113, %1141 : vector<2x256xf32>
    %cst_219 = arith.constant 1.000000e+00 : f32
    %1143 = vector.broadcast %cst_219 : f32 to vector<2x1xf32>
    %1144 = arith.subf %1143, %1129 : vector<2x1xf32>
    %1145 = arith.mulf %1144, %1126 : vector<2x1xf32>
    %1146 = arith.subf %1117, %1145 : vector<2x1xf32>
    %c4_i32_220 = arith.constant 4 : i32
    %1147 = vector.broadcast %c4_i32_220 : i32 to vector<2x256xi32>
    %1148 = arith.andi %1001, %1147 : vector<2x256xi32>
    %c0_i32_221 = arith.constant 0 : i32
    %1149 = vector.broadcast %c0_i32_221 : i32 to vector<2x256xi32>
    %1150 = arith.cmpi ne, %1148, %1149 : vector<2x256xi32>
    %1151 = arith.extui %1150 : vector<2x256xi1> to vector<2x256xi32>
    %1152 = arith.sitofp %1151 : vector<2x256xi32> to vector<2x256xf32>
    %1153 = arith.mulf %1137, %1152 : vector<2x256xf32>
    %cst_222 = arith.constant dense<0.000000e+00> : vector<2xf32>
    %1154 = vector.multi_reduction <add>, %1153, %cst_222 [1] : vector<2x256xf32> to vector<2xf32>
    %1155 = vector.shape_cast %1154 : vector<2xf32> to vector<2x1xf32>
    %1156 = arith.cmpf oge, %1155, %1146 : vector<2x1xf32>
    %1157 = arith.extui %1156 : vector<2x1xi1> to vector<2x1xi32>
    %1158 = arith.sitofp %1157 : vector<2x1xi32> to vector<2x1xf32>
    %1159 = vector.broadcast %1158 : vector<2x1xf32> to vector<2x256xf32>
    %1160 = arith.mulf %1159, %1153 : vector<2x256xf32>
    %cst_223 = arith.constant 1.000000e+00 : f32
    %1161 = vector.broadcast %cst_223 : f32 to vector<2x1xf32>
    %1162 = arith.subf %1161, %1158 : vector<2x1xf32>
    %1163 = arith.subf %1137, %1153 : vector<2x256xf32>
    %1164 = vector.broadcast %1162 : vector<2x1xf32> to vector<2x256xf32>
    %1165 = arith.mulf %1164, %1163 : vector<2x256xf32>
    %1166 = arith.addf %1160, %1165 : vector<2x256xf32>
    %cst_224 = arith.constant 1.000000e+00 : f32
    %1167 = vector.broadcast %cst_224 : f32 to vector<2x1xf32>
    %1168 = arith.subf %1167, %1158 : vector<2x1xf32>
    %1169 = vector.broadcast %1168 : vector<2x1xf32> to vector<2x256xf32>
    %1170 = arith.mulf %1169, %1153 : vector<2x256xf32>
    %1171 = arith.addf %1142, %1170 : vector<2x256xf32>
    %cst_225 = arith.constant 1.000000e+00 : f32
    %1172 = vector.broadcast %cst_225 : f32 to vector<2x1xf32>
    %1173 = arith.subf %1172, %1158 : vector<2x1xf32>
    %1174 = arith.mulf %1173, %1155 : vector<2x1xf32>
    %1175 = arith.subf %1146, %1174 : vector<2x1xf32>
    %c2_i32_226 = arith.constant 2 : i32
    %1176 = vector.broadcast %c2_i32_226 : i32 to vector<2x256xi32>
    %1177 = arith.andi %1001, %1176 : vector<2x256xi32>
    %c0_i32_227 = arith.constant 0 : i32
    %1178 = vector.broadcast %c0_i32_227 : i32 to vector<2x256xi32>
    %1179 = arith.cmpi ne, %1177, %1178 : vector<2x256xi32>
    %1180 = arith.extui %1179 : vector<2x256xi1> to vector<2x256xi32>
    %1181 = arith.sitofp %1180 : vector<2x256xi32> to vector<2x256xf32>
    %1182 = arith.mulf %1166, %1181 : vector<2x256xf32>
    %cst_228 = arith.constant dense<0.000000e+00> : vector<2xf32>
    %1183 = vector.multi_reduction <add>, %1182, %cst_228 [1] : vector<2x256xf32> to vector<2xf32>
    %1184 = vector.shape_cast %1183 : vector<2xf32> to vector<2x1xf32>
    %1185 = arith.cmpf oge, %1184, %1175 : vector<2x1xf32>
    %1186 = arith.extui %1185 : vector<2x1xi1> to vector<2x1xi32>
    %1187 = arith.sitofp %1186 : vector<2x1xi32> to vector<2x1xf32>
    %1188 = vector.broadcast %1187 : vector<2x1xf32> to vector<2x256xf32>
    %1189 = arith.mulf %1188, %1182 : vector<2x256xf32>
    %cst_229 = arith.constant 1.000000e+00 : f32
    %1190 = vector.broadcast %cst_229 : f32 to vector<2x1xf32>
    %1191 = arith.subf %1190, %1187 : vector<2x1xf32>
    %1192 = arith.subf %1166, %1182 : vector<2x256xf32>
    %1193 = vector.broadcast %1191 : vector<2x1xf32> to vector<2x256xf32>
    %1194 = arith.mulf %1193, %1192 : vector<2x256xf32>
    %1195 = arith.addf %1189, %1194 : vector<2x256xf32>
    %cst_230 = arith.constant 1.000000e+00 : f32
    %1196 = vector.broadcast %cst_230 : f32 to vector<2x1xf32>
    %1197 = arith.subf %1196, %1187 : vector<2x1xf32>
    %1198 = vector.broadcast %1197 : vector<2x1xf32> to vector<2x256xf32>
    %1199 = arith.mulf %1198, %1182 : vector<2x256xf32>
    %1200 = arith.addf %1171, %1199 : vector<2x256xf32>
    %cst_231 = arith.constant 1.000000e+00 : f32
    %1201 = vector.broadcast %cst_231 : f32 to vector<2x1xf32>
    %1202 = arith.subf %1201, %1187 : vector<2x1xf32>
    %1203 = arith.mulf %1202, %1184 : vector<2x1xf32>
    %1204 = arith.subf %1175, %1203 : vector<2x1xf32>
    %c1_i32_232 = arith.constant 1 : i32
    %1205 = vector.broadcast %c1_i32_232 : i32 to vector<2x256xi32>
    %1206 = arith.andi %1001, %1205 : vector<2x256xi32>
    %c0_i32_233 = arith.constant 0 : i32
    %1207 = vector.broadcast %c0_i32_233 : i32 to vector<2x256xi32>
    %1208 = arith.cmpi ne, %1206, %1207 : vector<2x256xi32>
    %1209 = arith.extui %1208 : vector<2x256xi1> to vector<2x256xi32>
    %1210 = arith.sitofp %1209 : vector<2x256xi32> to vector<2x256xf32>
    %1211 = arith.mulf %1195, %1210 : vector<2x256xf32>
    %cst_234 = arith.constant dense<0.000000e+00> : vector<2xf32>
    %1212 = vector.multi_reduction <add>, %1211, %cst_234 [1] : vector<2x256xf32> to vector<2xf32>
    %1213 = vector.shape_cast %1212 : vector<2xf32> to vector<2x1xf32>
    %1214 = arith.cmpf oge, %1213, %1204 : vector<2x1xf32>
    %1215 = arith.extui %1214 : vector<2x1xi1> to vector<2x1xi32>
    %1216 = arith.sitofp %1215 : vector<2x1xi32> to vector<2x1xf32>
    %1217 = vector.broadcast %1216 : vector<2x1xf32> to vector<2x256xf32>
    %1218 = arith.mulf %1217, %1211 : vector<2x256xf32>
    %cst_235 = arith.constant 1.000000e+00 : f32
    %1219 = vector.broadcast %cst_235 : f32 to vector<2x1xf32>
    %1220 = arith.subf %1219, %1216 : vector<2x1xf32>
    %1221 = arith.subf %1195, %1211 : vector<2x256xf32>
    %1222 = vector.broadcast %1220 : vector<2x1xf32> to vector<2x256xf32>
    %1223 = arith.mulf %1222, %1221 : vector<2x256xf32>
    %1224 = arith.addf %1218, %1223 : vector<2x256xf32>
    %cst_236 = arith.constant 1.000000e+00 : f32
    %1225 = vector.broadcast %cst_236 : f32 to vector<2x1xf32>
    %1226 = arith.subf %1225, %1216 : vector<2x1xf32>
    %1227 = vector.broadcast %1226 : vector<2x1xf32> to vector<2x256xf32>
    %1228 = arith.mulf %1227, %1211 : vector<2x256xf32>
    %1229 = arith.addf %1200, %1228 : vector<2x256xf32>
    %1230 = arith.addf %1229, %1224 : vector<2x256xf32>
    %cst_237 = arith.constant 0.000000e+00 : f32
    %1231 = vector.broadcast %cst_237 : f32 to vector<2x1xf32>
    %1232 = arith.cmpf ogt, %60, %1231 : vector<2x1xf32>
    %1233 = arith.extui %1232 : vector<2x1xi1> to vector<2x1xi32>
    %1234 = arith.sitofp %1233 : vector<2x1xi32> to vector<2x1xf32>
    %1235 = vector.broadcast %1234 : vector<2x1xf32> to vector<2x256xf32>
    %1236 = arith.mulf %1230, %1235 : vector<2x256xf32>
    %1237 = arith.addf %30, %1236 : vector<2x256xf32>
    %1238 = arith.mulf %54, %1237 : vector<2x256xf32>
    %cst_238 = arith.constant dense<0.000000e+00> : vector<2xf32>
    %1239 = vector.multi_reduction <add>, %1238, %cst_238 [1] : vector<2x256xf32> to vector<2xf32>
    %1240 = vector.shape_cast %1239 : vector<2xf32> to vector<2x1xf32>
    %1241 = arith.addf %35, %1240 : vector<2x1xf32>
    %cst_239 = arith.constant 0.000000e+00 : f32
    %1242 = vector.broadcast %cst_239 : f32 to vector<2x1xf32>
    %1243 = arith.cmpf ogt, %32, %1242 : vector<2x1xf32>
    %1244 = arith.extui %1243 : vector<2x1xi1> to vector<2x1xi32>
    %1245 = arith.sitofp %1244 : vector<2x1xi32> to vector<2x1xf32>
    %cst_240 = arith.constant 9.99999997E-7 : f32
    %1246 = vector.broadcast %cst_240 : f32 to vector<2x1xf32>
    %1247 = arith.maximumf %32, %1246 : vector<2x1xf32>
    %1248 = arith.mulf %1241, %1245 : vector<2x1xf32>
    %1249 = arith.divf %1248, %1247 : vector<2x1xf32>
    %1250 = vector.shape_cast %1249 : vector<2x1xf32> to vector<2x1xf32>
    %1251 = vector.broadcast %1250 : vector<2x1xf32> to vector<2x128xf32>
    %c0_241 = arith.constant 0 : index
    %c0_242 = arith.constant 0 : index
    %1252 = vector.load %arg6[%c0_241, %c0_242] : memref<2x128xf32, #tpu.memory_space<vmem>>, vector<2x128xf32>
    tpu.vector_store %arg6[%c0_241, %c0_242], %1251 {strides = array<i32>} : memref<2x128xf32, #tpu.memory_space<vmem>>, vector<2x128xf32>,
    return
  }
  func.func @transform_0(%arg0: i32) -> (i32, i32, i32) {
    %c0_i32 = arith.constant 0 : i32
    %c0_i32_0 = arith.constant 0 : i32
    %c0_i32_1 = arith.constant 0 : i32
    %c0_i32_2 = arith.constant 0 : i32
    return %c0_i32, %c0_i32_0, %c0_i32_1 : i32, i32, i32
  }
  func.func @transform_1(%arg0: i32) -> (i32, i32, i32) {
    %c0_i32 = arith.constant 0 : i32
    %c0_i32_0 = arith.constant 0 : i32
    %c0_i32_1 = arith.constant 0 : i32
    return %arg0, %c0_i32, %c0_i32_0 : i32, i32, i32
  }
  func.func @transform_2(%arg0: i32) -> (i32, i32, i32) {
    %c0_i32 = arith.constant 0 : i32
    %c0_i32_0 = arith.constant 0 : i32
    %c0_i32_1 = arith.constant 0 : i32
    return %arg0, %c0_i32, %c0_i32_0 : i32, i32, i32
  }
  func.func @transform_3(%arg0: i32) -> (i32, i32, i32) {
    %c0_i32 = arith.constant 0 : i32
    %c0_i32_0 = arith.constant 0 : i32
    %c0_i32_1 = arith.constant 0 : i32
    return %arg0, %c0_i32, %c0_i32_0 : i32, i32, i32
  }
  func.func @transform_4(%arg0: i32) -> (i32, i32, i32) {
    %c0_i32 = arith.constant 0 : i32
    %c0_i32_0 = arith.constant 0 : i32
    %c0_i32_1 = arith.constant 0 : i32
    return %arg0, %c0_i32, %c0_i32_0 : i32, i32, i32
  }
  func.func @transform_5(%arg0: i32) -> (i32, i32) {
    %c0_i32 = arith.constant 0 : i32
    %c0_i32_0 = arith.constant 0 : i32
    return %arg0, %c0_i32 : i32, i32
  }
}

</mosaic_0001>

<llo_original>
// kernel: tpu_custom_call.1
$region0: #{tpu_custom_call.1}
  #allocation0 [shape = 'u32[]', space=smem, size = 0x4, offset = 0x4, fixed_abs, tag = 'smem constant byte address 0x4 - core index']
  #allocation1 [shape = 'u32[144,128]{1,0:T(1,128)}', space=vmem, size = 0x12000, scoped, tag = 'internal scratch']
  %s0 = inlined_call_operand.hbm [shape: f32[1,8,256], index: 0, kind: input, shape index: {}]
  %s1 = inlined_call_operand.hbm [shape: f32[2,4,256], index: 1, kind: input, shape index: {}]
  %s2 = inlined_call_operand.hbm [shape: f32[2,8,256], index: 2, kind: input, shape index: {}]
  %s3 = inlined_call_operand.hbm [shape: f32[2,4,256], index: 3, kind: input, shape index: {}]
  %s4 = inlined_call_operand.vmem [shape: s32[2,1,256], index: 4, kind: input, shape index: {}]
  %s5 = inlined_call_operand.hbm [shape: f32[2,128], index: 5, kind: output, shape index: {}]
  %s6 = sld [smem:[#allocation0]]
  $region46: #{tpu_custom_call.1} parent=0
    _
  %s8 = ssub.s32 1, %s6
  %s9 = scalar_select 0, %s8, %s6
  $region1: #{tpu_custom_call.1} parent=0
    #allocation2 [shape = 'u8[8192]{0}', space=vmem, size = 0x2000, scoped, tag = 'input window, operand 0, single buffered']
    #allocation3 [shape = 's32[1]{0}', space=sflag, size = 0x4, scoped, tag = 'scoped memory for tpu_custom_call.1']
    #allocation4 [shape = 's32[1]{0}', space=sflag, size = 0x4, scoped, tag = 'scoped memory for tpu_custom_call.1']
    #allocation5 [shape = 'u8[8192]{0}', space=vmem, size = 0x2000, scoped, tag = 'input window, operand 1, single buffered']
    #allocation6 [shape = 's32[1]{0}', space=sflag, size = 0x4, scoped, tag = 'scoped memory for tpu_custom_call.1']
    #allocation7 [shape = 'u8[16384]{0}', space=vmem, size = 0x4000, scoped, tag = 'input window, operand 2, single buffered']
    #allocation8 [shape = 'u8[8192]{0}', space=vmem, size = 0x2000, scoped, tag = 'input window, operand 3, single buffered']
    #allocation9 [shape = 's32[1]{0}', space=sflag, size = 0x4, scoped, tag = 'scoped memory for tpu_custom_call.1']
    #allocation10 [shape = 'u8[1024]{0}', space=vmem, size = 0x400, scoped, tag = 'output window, operand 0, single buffered']
    %10 = vsyncpa [#allocation3], 0
    %11 = vsyncpa [#allocation6], 0
    %12 = vsyncpa [#allocation9], 0
    %13 = vsyncpa [#allocation4], 0
    // Predicated region
    $region2: #{tpu_custom_call.1} parent=1 // pred_check
      _
    $region3: #{tpu_custom_call.1} parent=1 // pred_check_branch
      %15 = sbr.rel (0) target = $region5
    $region4: #{tpu_custom_call.1} parent=1 // pred_region
      %s17 = ssub.s32 256, 256
      %18 = vsyncadd [#allocation3], %s17
      %s20 = sshll.u32 [#allocation2], 4
      %s21 = int_to_ptr.vmem [resolvable:$true] %s20
      %23 = dma.hbm_to_vmem [thread:$0]  %s0, 256, %s21, [#allocation3]
    $region5: #{tpu_custom_call.1} parent=1 // pred_fallthru
      _
    // Predicated region
    $region6: #{tpu_custom_call.1} parent=1 // pred_check
      _
    $region7: #{tpu_custom_call.1} parent=1 // pred_check_branch
      %25 = sbr.rel (0) target = $region9
    $region8: #{tpu_custom_call.1} parent=1 // pred_region
      %s27 = ssub.s32 256, 256
      %28 = vsyncadd [#allocation6], %s27
      %s29 = sshll.u32 [#allocation5], 4
      %s30 = int_to_ptr.vmem [resolvable:$true] %s29
      %35 = dma.hbm_to_vmem [thread:$0]  %s1, 256, %s30, [#allocation6], 128, 128, 8
    $region9: #{tpu_custom_call.1} parent=1 // pred_fallthru
      _
    // Predicated region
    $region10: #{tpu_custom_call.1} parent=1 // pred_check
      _
    $region11: #{tpu_custom_call.1} parent=1 // pred_check_branch
      %37 = sbr.rel (0) target = $region13
    $region12: #{tpu_custom_call.1} parent=1 // pred_region
      %s39 = ssub.s32 512, 512
      %40 = vsyncadd [#allocation6], %s39
      %s41 = sshll.u32 [#allocation7], 4
      %s42 = int_to_ptr.vmem [resolvable:$true] %s41
      %47 = dma.hbm_to_vmem [thread:$0]  %s2, 512, %s42, [#allocation6], 256, 256, 16
    $region13: #{tpu_custom_call.1} parent=1 // pred_fallthru
      _
    // Predicated region
    $region14: #{tpu_custom_call.1} parent=1 // pred_check
      _
    $region15: #{tpu_custom_call.1} parent=1 // pred_check_branch
      %49 = sbr.rel (0) target = $region17
    $region16: #{tpu_custom_call.1} parent=1 // pred_region
      %s51 = ssub.s32 256, 256
      %52 = vsyncadd [#allocation9], %s51
      %s53 = sshll.u32 [#allocation8], 4
      %s54 = int_to_ptr.vmem [resolvable:$true] %s53
      %59 = dma.hbm_to_vmem [thread:$0]  %s3, 256, %s54, [#allocation9], 128, 128, 8
    $region17: #{tpu_custom_call.1} parent=1 // pred_fallthru
      _
    // Predicated region
    $region18: #{tpu_custom_call.1} parent=1 // pred_check
      _
    $region19: #{tpu_custom_call.1} parent=1 // pred_check_branch
      %61 = sbr.rel (0) target = $region21
    $region20: #{tpu_custom_call.1} parent=1 // pred_region
      _
    $region21: #{tpu_custom_call.1} parent=1 // pred_fallthru
      _
    // Predicated region
    $region22: #{tpu_custom_call.1} parent=1 // pred_check
      _
    $region23: #{tpu_custom_call.1} parent=1 // pred_check_branch
      %63 = sbr.rel (0) target = $region25
    $region24: #{tpu_custom_call.1} parent=1 // pred_region
      %64 = dma.done [#allocation3], 256
    $region25: #{tpu_custom_call.1} parent=1 // pred_fallthru
      _
    // Predicated region
    $region26: #{tpu_custom_call.1} parent=1 // pred_check
      _
    $region27: #{tpu_custom_call.1} parent=1 // pred_check_branch
      %66 = sbr.rel (0) target = $region29
    $region28: #{tpu_custom_call.1} parent=1 // pred_region
      %67 = dma.done [#allocation6], 256
    $region29: #{tpu_custom_call.1} parent=1 // pred_fallthru
      _
    // Predicated region
    $region30: #{tpu_custom_call.1} parent=1 // pred_check
      _
    $region31: #{tpu_custom_call.1} parent=1 // pred_check_branch
      %69 = sbr.rel (0) target = $region33
    $region32: #{tpu_custom_call.1} parent=1 // pred_region
      %70 = dma.done [#allocation6], 512
    $region33: #{tpu_custom_call.1} parent=1 // pred_fallthru
      _
    // Predicated region
    $region34: #{tpu_custom_call.1} parent=1 // pred_check
      _
    $region35: #{tpu_custom_call.1} parent=1 // pred_check_branch
      %72 = sbr.rel (0) target = $region37
    $region36: #{tpu_custom_call.1} parent=1 // pred_region
      %73 = dma.done [#allocation9], 256
    $region37: #{tpu_custom_call.1} parent=1 // pred_fallthru
      _
    %v74 = vld [vmem:[#allocation2] sm:$0xff]
    %v75 = vld [vmem:[#allocation2 + $0x8] sm:$0xff]
    %v76 = vld [vmem:[#allocation8] sm:$0xff]
    %v77 = vld [vmem:[#allocation8 + $0x8] sm:$0xff]
    %v78 = vld [vmem:[#allocation5] sm:$0xff]
    %v79 = vld [vmem:[#allocation5 + $0x8] sm:$0xff]
    %v80 = vlaneseq
    %v81 = vshrl.u32 %v80, 7
    %vm82 = vcmp.ge.s32.totalorder %v81, 2
    %v83 = vlog2.pop %v76
    %v84 = vmul.f32 %v83, 0.6931472
    %v85 = vlog2.pop %v77
    %v86 = vmul.f32 %v85, 0.6931472
    %v89 = vcombine.high %v84, %v84
    %v90 = vcombine.high %v86, %v86
    %v95 = vcombine.high %v76, %v76
    %v96 = vcombine.high %v77, %v77
    %v99 = vsel %vm82, %v84, %v76
    %v100 = vsel %vm82, %v89, %v95
    %v101 = vsel %vm82, %v86, %v77
    %v102 = vsel %vm82, %v90, %v96
    %v103 = vsub.f32 %v99, %v74
    %v104 = vsub.f32 %v100, %v75
    %v105 = vsub.f32 %v101, %v74
    %v106 = vsub.f32 %v102, %v75
    %v109 = vrot.slane %v74, 4
    %v110 = vrot.slane %v75, 4
    %v113 = vmul.f32 %v103, %v109
    %v114 = vmul.f32 %v104, %v110
    %v115 = vmul.f32 %v105, %v109
    %v116 = vmul.f32 %v106, %v110
    %v121 = vcombine.low %v113, %v114
    %v122 = vcombine.low %v115, %v116
    %v125 = vsub.f32 %v78, %v121
    %v126 = vsub.f32 %v79, %v122
    %v127 = vand.u32 2147483647, %v125
    %v128 = vand.u32 2147483647, %v126
    %vm129 = vcmp.lt.f32.partialorder %v127, 1.0
    %vm130 = vcmp.lt.f32.partialorder %v128, 1.0
    %v131 = vmul.f32 %v125, 0.5
    %v132 = vmul.f32 %v126, 0.5
    %v133 = vmul.f32 %v131, %v125
    %v134 = vmul.f32 %v132, %v126
    %v135 = vsub.f32 %v127, 0.5
    %v136 = vsub.f32 %v128, 0.5
    %v137 = vsel %vm129, %v133, %v135
    %v138 = vsel %vm130, %v134, %v136
    %v141 = vcombine.high %v137, %v137
    %v142 = vcombine.high %v138, %v138
    %vm145 = vcmask 1043456
    %v146 = vsel %vm145, %v137, 0.0
    %v147 = vrot.slane %v146, 4
    %v148 = vadd.f32 %v146, %v147
    %v149 = vrot.slane %v148, 2
    %v150 = vadd.f32 %v148, %v149
    %v151 = vrot.slane %v150, 1
    %v152 = vadd.f32 %v150, %v151
    %v153 = vsel %vm145, %v141, 0.0
    %v154 = vrot.slane %v153, 4
    %v155 = vadd.f32 %v153, %v154
    %v156 = vrot.slane %v155, 2
    %v157 = vadd.f32 %v155, %v156
    %v158 = vrot.slane %v157, 1
    %v159 = vadd.f32 %v157, %v158
    %v160 = vsel %vm145, %v138, 0.0
    %v161 = vrot.slane %v160, 4
    %v162 = vadd.f32 %v160, %v161
    %v163 = vrot.slane %v162, 2
    %v164 = vadd.f32 %v162, %v163
    %v165 = vrot.slane %v164, 1
    %v166 = vadd.f32 %v164, %v165
    %v167 = vsel %vm145, %v142, 0.0
    %v168 = vrot.slane %v167, 4
    %v169 = vadd.f32 %v167, %v168
    %v170 = vrot.slane %v169, 2
    %v171 = vadd.f32 %v169, %v170
    %v172 = vrot.slane %v171, 1
    %v173 = vadd.f32 %v171, %v172
    %v174 = vld [vmem:[%s4] sm:$0x3]
    %v175 = vld [vmem:[%s4 + $0x2] sm:$0x3]
    %vm176 = vcmp.gt.s32.totalorder %v174, 0
    %vm177 = vcmp.gt.s32.totalorder %v175, 0
    %v178 = vsel %vm176, 1, 0
    %v179 = vsel %vm177, 1, 0
    %v180 = vcvt.s32.f32 %v178
    %v181 = vcvt.s32.f32 %v179
    %v184 = vcombine.low %v180, %v181
    %v186 = vunpack.c.l.s4 1966171168
    %v187 = vunpack.c.0.s8 %v186
    %v188 = vlaneseq
    %v189 = vshrl.u32 %v188, 7
    %v190 = vsub.s32 %v187, %v189
    %v191 = vrot.slane %v184, %v190
    %v192 = vcombine.high %v191, %v191
    %v194 = vunpack.c.l.s4 1966171168
    %v195 = vunpack.c.0.s8 %v194
    %v196 = vlaneseq
    %v197 = vshrl.u32 %v196, 7
    %v198 = vsub.s32 %v195, %v197
    %v199 = vrot.slane %v191, %v198
    %v201 = vunpack.c.l.s4 1966171168
    %v202 = vunpack.c.0.s8 %v201
    %v203 = vlaneseq
    %v204 = vshrl.u32 %v203, 7
    %v205 = vsub.s32 %v202, %v204
    %v206 = vrot.slane %v192, %v205
    %vm209 = vcmask 1041408
    %v210 = vsel %vm209, %v199, 0.0
    %v211 = vsel %vm209, %v206, 0.0
    %v212 = vadd.f32 %v210, %v211
    %213 = vadd.xlane.f32.xlu0 %v212
    %v214 = vpop.xlane.xlu0 %213
    %v219 = vcombine.low %v152, %v159
    %v221 = vunpack.c.l.s4 1966171168
    %v222 = vunpack.c.0.s8 %v221
    %v223 = vlaneseq
    %v224 = vshrl.u32 %v223, 7
    %v225 = vsub.s32 %v222, %v224
    %v226 = vrot.slane %v219, %v225
    %v228 = vunpack.c.l.s4 1966171168
    %v229 = vunpack.c.0.s8 %v228
    %v230 = vlaneseq
    %v231 = vshrl.u32 %v230, 7
    %v232 = vsub.s32 %v229, %v231
    %v233 = vrot.slane %v226, %v232
    %v234 = vcombine.low %v166, %v173
    %v236 = vunpack.c.l.s4 1966171168
    %v237 = vunpack.c.0.s8 %v236
    %v238 = vlaneseq
    %v239 = vshrl.u32 %v238, 7
    %v240 = vsub.s32 %v237, %v239
    %v241 = vrot.slane %v234, %v240
    %v243 = vunpack.c.l.s4 1966171168
    %v244 = vunpack.c.0.s8 %v243
    %v245 = vlaneseq
    %v246 = vshrl.u32 %v245, 7
    %v247 = vsub.s32 %v244, %v246
    %v248 = vrot.slane %v241, %v247
    %v251 = vmul.f32 %v180, %v233
    %v252 = vmul.f32 %v181, %v248
    %v255 = vcombine.low %v251, %v252
    %v257 = vunpack.c.l.s4 1966171168
    %v258 = vunpack.c.0.s8 %v257
    %v259 = vlaneseq
    %v260 = vshrl.u32 %v259, 7
    %v261 = vsub.s32 %v258, %v260
    %v262 = vrot.slane %v255, %v261
    %v263 = vcombine.high %v262, %v262
    %v265 = vunpack.c.l.s4 1966171168
    %v266 = vunpack.c.0.s8 %v265
    %v267 = vlaneseq
    %v268 = vshrl.u32 %v267, 7
    %v269 = vsub.s32 %v266, %v268
    %v270 = vrot.slane %v262, %v269
    %v272 = vunpack.c.l.s4 1966171168
    %v273 = vunpack.c.0.s8 %v272
    %v274 = vlaneseq
    %v275 = vshrl.u32 %v274, 7
    %v276 = vsub.s32 %v273, %v275
    %v277 = vrot.slane %v263, %v276
    %v280 = vsel %vm209, %v270, 0.0
    %v281 = vsel %vm209, %v277, 0.0
    %v282 = vadd.f32 %v280, %v281
    %283 = vadd.xlane.f32.xlu0 %v282
    %v284 = vpop.xlane.xlu0 %283
    %v285 = vld [vmem:[#allocation7] sm:$0xff]
    %v286 = vld [vmem:[#allocation7 + $0x8] sm:$0xff]
    %v287 = vld [vmem:[#allocation7 + $0x10] sm:$0xff]
    %v288 = vld [vmem:[#allocation7 + $0x18] sm:$0xff]
    %v289 = vrot.slane %v285, 4
    %v290 = vmax.f32 %v285, %v289
    %v291 = vrot.slane %v290, 2
    %v292 = vmax.f32 %v290, %v291
    %v293 = vrot.slane %v292, 1
    %v294 = vmax.f32 %v292, %v293
    %v295 = vrot.slane %v286, 4
    %v296 = vmax.f32 %v286, %v295
    %v297 = vrot.slane %v296, 2
    %v298 = vmax.f32 %v296, %v297
    %v299 = vrot.slane %v298, 1
    %v300 = vmax.f32 %v298, %v299
    %v301 = vrot.slane %v287, 4
    %v302 = vmax.f32 %v287, %v301
    %v303 = vrot.slane %v302, 2
    %v304 = vmax.f32 %v302, %v303
    %v305 = vrot.slane %v304, 1
    %v306 = vmax.f32 %v304, %v305
    %v307 = vrot.slane %v288, 4
    %v308 = vmax.f32 %v288, %v307
    %v309 = vrot.slane %v308, 2
    %v310 = vmax.f32 %v308, %v309
    %v311 = vrot.slane %v310, 1
    %v312 = vmax.f32 %v310, %v311
    %v313 = vsub.f32 %v285, %v294
    %v314 = vsub.f32 %v286, %v300
    %v315 = vsub.f32 %v287, %v306
    %v316 = vsub.f32 %v288, %v312
    %v317 = vmul.f32 %v313, 1.442695
    %v318 = vpow.pop %v317
    %v319 = vmul.f32 %v314, 1.442695
    %v320 = vpow.pop %v319
    %v321 = vmul.f32 %v315, 1.442695
    %v322 = vpow.pop %v321
    %v323 = vmul.f32 %v316, 1.442695
    %v324 = vpow.pop %v323
    %v325 = vrot.slane %v318, 4
    %v326 = vadd.f32 %v318, %v325
    %v327 = vrot.slane %v326, 2
    %v328 = vadd.f32 %v326, %v327
    %v329 = vrot.slane %v328, 1
    %v330 = vadd.f32 %v328, %v329
    %v331 = vrot.slane %v320, 4
    %v332 = vadd.f32 %v320, %v331
    %v333 = vrot.slane %v332, 2
    %v334 = vadd.f32 %v332, %v333
    %v335 = vrot.slane %v334, 1
    %v336 = vadd.f32 %v334, %v335
    %v337 = vrot.slane %v322, 4
    %v338 = vadd.f32 %v322, %v337
    %v339 = vrot.slane %v338, 2
    %v340 = vadd.f32 %v338, %v339
    %v341 = vrot.slane %v340, 1
    %v342 = vadd.f32 %v340, %v341
    %v343 = vrot.slane %v324, 4
    %v344 = vadd.f32 %v324, %v343
    %v345 = vrot.slane %v344, 2
    %v346 = vadd.f32 %v344, %v345
    %v347 = vrot.slane %v346, 1
    %v348 = vadd.f32 %v346, %v347
    %v349 = vlog2.pop %v330
    %v350 = vmul.f32 %v349, 0.6931472
    %v351 = vlog2.pop %v336
    %v352 = vmul.f32 %v351, 0.6931472
    %v353 = vlog2.pop %v342
    %v354 = vmul.f32 %v353, 0.6931472
    %v355 = vlog2.pop %v348
    %v356 = vmul.f32 %v355, 0.6931472
    %v357 = vlaneseq
    %v358 = vshrl.u32 %v357, 7
    %v359 = vsub.s32 0, %v358
    %v360 = vrot.slane %v174, %v359
    %v361 = vlaneseq
    %v362 = vshrl.u32 %v361, 7
    %v363 = vsub.s32 1, %v362
    %v364 = vrot.slane %v174, %v363
    %v365 = vlaneseq
    %v366 = vshrl.u32 %v365, 7
    %v367 = vsub.s32 0, %v366
    %v368 = vrot.slane %v175, %v367
    %v369 = vlaneseq
    %v370 = vshrl.u32 %v369, 7
    %v371 = vsub.s32 1, %v370
    %v372 = vrot.slane %v175, %v371
    %vm373 = vcmp.eq.s32.totalorder %v81, %v360
    %vm374 = vcmp.eq.s32.totalorder %v81, %v364
    %vm375 = vcmp.eq.s32.totalorder %v81, %v368
    %vm376 = vcmp.eq.s32.totalorder %v81, %v372
    %v377 = vsel %vm373, 1, 0
    %v378 = vsel %vm374, 1, 0
    %v379 = vsel %vm375, 1, 0
    %v380 = vsel %vm376, 1, 0
    %v381 = vcvt.s32.f32 %v377
    %v382 = vcvt.s32.f32 %v378
    %v383 = vcvt.s32.f32 %v379
    %v384 = vcvt.s32.f32 %v380
    %v385 = vmul.f32 %v381, %v313
    %v386 = vmul.f32 %v382, %v314
    %v387 = vmul.f32 %v383, %v315
    %v388 = vmul.f32 %v384, %v316
    %v389 = vrot.slane %v385, 4
    %v390 = vadd.f32 %v385, %v389
    %v391 = vrot.slane %v390, 2
    %v392 = vadd.f32 %v390, %v391
    %v393 = vrot.slane %v392, 1
    %v394 = vadd.f32 %v392, %v393
    %v395 = vrot.slane %v386, 4
    %v396 = vadd.f32 %v386, %v395
    %v397 = vrot.slane %v396, 2
    %v398 = vadd.f32 %v396, %v397
    %v399 = vrot.slane %v398, 1
    %v400 = vadd.f32 %v398, %v399
    %v401 = vrot.slane %v387, 4
    %v402 = vadd.f32 %v387, %v401
    %v403 = vrot.slane %v402, 2
    %v404 = vadd.f32 %v402, %v403
    %v405 = vrot.slane %v404, 1
    %v406 = vadd.f32 %v404, %v405
    %v407 = vrot.slane %v388, 4
    %v408 = vadd.f32 %v388, %v407
    %v409 = vrot.slane %v408, 2
    %v410 = vadd.f32 %v408, %v409
    %v411 = vrot.slane %v410, 1
    %v412 = vadd.f32 %v410, %v411
    %v413 = vsub.f32 %v350, %v394
    %v414 = vsub.f32 %v352, %v400
    %v415 = vsub.f32 %v354, %v406
    %v416 = vsub.f32 %v356, %v412
    %v421 = vcombine.low %v413, %v414
    %v423 = vunpack.c.l.s4 1966171168
    %v424 = vunpack.c.0.s8 %v423
    %v425 = vlaneseq
    %v426 = vshrl.u32 %v425, 7
    %v427 = vsub.s32 %v424, %v426
    %v428 = vrot.slane %v421, %v427
    %v430 = vunpack.c.l.s4 1966171168
    %v431 = vunpack.c.0.s8 %v430
    %v432 = vlaneseq
    %v433 = vshrl.u32 %v432, 7
    %v434 = vsub.s32 %v431, %v433
    %v435 = vrot.slane %v428, %v434
    %v436 = vcombine.low %v415, %v416
    %v438 = vunpack.c.l.s4 1966171168
    %v439 = vunpack.c.0.s8 %v438
    %v440 = vlaneseq
    %v441 = vshrl.u32 %v440, 7
    %v442 = vsub.s32 %v439, %v441
    %v443 = vrot.slane %v436, %v442
    %v445 = vunpack.c.l.s4 1966171168
    %v446 = vunpack.c.0.s8 %v445
    %v447 = vlaneseq
    %v448 = vshrl.u32 %v447, 7
    %v449 = vsub.s32 %v446, %v448
    %v450 = vrot.slane %v443, %v449
    %v453 = vsel %vm176, 0.0, %v435
    %v454 = vsel %vm177, 0.0, %v450
    %v455 = vmul.f32 %v214, 3.0
    %v456 = vmin.f32 %v455, 256.0
    %v459 = vlaneseq
    %v460 = vshrl.u32 %v459, 7
    %v461 = vsub.s32 0, %v460
    %v462 = vrot.slane %v453, %v461
    %v463 = vlaneseq
    %v464 = vshrl.u32 %v463, 7
    %v465 = vsub.s32 1, %v464
    %v466 = vrot.slane %v453, %v465
    %v467 = vlaneseq
    %v468 = vshrl.u32 %v467, 7
    %v469 = vsub.s32 0, %v468
    %v470 = vrot.slane %v454, %v469
    %v471 = vlaneseq
    %v472 = vshrl.u32 %v471, 7
    %v473 = vsub.s32 1, %v472
    %v474 = vrot.slane %v454, %v473
    %vm475 = vcmp.lt.s32.totalorder %v462, 0
    %vm476 = vcmp.lt.s32.totalorder %v466, 0
    %vm477 = vcmp.lt.s32.totalorder %v470, 0
    %vm478 = vcmp.lt.s32.totalorder %v474, 0
    %v479 = vxor.u32 %v462, 4294967295
    %v480 = vxor.u32 %v466, 4294967295
    %v481 = vxor.u32 %v470, 4294967295
    %v482 = vxor.u32 %v474, 4294967295
    %v483 = vxor.u32 %v462, 2147483648
    %v484 = vxor.u32 %v466, 2147483648
    %v485 = vxor.u32 %v470, 2147483648
    %v486 = vxor.u32 %v474, 2147483648
    %v487 = vsel %vm475, %v479, %v483
    %v488 = vsel %vm476, %v480, %v484
    %v489 = vsel %vm477, %v481, %v485
    %v490 = vsel %vm478, %v482, %v486
    %v491 = vand.u32 %v487, 2147483648
    %v492 = vand.u32 %v488, 2147483648
    %v493 = vand.u32 %v489, 2147483648
    %v494 = vand.u32 %v490, 2147483648
    %vm495 = vcmp.ne.s32.totalorder %v491, 0
    %vm496 = vcmp.ne.s32.totalorder %v492, 0
    %vm497 = vcmp.ne.s32.totalorder %v493, 0
    %vm498 = vcmp.ne.s32.totalorder %v494, 0
    %v499 = vsel %vm495, 1, 0
    %v500 = vsel %vm496, 1, 0
    %v501 = vsel %vm497, 1, 0
    %v502 = vsel %vm498, 1, 0
    %v503 = vcvt.s32.f32 %v499
    %v504 = vcvt.s32.f32 %v500
    %v505 = vcvt.s32.f32 %v501
    %v506 = vcvt.s32.f32 %v502
    %v511 = vrot.slane %v505, 7
    %vm512 = vcmask 1041409
    %v513 = vsel %vm512, %v511, %v503
    %v514 = vrot.slane %v506, 7
    %v515 = vsel %vm512, %v514, %v504
    %v518 = vsel %vm209, %v513, 0.0
    %v519 = vsel %vm209, %v515, 0.0
    %v520 = vadd.f32 %v518, %v519
    %521 = vadd.xlane.f32.xlu0 %v520
    %v522 = vpop.xlane.xlu0 %521
    %vm523 = vcmp.ge.f32.partialorder %v522, %v456
    %v524 = vsel %vm523, 1, 0
    %v525 = vcvt.s32.f32 %v524
    %v526 = vmul.f32 %v525, %v513
    %v527 = vmul.f32 %v525, %v515
    %v528 = vsub.f32 1.0, %v525
    %v529 = vsub.f32 1.0, %v503
    %v530 = vsub.f32 1.0, %v504
    %v531 = vsub.f32 1.0, %v505
    %v532 = vsub.f32 1.0, %v506
    %v537 = vrot.slane %v531, 7
    %v538 = vsel %vm512, %v537, %v529
    %v539 = vrot.slane %v532, 7
    %v540 = vsel %vm512, %v539, %v530
    %v543 = vmul.f32 %v528, %v538
    %v544 = vmul.f32 %v528, %v540
    %v545 = vadd.f32 %v526, %v543
    %v546 = vadd.f32 %v527, %v544
    %v547 = vmul.f32 %v528, %v513
    %v548 = vmul.f32 %v528, %v515
    %v549 = vadd.f32 %v547, 0.0
    %v550 = vadd.f32 %v548, 0.0
    %v551 = vmul.f32 %v528, %v522
    %v552 = vsub.f32 %v456, %v551
    %v553 = vand.u32 %v487, 1073741824
    %v554 = vand.u32 %v488, 1073741824
    %v555 = vand.u32 %v489, 1073741824
    %v556 = vand.u32 %v490, 1073741824
    %vm557 = vcmp.ne.s32.totalorder %v553, 0
    %vm558 = vcmp.ne.s32.totalorder %v554, 0
    %vm559 = vcmp.ne.s32.totalorder %v555, 0
    %vm560 = vcmp.ne.s32.totalorder %v556, 0
    %v561 = vsel %vm557, 1, 0
    %v562 = vsel %vm558, 1, 0
    %v563 = vsel %vm559, 1, 0
    %v564 = vsel %vm560, 1, 0
    %v565 = vcvt.s32.f32 %v561
    %v566 = vcvt.s32.f32 %v562
    %v567 = vcvt.s32.f32 %v563
    %v568 = vcvt.s32.f32 %v564
    %v573 = vrot.slane %v567, 7
    %v574 = vsel %vm512, %v573, %v565
    %v575 = vrot.slane %v568, 7
    %v576 = vsel %vm512, %v575, %v566
    %v579 = vmul.f32 %v545, %v574
    %v580 = vmul.f32 %v546, %v576
    %v581 = vsel %vm209, %v579, 0.0
    %v582 = vsel %vm209, %v580, 0.0
    %v583 = vadd.f32 %v581, %v582
    %584 = vadd.xlane.f32.xlu0 %v583
    %v585 = vpop.xlane.xlu0 %584
    %vm586 = vcmp.ge.f32.partialorder %v585, %v552
    %v587 = vsel %vm586, 1, 0
    %v588 = vcvt.s32.f32 %v587
    %v589 = vmul.f32 %v588, %v579
    %v590 = vmul.f32 %v588, %v580
    %v591 = vsub.f32 1.0, %v588
    %v592 = vsub.f32 %v545, %v579
    %v593 = vsub.f32 %v546, %v580
    %v594 = vmul.f32 %v591, %v592
    %v595 = vmul.f32 %v591, %v593
    %v596 = vadd.f32 %v589, %v594
    %v597 = vadd.f32 %v590, %v595
    %v598 = vmul.f32 %v591, %v579
    %v599 = vmul.f32 %v591, %v580
    %v600 = vadd.f32 %v549, %v598
    %v601 = vadd.f32 %v550, %v599
    %v602 = vmul.f32 %v591, %v585
    %v603 = vsub.f32 %v552, %v602
    %v604 = vand.u32 %v487, 536870912
    %v605 = vand.u32 %v488, 536870912
    %v606 = vand.u32 %v489, 536870912
    %v607 = vand.u32 %v490, 536870912
    %vm608 = vcmp.ne.s32.totalorder %v604, 0
    %vm609 = vcmp.ne.s32.totalorder %v605, 0
    %vm610 = vcmp.ne.s32.totalorder %v606, 0
    %vm611 = vcmp.ne.s32.totalorder %v607, 0
    %v612 = vsel %vm608, 1, 0
    %v613 = vsel %vm609, 1, 0
    %v614 = vsel %vm610, 1, 0
    %v615 = vsel %vm611, 1, 0
    %v616 = vcvt.s32.f32 %v612
    %v617 = vcvt.s32.f32 %v613
    %v618 = vcvt.s32.f32 %v614
    %v619 = vcvt.s32.f32 %v615
    %v624 = vrot.slane %v618, 7
    %v625 = vsel %vm512, %v624, %v616
    %v626 = vrot.slane %v619, 7
    %v627 = vsel %vm512, %v626, %v617
    %v630 = vmul.f32 %v596, %v625
    %v631 = vmul.f32 %v597, %v627
    %v632 = vsel %vm209, %v630, 0.0
    %v633 = vsel %vm209, %v631, 0.0
    %v634 = vadd.f32 %v632, %v633
    %635 = vadd.xlane.f32.xlu0 %v634
    %v636 = vpop.xlane.xlu0 %635
    %vm637 = vcmp.ge.f32.partialorder %v636, %v603
    %v638 = vsel %vm637, 1, 0
    %v639 = vcvt.s32.f32 %v638
    %v640 = vmul.f32 %v639, %v630
    %v641 = vmul.f32 %v639, %v631
    %v642 = vsub.f32 1.0, %v639
    %v643 = vsub.f32 %v596, %v630
    %v644 = vsub.f32 %v597, %v631
    %v645 = vmul.f32 %v642, %v643
    %v646 = vmul.f32 %v642, %v644
    %v647 = vadd.f32 %v640, %v645
    %v648 = vadd.f32 %v641, %v646
    %v649 = vmul.f32 %v642, %v630
    %v650 = vmul.f32 %v642, %v631
    %v651 = vadd.f32 %v600, %v649
    %v652 = vadd.f32 %v601, %v650
    %v653 = vmul.f32 %v642, %v636
    %v654 = vsub.f32 %v603, %v653
    %v655 = vand.u32 %v487, 268435456
    %v656 = vand.u32 %v488, 268435456
    %v657 = vand.u32 %v489, 268435456
    %v658 = vand.u32 %v490, 268435456
    %vm659 = vcmp.ne.s32.totalorder %v655, 0
    %vm660 = vcmp.ne.s32.totalorder %v656, 0
    %vm661 = vcmp.ne.s32.totalorder %v657, 0
    %vm662 = vcmp.ne.s32.totalorder %v658, 0
    %v663 = vsel %vm659, 1, 0
    %v664 = vsel %vm660, 1, 0
    %v665 = vsel %vm661, 1, 0
    %v666 = vsel %vm662, 1, 0
    %v667 = vcvt.s32.f32 %v663
    %v668 = vcvt.s32.f32 %v664
    %v669 = vcvt.s32.f32 %v665
    %v670 = vcvt.s32.f32 %v666
    %v675 = vrot.slane %v669, 7
    %v676 = vsel %vm512, %v675, %v667
    %v677 = vrot.slane %v670, 7
    %v678 = vsel %vm512, %v677, %v668
    %v681 = vmul.f32 %v647, %v676
    %v682 = vmul.f32 %v648, %v678
    %v683 = vsel %vm209, %v681, 0.0
    %v684 = vsel %vm209, %v682, 0.0
    %v685 = vadd.f32 %v683, %v684
    %686 = vadd.xlane.f32.xlu0 %v685
    %v687 = vpop.xlane.xlu0 %686
    %vm688 = vcmp.ge.f32.partialorder %v687, %v654
    %v689 = vsel %vm688, 1, 0
    %v690 = vcvt.s32.f32 %v689
    %v691 = vmul.f32 %v690, %v681
    %v692 = vmul.f32 %v690, %v682
    %v693 = vsub.f32 1.0, %v690
    %v694 = vsub.f32 %v647, %v681
    %v695 = vsub.f32 %v648, %v682
    %v696 = vmul.f32 %v693, %v694
    %v697 = vmul.f32 %v693, %v695
    %v698 = vadd.f32 %v691, %v696
    %v699 = vadd.f32 %v692, %v697
    %v700 = vmul.f32 %v693, %v681
    %v701 = vmul.f32 %v693, %v682
    %v702 = vadd.f32 %v651, %v700
    %v703 = vadd.f32 %v652, %v701
    %v704 = vmul.f32 %v693, %v687
    %v705 = vsub.f32 %v654, %v704
    %v706 = vand.u32 %v487, 134217728
    %v707 = vand.u32 %v488, 134217728
    %v708 = vand.u32 %v489, 134217728
    %v709 = vand.u32 %v490, 134217728
    %vm710 = vcmp.ne.s32.totalorder %v706, 0
    %vm711 = vcmp.ne.s32.totalorder %v707, 0
    %vm712 = vcmp.ne.s32.totalorder %v708, 0
    %vm713 = vcmp.ne.s32.totalorder %v709, 0
    %v714 = vsel %vm710, 1, 0
    %v715 = vsel %vm711, 1, 0
    %v716 = vsel %vm712, 1, 0
    %v717 = vsel %vm713, 1, 0
    %v718 = vcvt.s32.f32 %v714
    %v719 = vcvt.s32.f32 %v715
    %v720 = vcvt.s32.f32 %v716
    %v721 = vcvt.s32.f32 %v717
    %v726 = vrot.slane %v720, 7
    %v727 = vsel %vm512, %v726, %v718
    %v728 = vrot.slane %v721, 7
    %v729 = vsel %vm512, %v728, %v719
    %v732 = vmul.f32 %v698, %v727
    %v733 = vmul.f32 %v699, %v729
    %v734 = vsel %vm209, %v732, 0.0
    %v735 = vsel %vm209, %v733, 0.0
    %v736 = vadd.f32 %v734, %v735
    %737 = vadd.xlane.f32.xlu0 %v736
    %v738 = vpop.xlane.xlu0 %737
    %vm739 = vcmp.ge.f32.partialorder %v738, %v705
    %v740 = vsel %vm739, 1, 0
    %v741 = vcvt.s32.f32 %v740
    %v742 = vmul.f32 %v741, %v732
    %v743 = vmul.f32 %v741, %v733
    %v744 = vsub.f32 1.0, %v741
    %v745 = vsub.f32 %v698, %v732
    %v746 = vsub.f32 %v699, %v733
    %v747 = vmul.f32 %v744, %v745
    %v748 = vmul.f32 %v744, %v746
    %v749 = vadd.f32 %v742, %v747
    %v750 = vadd.f32 %v743, %v748
    %v751 = vmul.f32 %v744, %v732
    %v752 = vmul.f32 %v744, %v733
    %v753 = vadd.f32 %v702, %v751
    %v754 = vadd.f32 %v703, %v752
    %v755 = vmul.f32 %v744, %v738
    %v756 = vsub.f32 %v705, %v755
    %v757 = vand.u32 %v487, 67108864
    %v758 = vand.u32 %v488, 67108864
    %v759 = vand.u32 %v489, 67108864
    %v760 = vand.u32 %v490, 67108864
    %vm761 = vcmp.ne.s32.totalorder %v757, 0
    %vm762 = vcmp.ne.s32.totalorder %v758, 0
    %vm763 = vcmp.ne.s32.totalorder %v759, 0
    %vm764 = vcmp.ne.s32.totalorder %v760, 0
    %v765 = vsel %vm761, 1, 0
    %v766 = vsel %vm762, 1, 0
    %v767 = vsel %vm763, 1, 0
    %v768 = vsel %vm764, 1, 0
    %v769 = vcvt.s32.f32 %v765
    %v770 = vcvt.s32.f32 %v766
    %v771 = vcvt.s32.f32 %v767
    %v772 = vcvt.s32.f32 %v768
    %v777 = vrot.slane %v771, 7
    %v778 = vsel %vm512, %v777, %v769
    %v779 = vrot.slane %v772, 7
    %v780 = vsel %vm512, %v779, %v770
    %v783 = vmul.f32 %v749, %v778
    %v784 = vmul.f32 %v750, %v780
    %v785 = vsel %vm209, %v783, 0.0
    %v786 = vsel %vm209, %v784, 0.0
    %v787 = vadd.f32 %v785, %v786
    %788 = vadd.xlane.f32.xlu0 %v787
    %v789 = vpop.xlane.xlu0 %788
    %vm790 = vcmp.ge.f32.partialorder %v789, %v756
    %v791 = vsel %vm790, 1, 0
    %v792 = vcvt.s32.f32 %v791
    %v793 = vmul.f32 %v792, %v783
    %v794 = vmul.f32 %v792, %v784
    %v795 = vsub.f32 1.0, %v792
    %v796 = vsub.f32 %v749, %v783
    %v797 = vsub.f32 %v750, %v784
    %v798 = vmul.f32 %v795, %v796
    %v799 = vmul.f32 %v795, %v797
    %v800 = vadd.f32 %v793, %v798
    %v801 = vadd.f32 %v794, %v799
    %v802 = vmul.f32 %v795, %v783
    %v803 = vmul.f32 %v795, %v784
    %v804 = vadd.f32 %v753, %v802
    %v805 = vadd.f32 %v754, %v803
    %v806 = vmul.f32 %v795, %v789
    %v807 = vsub.f32 %v756, %v806
    %v808 = vand.u32 %v487, 33554432
    %v809 = vand.u32 %v488, 33554432
    %v810 = vand.u32 %v489, 33554432
    %v811 = vand.u32 %v490, 33554432
    %vm812 = vcmp.ne.s32.totalorder %v808, 0
    %vm813 = vcmp.ne.s32.totalorder %v809, 0
    %vm814 = vcmp.ne.s32.totalorder %v810, 0
    %vm815 = vcmp.ne.s32.totalorder %v811, 0
    %v816 = vsel %vm812, 1, 0
    %v817 = vsel %vm813, 1, 0
    %v818 = vsel %vm814, 1, 0
    %v819 = vsel %vm815, 1, 0
    %v820 = vcvt.s32.f32 %v816
    %v821 = vcvt.s32.f32 %v817
    %v822 = vcvt.s32.f32 %v818
    %v823 = vcvt.s32.f32 %v819
    %v828 = vrot.slane %v822, 7
    %v829 = vsel %vm512, %v828, %v820
    %v830 = vrot.slane %v823, 7
    %v831 = vsel %vm512, %v830, %v821
    %v834 = vmul.f32 %v800, %v829
    %v835 = vmul.f32 %v801, %v831
    %v836 = vsel %vm209, %v834, 0.0
    %v837 = vsel %vm209, %v835, 0.0
    %v838 = vadd.f32 %v836, %v837
    %839 = vadd.xlane.f32.xlu0 %v838
    %v840 = vpop.xlane.xlu0 %839
    %vm841 = vcmp.ge.f32.partialorder %v840, %v807
    %v842 = vsel %vm841, 1, 0
    %v843 = vcvt.s32.f32 %v842
    %v844 = vmul.f32 %v843, %v834
    %v845 = vmul.f32 %v843, %v835
    %v846 = vsub.f32 1.0, %v843
    %v847 = vsub.f32 %v800, %v834
    %v848 = vsub.f32 %v801, %v835
    %v849 = vmul.f32 %v846, %v847
    %v850 = vmul.f32 %v846, %v848
    %v851 = vadd.f32 %v844, %v849
    %v852 = vadd.f32 %v845, %v850
    %v853 = vmul.f32 %v846, %v834
    %v854 = vmul.f32 %v846, %v835
    %v855 = vadd.f32 %v804, %v853
    %v856 = vadd.f32 %v805, %v854
    %v857 = vmul.f32 %v846, %v840
    %v858 = vsub.f32 %v807, %v857
    %v859 = vand.u32 %v487, 16777216
    %v860 = vand.u32 %v488, 16777216
    %v861 = vand.u32 %v489, 16777216
    %v862 = vand.u32 %v490, 16777216
    %vm863 = vcmp.ne.s32.totalorder %v859, 0
    %vm864 = vcmp.ne.s32.totalorder %v860, 0
    %vm865 = vcmp.ne.s32.totalorder %v861, 0
    %vm866 = vcmp.ne.s32.totalorder %v862, 0
    %v867 = vsel %vm863, 1, 0
    %v868 = vsel %vm864, 1, 0
    %v869 = vsel %vm865, 1, 0
    %v870 = vsel %vm866, 1, 0
    %v871 = vcvt.s32.f32 %v867
    %v872 = vcvt.s32.f32 %v868
    %v873 = vcvt.s32.f32 %v869
    %v874 = vcvt.s32.f32 %v870
    %v879 = vrot.slane %v873, 7
    %v880 = vsel %vm512, %v879, %v871
    %v881 = vrot.slane %v874, 7
    %v882 = vsel %vm512, %v881, %v872
    %v885 = vmul.f32 %v851, %v880
    %v886 = vmul.f32 %v852, %v882
    %v887 = vsel %vm209, %v885, 0.0
    %v888 = vsel %vm209, %v886, 0.0
    %v889 = vadd.f32 %v887, %v888
    %890 = vadd.xlane.f32.xlu0 %v889
    %v891 = vpop.xlane.xlu0 %890
    %vm892 = vcmp.ge.f32.partialorder %v891, %v858
    %v893 = vsel %vm892, 1, 0
    %v894 = vcvt.s32.f32 %v893
    %v895 = vmul.f32 %v894, %v885
    %v896 = vmul.f32 %v894, %v886
    %v897 = vsub.f32 1.0, %v894
    %v898 = vsub.f32 %v851, %v885
    %v899 = vsub.f32 %v852, %v886
    %v900 = vmul.f32 %v897, %v898
    %v901 = vmul.f32 %v897, %v899
    %v902 = vadd.f32 %v895, %v900
    %v903 = vadd.f32 %v896, %v901
    %v904 = vmul.f32 %v897, %v885
    %v905 = vmul.f32 %v897, %v886
    %v906 = vadd.f32 %v855, %v904
    %v907 = vadd.f32 %v856, %v905
    %v908 = vmul.f32 %v897, %v891
    %v909 = vsub.f32 %v858, %v908
    %v910 = vand.u32 %v487, 8388608
    %v911 = vand.u32 %v488, 8388608
    %v912 = vand.u32 %v489, 8388608
    %v913 = vand.u32 %v490, 8388608
    %vm914 = vcmp.ne.s32.totalorder %v910, 0
    %vm915 = vcmp.ne.s32.totalorder %v911, 0
    %vm916 = vcmp.ne.s32.totalorder %v912, 0
    %vm917 = vcmp.ne.s32.totalorder %v913, 0
    %v918 = vsel %vm914, 1, 0
    %v919 = vsel %vm915, 1, 0
    %v920 = vsel %vm916, 1, 0
    %v921 = vsel %vm917, 1, 0
    %v922 = vcvt.s32.f32 %v918
    %v923 = vcvt.s32.f32 %v919
    %v924 = vcvt.s32.f32 %v920
    %v925 = vcvt.s32.f32 %v921
    %v930 = vrot.slane %v924, 7
    %v931 = vsel %vm512, %v930, %v922
    %v932 = vrot.slane %v925, 7
    %v933 = vsel %vm512, %v932, %v923
    %v936 = vmul.f32 %v902, %v931
    %v937 = vmul.f32 %v903, %v933
    %v938 = vsel %vm209, %v936, 0.0
    %v939 = vsel %vm209, %v937, 0.0
    %v940 = vadd.f32 %v938, %v939
    %941 = vadd.xlane.f32.xlu0 %v940
    %v942 = vpop.xlane.xlu0 %941
    %vm943 = vcmp.ge.f32.partialorder %v942, %v909
    %v944 = vsel %vm943, 1, 0
    %v945 = vcvt.s32.f32 %v944
    %v946 = vmul.f32 %v945, %v936
    %v947 = vmul.f32 %v945, %v937
    %v948 = vsub.f32 1.0, %v945
    %v949 = vsub.f32 %v902, %v936
    %v950 = vsub.f32 %v903, %v937
    %v951 = vmul.f32 %v948, %v949
    %v952 = vmul.f32 %v948, %v950
    %v953 = vadd.f32 %v946, %v951
    %v954 = vadd.f32 %v947, %v952
    %v955 = vmul.f32 %v948, %v936
    %v956 = vmul.f32 %v948, %v937
    %v957 = vadd.f32 %v906, %v955
    %v958 = vadd.f32 %v907, %v956
    %v959 = vmul.f32 %v948, %v942
    %v960 = vsub.f32 %v909, %v959
    %v961 = vand.u32 %v487, 4194304
    %v962 = vand.u32 %v488, 4194304
    %v963 = vand.u32 %v489, 4194304
    %v964 = vand.u32 %v490, 4194304
    %vm965 = vcmp.ne.s32.totalorder %v961, 0
    %vm966 = vcmp.ne.s32.totalorder %v962, 0
    %vm967 = vcmp.ne.s32.totalorder %v963, 0
    %vm968 = vcmp.ne.s32.totalorder %v964, 0
    %v969 = vsel %vm965, 1, 0
    %v970 = vsel %vm966, 1, 0
    %v971 = vsel %vm967, 1, 0
    %v972 = vsel %vm968, 1, 0
    %v973 = vcvt.s32.f32 %v969
    %v974 = vcvt.s32.f32 %v970
    %v975 = vcvt.s32.f32 %v971
    %v976 = vcvt.s32.f32 %v972
    %v981 = vrot.slane %v975, 7
    %v982 = vsel %vm512, %v981, %v973
    %v983 = vrot.slane %v976, 7
    %v984 = vsel %vm512, %v983, %v974
    %v987 = vmul.f32 %v953, %v982
    %v988 = vmul.f32 %v954, %v984
    %v989 = vsel %vm209, %v987, 0.0
    %v990 = vsel %vm209, %v988, 0.0
    %v991 = vadd.f32 %v989, %v990
    %992 = vadd.xlane.f32.xlu0 %v991
    %v993 = vpop.xlane.xlu0 %992
    %vm994 = vcmp.ge.f32.partialorder %v993, %v960
    %v995 = vsel %vm994, 1, 0
    %v996 = vcvt.s32.f32 %v995
    %v997 = vmul.f32 %v996, %v987
    %v998 = vmul.f32 %v996, %v988
    %v999 = vsub.f32 1.0, %v996
    %v1000 = vsub.f32 %v953, %v987
    %v1001 = vsub.f32 %v954, %v988
    %v1002 = vmul.f32 %v999, %v1000
    %v1003 = vmul.f32 %v999, %v1001
    %v1004 = vadd.f32 %v997, %v1002
    %v1005 = vadd.f32 %v998, %v1003
    %v1006 = vmul.f32 %v999, %v987
    %v1007 = vmul.f32 %v999, %v988
    %v1008 = vadd.f32 %v957, %v1006
    %v1009 = vadd.f32 %v958, %v1007
    %v1010 = vmul.f32 %v999, %v993
    %v1011 = vsub.f32 %v960, %v1010
    %v1012 = vand.u32 %v487, 2097152
    %v1013 = vand.u32 %v488, 2097152
    %v1014 = vand.u32 %v489, 2097152
    %v1015 = vand.u32 %v490, 2097152
    %vm1016 = vcmp.ne.s32.totalorder %v1012, 0
    %vm1017 = vcmp.ne.s32.totalorder %v1013, 0
    %vm1018 = vcmp.ne.s32.totalorder %v1014, 0
    %vm1019 = vcmp.ne.s32.totalorder %v1015, 0
    %v1020 = vsel %vm1016, 1, 0
    %v1021 = vsel %vm1017, 1, 0
    %v1022 = vsel %vm1018, 1, 0
    %v1023 = vsel %vm1019, 1, 0
    %v1024 = vcvt.s32.f32 %v1020
    %v1025 = vcvt.s32.f32 %v1021
    %v1026 = vcvt.s32.f32 %v1022
    %v1027 = vcvt.s32.f32 %v1023
    %v1032 = vrot.slane %v1026, 7
    %v1033 = vsel %vm512, %v1032, %v1024
    %v1034 = vrot.slane %v1027, 7
    %v1035 = vsel %vm512, %v1034, %v1025
    %v1038 = vmul.f32 %v1004, %v1033
    %v1039 = vmul.f32 %v1005, %v1035
    %v1040 = vsel %vm209, %v1038, 0.0
    %v1041 = vsel %vm209, %v1039, 0.0
    %v1042 = vadd.f32 %v1040, %v1041
    %1043 = vadd.xlane.f32.xlu0 %v1042
    %v1044 = vpop.xlane.xlu0 %1043
    %vm1045 = vcmp.ge.f32.partialorder %v1044, %v1011
    %v1046 = vsel %vm1045, 1, 0
    %v1047 = vcvt.s32.f32 %v1046
    %v1048 = vmul.f32 %v1047, %v1038
    %v1049 = vmul.f32 %v1047, %v1039
    %v1050 = vsub.f32 1.0, %v1047
    %v1051 = vsub.f32 %v1004, %v1038
    %v1052 = vsub.f32 %v1005, %v1039
    %v1053 = vmul.f32 %v1050, %v1051
    %v1054 = vmul.f32 %v1050, %v1052
    %v1055 = vadd.f32 %v1048, %v1053
    %v1056 = vadd.f32 %v1049, %v1054
    %v1057 = vmul.f32 %v1050, %v1038
    %v1058 = vmul.f32 %v1050, %v1039
    %v1059 = vadd.f32 %v1008, %v1057
    %v1060 = vadd.f32 %v1009, %v1058
    %v1061 = vmul.f32 %v1050, %v1044
    %v1062 = vsub.f32 %v1011, %v1061
    %v1063 = vand.u32 %v487, 1048576
    %v1064 = vand.u32 %v488, 1048576
    %v1065 = vand.u32 %v489, 1048576
    %v1066 = vand.u32 %v490, 1048576
    %vm1067 = vcmp.ne.s32.totalorder %v1063, 0
    %vm1068 = vcmp.ne.s32.totalorder %v1064, 0
    %vm1069 = vcmp.ne.s32.totalorder %v1065, 0
    %vm1070 = vcmp.ne.s32.totalorder %v1066, 0
    %v1071 = vsel %vm1067, 1, 0
    %v1072 = vsel %vm1068, 1, 0
    %v1073 = vsel %vm1069, 1, 0
    %v1074 = vsel %vm1070, 1, 0
    %v1075 = vcvt.s32.f32 %v1071
    %v1076 = vcvt.s32.f32 %v1072
    %v1077 = vcvt.s32.f32 %v1073
    %v1078 = vcvt.s32.f32 %v1074
    %v1083 = vrot.slane %v1077, 7
    %v1084 = vsel %vm512, %v1083, %v1075
    %v1085 = vrot.slane %v1078, 7
    %v1086 = vsel %vm512, %v1085, %v1076
    %v1089 = vmul.f32 %v1055, %v1084
    %v1090 = vmul.f32 %v1056, %v1086
    %v1091 = vsel %vm209, %v1089, 0.0
    %v1092 = vsel %vm209, %v1090, 0.0
    %v1093 = vadd.f32 %v1091, %v1092
    %1094 = vadd.xlane.f32.xlu0 %v1093
    %v1095 = vpop.xlane.xlu0 %1094
    %vm1096 = vcmp.ge.f32.partialorder %v1095, %v1062
    %v1097 = vsel %vm1096, 1, 0
    %v1098 = vcvt.s32.f32 %v1097
    %v1099 = vmul.f32 %v1098, %v1089
    %v1100 = vmul.f32 %v1098, %v1090
    %v1101 = vsub.f32 1.0, %v1098
    %v1102 = vsub.f32 %v1055, %v1089
    %v1103 = vsub.f32 %v1056, %v1090
    %v1104 = vmul.f32 %v1101, %v1102
    %v1105 = vmul.f32 %v1101, %v1103
    %v1106 = vadd.f32 %v1099, %v1104
    %v1107 = vadd.f32 %v1100, %v1105
    %v1108 = vmul.f32 %v1101, %v1089
    %v1109 = vmul.f32 %v1101, %v1090
    %v1110 = vadd.f32 %v1059, %v1108
    %v1111 = vadd.f32 %v1060, %v1109
    %v1112 = vmul.f32 %v1101, %v1095
    %v1113 = vsub.f32 %v1062, %v1112
    %v1114 = vand.u32 %v487, 524288
    %v1115 = vand.u32 %v488, 524288
    %v1116 = vand.u32 %v489, 524288
    %v1117 = vand.u32 %v490, 524288
    %vm1118 = vcmp.ne.s32.totalorder %v1114, 0
    %vm1119 = vcmp.ne.s32.totalorder %v1115, 0
    %vm1120 = vcmp.ne.s32.totalorder %v1116, 0
    %vm1121 = vcmp.ne.s32.totalorder %v1117, 0
    %v1122 = vsel %vm1118, 1, 0
    %v1123 = vsel %vm1119, 1, 0
    %v1124 = vsel %vm1120, 1, 0
    %v1125 = vsel %vm1121, 1, 0
    %v1126 = vcvt.s32.f32 %v1122
    %v1127 = vcvt.s32.f32 %v1123
    %v1128 = vcvt.s32.f32 %v1124
    %v1129 = vcvt.s32.f32 %v1125
    %v1134 = vrot.slane %v1128, 7
    %v1135 = vsel %vm512, %v1134, %v1126
    %v1136 = vrot.slane %v1129, 7
    %v1137 = vsel %vm512, %v1136, %v1127
    %v1140 = vmul.f32 %v1106, %v1135
    %v1141 = vmul.f32 %v1107, %v1137
    %v1142 = vsel %vm209, %v1140, 0.0
    %v1143 = vsel %vm209, %v1141, 0.0
    %v1144 = vadd.f32 %v1142, %v1143
    %1145 = vadd.xlane.f32.xlu0 %v1144
    %v1146 = vpop.xlane.xlu0 %1145
    %vm1147 = vcmp.ge.f32.partialorder %v1146, %v1113
    %v1148 = vsel %vm1147, 1, 0
    %v1149 = vcvt.s32.f32 %v1148
    %v1150 = vmul.f32 %v1149, %v1140
    %v1151 = vmul.f32 %v1149, %v1141
    %v1152 = vsub.f32 1.0, %v1149
    %v1153 = vsub.f32 %v1106, %v1140
    %v1154 = vsub.f32 %v1107, %v1141
    %v1155 = vmul.f32 %v1152, %v1153
    %v1156 = vmul.f32 %v1152, %v1154
    %v1157 = vadd.f32 %v1150, %v1155
    %v1158 = vadd.f32 %v1151, %v1156
    %v1159 = vmul.f32 %v1152, %v1140
    %v1160 = vmul.f32 %v1152, %v1141
    %v1161 = vadd.f32 %v1110, %v1159
    %v1162 = vadd.f32 %v1111, %v1160
    %v1163 = vmul.f32 %v1152, %v1146
    %v1164 = vsub.f32 %v1113, %v1163
    %v1165 = vand.u32 %v487, 262144
    %v1166 = vand.u32 %v488, 262144
    %v1167 = vand.u32 %v489, 262144
    %v1168 = vand.u32 %v490, 262144
    %vm1169 = vcmp.ne.s32.totalorder %v1165, 0
    %vm1170 = vcmp.ne.s32.totalorder %v1166, 0
    %vm1171 = vcmp.ne.s32.totalorder %v1167, 0
    %vm1172 = vcmp.ne.s32.totalorder %v1168, 0
    %v1173 = vsel %vm1169, 1, 0
    %v1174 = vsel %vm1170, 1, 0
    %v1175 = vsel %vm1171, 1, 0
    %v1176 = vsel %vm1172, 1, 0
    %v1177 = vcvt.s32.f32 %v1173
    %v1178 = vcvt.s32.f32 %v1174
    %v1179 = vcvt.s32.f32 %v1175
    %v1180 = vcvt.s32.f32 %v1176
    %v1185 = vrot.slane %v1179, 7
    %v1186 = vsel %vm512, %v1185, %v1177
    %v1187 = vrot.slane %v1180, 7
    %v1188 = vsel %vm512, %v1187, %v1178
    %v1191 = vmul.f32 %v1157, %v1186
    %v1192 = vmul.f32 %v1158, %v1188
    %v1193 = vsel %vm209, %v1191, 0.0
    %v1194 = vsel %vm209, %v1192, 0.0
    %v1195 = vadd.f32 %v1193, %v1194
    %1196 = vadd.xlane.f32.xlu0 %v1195
    %v1197 = vpop.xlane.xlu0 %1196
    %vm1198 = vcmp.ge.f32.partialorder %v1197, %v1164
    %v1199 = vsel %vm1198, 1, 0
    %v1200 = vcvt.s32.f32 %v1199
    %v1201 = vmul.f32 %v1200, %v1191
    %v1202 = vmul.f32 %v1200, %v1192
    %v1203 = vsub.f32 1.0, %v1200
    %v1204 = vsub.f32 %v1157, %v1191
    %v1205 = vsub.f32 %v1158, %v1192
    %v1206 = vmul.f32 %v1203, %v1204
    %v1207 = vmul.f32 %v1203, %v1205
    %v1208 = vadd.f32 %v1201, %v1206
    %v1209 = vadd.f32 %v1202, %v1207
    %v1210 = vmul.f32 %v1203, %v1191
    %v1211 = vmul.f32 %v1203, %v1192
    %v1212 = vadd.f32 %v1161, %v1210
    %v1213 = vadd.f32 %v1162, %v1211
    %v1214 = vmul.f32 %v1203, %v1197
    %v1215 = vsub.f32 %v1164, %v1214
    %v1216 = vand.u32 %v487, 131072
    %v1217 = vand.u32 %v488, 131072
    %v1218 = vand.u32 %v489, 131072
    %v1219 = vand.u32 %v490, 131072
    %vm1220 = vcmp.ne.s32.totalorder %v1216, 0
    %vm1221 = vcmp.ne.s32.totalorder %v1217, 0
    %vm1222 = vcmp.ne.s32.totalorder %v1218, 0
    %vm1223 = vcmp.ne.s32.totalorder %v1219, 0
    %v1224 = vsel %vm1220, 1, 0
    %v1225 = vsel %vm1221, 1, 0
    %v1226 = vsel %vm1222, 1, 0
    %v1227 = vsel %vm1223, 1, 0
    %v1228 = vcvt.s32.f32 %v1224
    %v1229 = vcvt.s32.f32 %v1225
    %v1230 = vcvt.s32.f32 %v1226
    %v1231 = vcvt.s32.f32 %v1227
    %v1236 = vrot.slane %v1230, 7
    %v1237 = vsel %vm512, %v1236, %v1228
    %v1238 = vrot.slane %v1231, 7
    %v1239 = vsel %vm512, %v1238, %v1229
    %v1242 = vmul.f32 %v1208, %v1237
    %v1243 = vmul.f32 %v1209, %v1239
    %v1244 = vsel %vm209, %v1242, 0.0
    %v1245 = vsel %vm209, %v1243, 0.0
    %v1246 = vadd.f32 %v1244, %v1245
    %1247 = vadd.xlane.f32.xlu0 %v1246
    %v1248 = vpop.xlane.xlu0 %1247
    %vm1249 = vcmp.ge.f32.partialorder %v1248, %v1215
    %v1250 = vsel %vm1249, 1, 0
    %v1251 = vcvt.s32.f32 %v1250
    %v1252 = vmul.f32 %v1251, %v1242
    %v1253 = vmul.f32 %v1251, %v1243
    %v1254 = vsub.f32 1.0, %v1251
    %v1255 = vsub.f32 %v1208, %v1242
    %v1256 = vsub.f32 %v1209, %v1243
    %v1257 = vmul.f32 %v1254, %v1255
    %v1258 = vmul.f32 %v1254, %v1256
    %v1259 = vadd.f32 %v1252, %v1257
    %v1260 = vadd.f32 %v1253, %v1258
    %v1261 = vmul.f32 %v1254, %v1242
    %v1262 = vmul.f32 %v1254, %v1243
    %v1263 = vadd.f32 %v1212, %v1261
    %v1264 = vadd.f32 %v1213, %v1262
    %v1265 = vmul.f32 %v1254, %v1248
    %v1266 = vsub.f32 %v1215, %v1265
    %v1267 = vand.u32 %v487, 65536
    %v1268 = vand.u32 %v488, 65536
    %v1269 = vand.u32 %v489, 65536
    %v1270 = vand.u32 %v490, 65536
    %vm1271 = vcmp.ne.s32.totalorder %v1267, 0
    %vm1272 = vcmp.ne.s32.totalorder %v1268, 0
    %vm1273 = vcmp.ne.s32.totalorder %v1269, 0
    %vm1274 = vcmp.ne.s32.totalorder %v1270, 0
    %v1275 = vsel %vm1271, 1, 0
    %v1276 = vsel %vm1272, 1, 0
    %v1277 = vsel %vm1273, 1, 0
    %v1278 = vsel %vm1274, 1, 0
    %v1279 = vcvt.s32.f32 %v1275
    %v1280 = vcvt.s32.f32 %v1276
    %v1281 = vcvt.s32.f32 %v1277
    %v1282 = vcvt.s32.f32 %v1278
    %v1287 = vrot.slane %v1281, 7
    %v1288 = vsel %vm512, %v1287, %v1279
    %v1289 = vrot.slane %v1282, 7
    %v1290 = vsel %vm512, %v1289, %v1280
    %v1293 = vmul.f32 %v1259, %v1288
    %v1294 = vmul.f32 %v1260, %v1290
    %v1295 = vsel %vm209, %v1293, 0.0
    %v1296 = vsel %vm209, %v1294, 0.0
    %v1297 = vadd.f32 %v1295, %v1296
    %1298 = vadd.xlane.f32.xlu0 %v1297
    %v1299 = vpop.xlane.xlu0 %1298
    %vm1300 = vcmp.ge.f32.partialorder %v1299, %v1266
    %v1301 = vsel %vm1300, 1, 0
    %v1302 = vcvt.s32.f32 %v1301
    %v1303 = vmul.f32 %v1302, %v1293
    %v1304 = vmul.f32 %v1302, %v1294
    %v1305 = vsub.f32 1.0, %v1302
    %v1306 = vsub.f32 %v1259, %v1293
    %v1307 = vsub.f32 %v1260, %v1294
    %v1308 = vmul.f32 %v1305, %v1306
    %v1309 = vmul.f32 %v1305, %v1307
    %v1310 = vadd.f32 %v1303, %v1308
    %v1311 = vadd.f32 %v1304, %v1309
    %v1312 = vmul.f32 %v1305, %v1293
    %v1313 = vmul.f32 %v1305, %v1294
    %v1314 = vadd.f32 %v1263, %v1312
    %v1315 = vadd.f32 %v1264, %v1313
    %v1316 = vmul.f32 %v1305, %v1299
    %v1317 = vsub.f32 %v1266, %v1316
    %v1318 = vand.u32 %v487, 32768
    %v1319 = vand.u32 %v488, 32768
    %v1320 = vand.u32 %v489, 32768
    %v1321 = vand.u32 %v490, 32768
    %vm1322 = vcmp.ne.s32.totalorder %v1318, 0
    %vm1323 = vcmp.ne.s32.totalorder %v1319, 0
    %vm1324 = vcmp.ne.s32.totalorder %v1320, 0
    %vm1325 = vcmp.ne.s32.totalorder %v1321, 0
    %v1326 = vsel %vm1322, 1, 0
    %v1327 = vsel %vm1323, 1, 0
    %v1328 = vsel %vm1324, 1, 0
    %v1329 = vsel %vm1325, 1, 0
    %v1330 = vcvt.s32.f32 %v1326
    %v1331 = vcvt.s32.f32 %v1327
    %v1332 = vcvt.s32.f32 %v1328
    %v1333 = vcvt.s32.f32 %v1329
    %v1338 = vrot.slane %v1332, 7
    %v1339 = vsel %vm512, %v1338, %v1330
    %v1340 = vrot.slane %v1333, 7
    %v1341 = vsel %vm512, %v1340, %v1331
    %v1344 = vmul.f32 %v1310, %v1339
    %v1345 = vmul.f32 %v1311, %v1341
    %v1346 = vsel %vm209, %v1344, 0.0
    %v1347 = vsel %vm209, %v1345, 0.0
    %v1348 = vadd.f32 %v1346, %v1347
    %1349 = vadd.xlane.f32.xlu0 %v1348
    %v1350 = vpop.xlane.xlu0 %1349
    %vm1351 = vcmp.ge.f32.partialorder %v1350, %v1317
    %v1352 = vsel %vm1351, 1, 0
    %v1353 = vcvt.s32.f32 %v1352
    %v1354 = vmul.f32 %v1353, %v1344
    %v1355 = vmul.f32 %v1353, %v1345
    %v1356 = vsub.f32 1.0, %v1353
    %v1357 = vsub.f32 %v1310, %v1344
    %v1358 = vsub.f32 %v1311, %v1345
    %v1359 = vmul.f32 %v1356, %v1357
    %v1360 = vmul.f32 %v1356, %v1358
    %v1361 = vadd.f32 %v1354, %v1359
    %v1362 = vadd.f32 %v1355, %v1360
    %v1363 = vmul.f32 %v1356, %v1344
    %v1364 = vmul.f32 %v1356, %v1345
    %v1365 = vadd.f32 %v1314, %v1363
    %v1366 = vadd.f32 %v1315, %v1364
    %v1367 = vmul.f32 %v1356, %v1350
    %v1368 = vsub.f32 %v1317, %v1367
    %v1369 = vand.u32 %v487, 16384
    %v1370 = vand.u32 %v488, 16384
    %v1371 = vand.u32 %v489, 16384
    %v1372 = vand.u32 %v490, 16384
    %vm1373 = vcmp.ne.s32.totalorder %v1369, 0
    %vm1374 = vcmp.ne.s32.totalorder %v1370, 0
    %vm1375 = vcmp.ne.s32.totalorder %v1371, 0
    %vm1376 = vcmp.ne.s32.totalorder %v1372, 0
    %v1377 = vsel %vm1373, 1, 0
    %v1378 = vsel %vm1374, 1, 0
    %v1379 = vsel %vm1375, 1, 0
    %v1380 = vsel %vm1376, 1, 0
    %v1381 = vcvt.s32.f32 %v1377
    %v1382 = vcvt.s32.f32 %v1378
    %v1383 = vcvt.s32.f32 %v1379
    %v1384 = vcvt.s32.f32 %v1380
    %v1389 = vrot.slane %v1383, 7
    %v1390 = vsel %vm512, %v1389, %v1381
    %v1391 = vrot.slane %v1384, 7
    %v1392 = vsel %vm512, %v1391, %v1382
    %v1395 = vmul.f32 %v1361, %v1390
    %v1396 = vmul.f32 %v1362, %v1392
    %v1397 = vsel %vm209, %v1395, 0.0
    %v1398 = vsel %vm209, %v1396, 0.0
    %v1399 = vadd.f32 %v1397, %v1398
    %1400 = vadd.xlane.f32.xlu0 %v1399
    %v1401 = vpop.xlane.xlu0 %1400
    %vm1402 = vcmp.ge.f32.partialorder %v1401, %v1368
    %v1403 = vsel %vm1402, 1, 0
    %v1404 = vcvt.s32.f32 %v1403
    %v1405 = vmul.f32 %v1404, %v1395
    %v1406 = vmul.f32 %v1404, %v1396
    %v1407 = vsub.f32 1.0, %v1404
    %v1408 = vsub.f32 %v1361, %v1395
    %v1409 = vsub.f32 %v1362, %v1396
    %v1410 = vmul.f32 %v1407, %v1408
    %v1411 = vmul.f32 %v1407, %v1409
    %v1412 = vadd.f32 %v1405, %v1410
    %v1413 = vadd.f32 %v1406, %v1411
    %v1414 = vmul.f32 %v1407, %v1395
    %v1415 = vmul.f32 %v1407, %v1396
    %v1416 = vadd.f32 %v1365, %v1414
    %v1417 = vadd.f32 %v1366, %v1415
    %v1418 = vmul.f32 %v1407, %v1401
    %v1419 = vsub.f32 %v1368, %v1418
    %v1420 = vand.u32 %v487, 8192
    %v1421 = vand.u32 %v488, 8192
    %v1422 = vand.u32 %v489, 8192
    %v1423 = vand.u32 %v490, 8192
    %vm1424 = vcmp.ne.s32.totalorder %v1420, 0
    %vm1425 = vcmp.ne.s32.totalorder %v1421, 0
    %vm1426 = vcmp.ne.s32.totalorder %v1422, 0
    %vm1427 = vcmp.ne.s32.totalorder %v1423, 0
    %v1428 = vsel %vm1424, 1, 0
    %v1429 = vsel %vm1425, 1, 0
    %v1430 = vsel %vm1426, 1, 0
    %v1431 = vsel %vm1427, 1, 0
    %v1432 = vcvt.s32.f32 %v1428
    %v1433 = vcvt.s32.f32 %v1429
    %v1434 = vcvt.s32.f32 %v1430
    %v1435 = vcvt.s32.f32 %v1431
    %v1440 = vrot.slane %v1434, 7
    %v1441 = vsel %vm512, %v1440, %v1432
    %v1442 = vrot.slane %v1435, 7
    %v1443 = vsel %vm512, %v1442, %v1433
    %v1446 = vmul.f32 %v1412, %v1441
    %v1447 = vmul.f32 %v1413, %v1443
    %v1448 = vsel %vm209, %v1446, 0.0
    %v1449 = vsel %vm209, %v1447, 0.0
    %v1450 = vadd.f32 %v1448, %v1449
    %1451 = vadd.xlane.f32.xlu0 %v1450
    %v1452 = vpop.xlane.xlu0 %1451
    %vm1453 = vcmp.ge.f32.partialorder %v1452, %v1419
    %v1454 = vsel %vm1453, 1, 0
    %v1455 = vcvt.s32.f32 %v1454
    %v1456 = vmul.f32 %v1455, %v1446
    %v1457 = vmul.f32 %v1455, %v1447
    %v1458 = vsub.f32 1.0, %v1455
    %v1459 = vsub.f32 %v1412, %v1446
    %v1460 = vsub.f32 %v1413, %v1447
    %v1461 = vmul.f32 %v1458, %v1459
    %v1462 = vmul.f32 %v1458, %v1460
    %v1463 = vadd.f32 %v1456, %v1461
    %v1464 = vadd.f32 %v1457, %v1462
    %v1465 = vmul.f32 %v1458, %v1446
    %v1466 = vmul.f32 %v1458, %v1447
    %v1467 = vadd.f32 %v1416, %v1465
    %v1468 = vadd.f32 %v1417, %v1466
    %v1469 = vmul.f32 %v1458, %v1452
    %v1470 = vsub.f32 %v1419, %v1469
    %v1471 = vand.u32 %v487, 4096
    %v1472 = vand.u32 %v488, 4096
    %v1473 = vand.u32 %v489, 4096
    %v1474 = vand.u32 %v490, 4096
    %vm1475 = vcmp.ne.s32.totalorder %v1471, 0
    %vm1476 = vcmp.ne.s32.totalorder %v1472, 0
    %vm1477 = vcmp.ne.s32.totalorder %v1473, 0
    %vm1478 = vcmp.ne.s32.totalorder %v1474, 0
    %v1479 = vsel %vm1475, 1, 0
    %v1480 = vsel %vm1476, 1, 0
    %v1481 = vsel %vm1477, 1, 0
    %v1482 = vsel %vm1478, 1, 0
    %v1483 = vcvt.s32.f32 %v1479
    %v1484 = vcvt.s32.f32 %v1480
    %v1485 = vcvt.s32.f32 %v1481
    %v1486 = vcvt.s32.f32 %v1482
    %v1491 = vrot.slane %v1485, 7
    %v1492 = vsel %vm512, %v1491, %v1483
    %v1493 = vrot.slane %v1486, 7
    %v1494 = vsel %vm512, %v1493, %v1484
    %v1497 = vmul.f32 %v1463, %v1492
    %v1498 = vmul.f32 %v1464, %v1494
    %v1499 = vsel %vm209, %v1497, 0.0
    %v1500 = vsel %vm209, %v1498, 0.0
    %v1501 = vadd.f32 %v1499, %v1500
    %1502 = vadd.xlane.f32.xlu0 %v1501
    %v1503 = vpop.xlane.xlu0 %1502
    %vm1504 = vcmp.ge.f32.partialorder %v1503, %v1470
    %v1505 = vsel %vm1504, 1, 0
    %v1506 = vcvt.s32.f32 %v1505
    %v1507 = vmul.f32 %v1506, %v1497
    %v1508 = vmul.f32 %v1506, %v1498
    %v1509 = vsub.f32 1.0, %v1506
    %v1510 = vsub.f32 %v1463, %v1497
    %v1511 = vsub.f32 %v1464, %v1498
    %v1512 = vmul.f32 %v1509, %v1510
    %v1513 = vmul.f32 %v1509, %v1511
    %v1514 = vadd.f32 %v1507, %v1512
    %v1515 = vadd.f32 %v1508, %v1513
    %v1516 = vmul.f32 %v1509, %v1497
    %v1517 = vmul.f32 %v1509, %v1498
    %v1518 = vadd.f32 %v1467, %v1516
    %v1519 = vadd.f32 %v1468, %v1517
    %v1520 = vmul.f32 %v1509, %v1503
    %v1521 = vsub.f32 %v1470, %v1520
    %v1522 = vand.u32 %v487, 2048
    %v1523 = vand.u32 %v488, 2048
    %v1524 = vand.u32 %v489, 2048
    %v1525 = vand.u32 %v490, 2048
    %vm1526 = vcmp.ne.s32.totalorder %v1522, 0
    %vm1527 = vcmp.ne.s32.totalorder %v1523, 0
    %vm1528 = vcmp.ne.s32.totalorder %v1524, 0
    %vm1529 = vcmp.ne.s32.totalorder %v1525, 0
    %v1530 = vsel %vm1526, 1, 0
    %v1531 = vsel %vm1527, 1, 0
    %v1532 = vsel %vm1528, 1, 0
    %v1533 = vsel %vm1529, 1, 0
    %v1534 = vcvt.s32.f32 %v1530
    %v1535 = vcvt.s32.f32 %v1531
    %v1536 = vcvt.s32.f32 %v1532
    %v1537 = vcvt.s32.f32 %v1533
    %v1542 = vrot.slane %v1536, 7
    %v1543 = vsel %vm512, %v1542, %v1534
    %v1544 = vrot.slane %v1537, 7
    %v1545 = vsel %vm512, %v1544, %v1535
    %v1548 = vmul.f32 %v1514, %v1543
    %v1549 = vmul.f32 %v1515, %v1545
    %v1550 = vsel %vm209, %v1548, 0.0
    %v1551 = vsel %vm209, %v1549, 0.0
    %v1552 = vadd.f32 %v1550, %v1551
    %1553 = vadd.xlane.f32.xlu0 %v1552
    %v1554 = vpop.xlane.xlu0 %1553
    %vm1555 = vcmp.ge.f32.partialorder %v1554, %v1521
    %v1556 = vsel %vm1555, 1, 0
    %v1557 = vcvt.s32.f32 %v1556
    %v1558 = vmul.f32 %v1557, %v1548
    %v1559 = vmul.f32 %v1557, %v1549
    %v1560 = vsub.f32 1.0, %v1557
    %v1561 = vsub.f32 %v1514, %v1548
    %v1562 = vsub.f32 %v1515, %v1549
    %v1563 = vmul.f32 %v1560, %v1561
    %v1564 = vmul.f32 %v1560, %v1562
    %v1565 = vadd.f32 %v1558, %v1563
    %v1566 = vadd.f32 %v1559, %v1564
    %v1567 = vmul.f32 %v1560, %v1548
    %v1568 = vmul.f32 %v1560, %v1549
    %v1569 = vadd.f32 %v1518, %v1567
    %v1570 = vadd.f32 %v1519, %v1568
    %v1571 = vmul.f32 %v1560, %v1554
    %v1572 = vsub.f32 %v1521, %v1571
    %v1573 = vand.u32 %v487, 1024
    %v1574 = vand.u32 %v488, 1024
    %v1575 = vand.u32 %v489, 1024
    %v1576 = vand.u32 %v490, 1024
    %vm1577 = vcmp.ne.s32.totalorder %v1573, 0
    %vm1578 = vcmp.ne.s32.totalorder %v1574, 0
    %vm1579 = vcmp.ne.s32.totalorder %v1575, 0
    %vm1580 = vcmp.ne.s32.totalorder %v1576, 0
    %v1581 = vsel %vm1577, 1, 0
    %v1582 = vsel %vm1578, 1, 0
    %v1583 = vsel %vm1579, 1, 0
    %v1584 = vsel %vm1580, 1, 0
    %v1585 = vcvt.s32.f32 %v1581
    %v1586 = vcvt.s32.f32 %v1582
    %v1587 = vcvt.s32.f32 %v1583
    %v1588 = vcvt.s32.f32 %v1584
    %v1593 = vrot.slane %v1587, 7
    %v1594 = vsel %vm512, %v1593, %v1585
    %v1595 = vrot.slane %v1588, 7
    %v1596 = vsel %vm512, %v1595, %v1586
    %v1599 = vmul.f32 %v1565, %v1594
    %v1600 = vmul.f32 %v1566, %v1596
    %v1601 = vsel %vm209, %v1599, 0.0
    %v1602 = vsel %vm209, %v1600, 0.0
    %v1603 = vadd.f32 %v1601, %v1602
    %1604 = vadd.xlane.f32.xlu0 %v1603
    %v1605 = vpop.xlane.xlu0 %1604
    %vm1606 = vcmp.ge.f32.partialorder %v1605, %v1572
    %v1607 = vsel %vm1606, 1, 0
    %v1608 = vcvt.s32.f32 %v1607
    %v1609 = vmul.f32 %v1608, %v1599
    %v1610 = vmul.f32 %v1608, %v1600
    %v1611 = vsub.f32 1.0, %v1608
    %v1612 = vsub.f32 %v1565, %v1599
    %v1613 = vsub.f32 %v1566, %v1600
    %v1614 = vmul.f32 %v1611, %v1612
    %v1615 = vmul.f32 %v1611, %v1613
    %v1616 = vadd.f32 %v1609, %v1614
    %v1617 = vadd.f32 %v1610, %v1615
    %v1618 = vmul.f32 %v1611, %v1599
    %v1619 = vmul.f32 %v1611, %v1600
    %v1620 = vadd.f32 %v1569, %v1618
    %v1621 = vadd.f32 %v1570, %v1619
    %v1622 = vmul.f32 %v1611, %v1605
    %v1623 = vsub.f32 %v1572, %v1622
    %v1624 = vand.u32 %v487, 512
    %v1625 = vand.u32 %v488, 512
    %v1626 = vand.u32 %v489, 512
    %v1627 = vand.u32 %v490, 512
    %vm1628 = vcmp.ne.s32.totalorder %v1624, 0
    %vm1629 = vcmp.ne.s32.totalorder %v1625, 0
    %vm1630 = vcmp.ne.s32.totalorder %v1626, 0
    %vm1631 = vcmp.ne.s32.totalorder %v1627, 0
    %v1632 = vsel %vm1628, 1, 0
    %v1633 = vsel %vm1629, 1, 0
    %v1634 = vsel %vm1630, 1, 0
    %v1635 = vsel %vm1631, 1, 0
    %v1636 = vcvt.s32.f32 %v1632
    %v1637 = vcvt.s32.f32 %v1633
    %v1638 = vcvt.s32.f32 %v1634
    %v1639 = vcvt.s32.f32 %v1635
    %v1644 = vrot.slane %v1638, 7
    %v1645 = vsel %vm512, %v1644, %v1636
    %v1646 = vrot.slane %v1639, 7
    %v1647 = vsel %vm512, %v1646, %v1637
    %v1650 = vmul.f32 %v1616, %v1645
    %v1651 = vmul.f32 %v1617, %v1647
    %v1652 = vsel %vm209, %v1650, 0.0
    %v1653 = vsel %vm209, %v1651, 0.0
    %v1654 = vadd.f32 %v1652, %v1653
    %1655 = vadd.xlane.f32.xlu0 %v1654
    %v1656 = vpop.xlane.xlu0 %1655
    %vm1657 = vcmp.ge.f32.partialorder %v1656, %v1623
    %v1658 = vsel %vm1657, 1, 0
    %v1659 = vcvt.s32.f32 %v1658
    %v1660 = vmul.f32 %v1659, %v1650
    %v1661 = vmul.f32 %v1659, %v1651
    %v1662 = vsub.f32 1.0, %v1659
    %v1663 = vsub.f32 %v1616, %v1650
    %v1664 = vsub.f32 %v1617, %v1651
    %v1665 = vmul.f32 %v1662, %v1663
    %v1666 = vmul.f32 %v1662, %v1664
    %v1667 = vadd.f32 %v1660, %v1665
    %v1668 = vadd.f32 %v1661, %v1666
    %v1669 = vmul.f32 %v1662, %v1650
    %v1670 = vmul.f32 %v1662, %v1651
    %v1671 = vadd.f32 %v1620, %v1669
    %v1672 = vadd.f32 %v1621, %v1670
    %v1673 = vmul.f32 %v1662, %v1656
    %v1674 = vsub.f32 %v1623, %v1673
    %v1675 = vand.u32 %v487, 256
    %v1676 = vand.u32 %v488, 256
    %v1677 = vand.u32 %v489, 256
    %v1678 = vand.u32 %v490, 256
    %vm1679 = vcmp.ne.s32.totalorder %v1675, 0
    %vm1680 = vcmp.ne.s32.totalorder %v1676, 0
    %vm1681 = vcmp.ne.s32.totalorder %v1677, 0
    %vm1682 = vcmp.ne.s32.totalorder %v1678, 0
    %v1683 = vsel %vm1679, 1, 0
    %v1684 = vsel %vm1680, 1, 0
    %v1685 = vsel %vm1681, 1, 0
    %v1686 = vsel %vm1682, 1, 0
    %v1687 = vcvt.s32.f32 %v1683
    %v1688 = vcvt.s32.f32 %v1684
    %v1689 = vcvt.s32.f32 %v1685
    %v1690 = vcvt.s32.f32 %v1686
    %v1695 = vrot.slane %v1689, 7
    %v1696 = vsel %vm512, %v1695, %v1687
    %v1697 = vrot.slane %v1690, 7
    %v1698 = vsel %vm512, %v1697, %v1688
    %v1701 = vmul.f32 %v1667, %v1696
    %v1702 = vmul.f32 %v1668, %v1698
    %v1703 = vsel %vm209, %v1701, 0.0
    %v1704 = vsel %vm209, %v1702, 0.0
    %v1705 = vadd.f32 %v1703, %v1704
    %1706 = vadd.xlane.f32.xlu0 %v1705
    %v1707 = vpop.xlane.xlu0 %1706
    %vm1708 = vcmp.ge.f32.partialorder %v1707, %v1674
    %v1709 = vsel %vm1708, 1, 0
    %v1710 = vcvt.s32.f32 %v1709
    %v1711 = vmul.f32 %v1710, %v1701
    %v1712 = vmul.f32 %v1710, %v1702
    %v1713 = vsub.f32 1.0, %v1710
    %v1714 = vsub.f32 %v1667, %v1701
    %v1715 = vsub.f32 %v1668, %v1702
    %v1716 = vmul.f32 %v1713, %v1714
    %v1717 = vmul.f32 %v1713, %v1715
    %v1718 = vadd.f32 %v1711, %v1716
    %v1719 = vadd.f32 %v1712, %v1717
    %v1720 = vmul.f32 %v1713, %v1701
    %v1721 = vmul.f32 %v1713, %v1702
    %v1722 = vadd.f32 %v1671, %v1720
    %v1723 = vadd.f32 %v1672, %v1721
    %v1724 = vmul.f32 %v1713, %v1707
    %v1725 = vsub.f32 %v1674, %v1724
    %v1726 = vand.u32 %v487, 128
    %v1727 = vand.u32 %v488, 128
    %v1728 = vand.u32 %v489, 128
    %v1729 = vand.u32 %v490, 128
    %vm1730 = vcmp.ne.s32.totalorder %v1726, 0
    %vm1731 = vcmp.ne.s32.totalorder %v1727, 0
    %vm1732 = vcmp.ne.s32.totalorder %v1728, 0
    %vm1733 = vcmp.ne.s32.totalorder %v1729, 0
    %v1734 = vsel %vm1730, 1, 0
    %v1735 = vsel %vm1731, 1, 0
    %v1736 = vsel %vm1732, 1, 0
    %v1737 = vsel %vm1733, 1, 0
    %v1738 = vcvt.s32.f32 %v1734
    %v1739 = vcvt.s32.f32 %v1735
    %v1740 = vcvt.s32.f32 %v1736
    %v1741 = vcvt.s32.f32 %v1737
    %v1746 = vrot.slane %v1740, 7
    %v1747 = vsel %vm512, %v1746, %v1738
    %v1748 = vrot.slane %v1741, 7
    %v1749 = vsel %vm512, %v1748, %v1739
    %v1752 = vmul.f32 %v1718, %v1747
    %v1753 = vmul.f32 %v1719, %v1749
    %v1754 = vsel %vm209, %v1752, 0.0
    %v1755 = vsel %vm209, %v1753, 0.0
    %v1756 = vadd.f32 %v1754, %v1755
    %1757 = vadd.xlane.f32.xlu0 %v1756
    %v1758 = vpop.xlane.xlu0 %1757
    %vm1759 = vcmp.ge.f32.partialorder %v1758, %v1725
    %v1760 = vsel %vm1759, 1, 0
    %v1761 = vcvt.s32.f32 %v1760
    %v1762 = vmul.f32 %v1761, %v1752
    %v1763 = vmul.f32 %v1761, %v1753
    %v1764 = vsub.f32 1.0, %v1761
    %v1765 = vsub.f32 %v1718, %v1752
    %v1766 = vsub.f32 %v1719, %v1753
    %v1767 = vmul.f32 %v1764, %v1765
    %v1768 = vmul.f32 %v1764, %v1766
    %v1769 = vadd.f32 %v1762, %v1767
    %v1770 = vadd.f32 %v1763, %v1768
    %v1771 = vmul.f32 %v1764, %v1752
    %v1772 = vmul.f32 %v1764, %v1753
    %v1773 = vadd.f32 %v1722, %v1771
    %v1774 = vadd.f32 %v1723, %v1772
    %v1775 = vmul.f32 %v1764, %v1758
    %v1776 = vsub.f32 %v1725, %v1775
    %v1777 = vand.u32 %v487, 64
    %v1778 = vand.u32 %v488, 64
    %v1779 = vand.u32 %v489, 64
    %v1780 = vand.u32 %v490, 64
    %vm1781 = vcmp.ne.s32.totalorder %v1777, 0
    %vm1782 = vcmp.ne.s32.totalorder %v1778, 0
    %vm1783 = vcmp.ne.s32.totalorder %v1779, 0
    %vm1784 = vcmp.ne.s32.totalorder %v1780, 0
    %v1785 = vsel %vm1781, 1, 0
    %v1786 = vsel %vm1782, 1, 0
    %v1787 = vsel %vm1783, 1, 0
    %v1788 = vsel %vm1784, 1, 0
    %v1789 = vcvt.s32.f32 %v1785
    %v1790 = vcvt.s32.f32 %v1786
    %v1791 = vcvt.s32.f32 %v1787
    %v1792 = vcvt.s32.f32 %v1788
    %v1797 = vrot.slane %v1791, 7
    %v1798 = vsel %vm512, %v1797, %v1789
    %v1799 = vrot.slane %v1792, 7
    %v1800 = vsel %vm512, %v1799, %v1790
    %v1803 = vmul.f32 %v1769, %v1798
    %v1804 = vmul.f32 %v1770, %v1800
    %v1805 = vsel %vm209, %v1803, 0.0
    %v1806 = vsel %vm209, %v1804, 0.0
    %v1807 = vadd.f32 %v1805, %v1806
    %1808 = vadd.xlane.f32.xlu0 %v1807
    %v1809 = vpop.xlane.xlu0 %1808
    %vm1810 = vcmp.ge.f32.partialorder %v1809, %v1776
    %v1811 = vsel %vm1810, 1, 0
    %v1812 = vcvt.s32.f32 %v1811
    %v1813 = vmul.f32 %v1812, %v1803
    %v1814 = vmul.f32 %v1812, %v1804
    %v1815 = vsub.f32 1.0, %v1812
    %v1816 = vsub.f32 %v1769, %v1803
    %v1817 = vsub.f32 %v1770, %v1804
    %v1818 = vmul.f32 %v1815, %v1816
    %v1819 = vmul.f32 %v1815, %v1817
    %v1820 = vadd.f32 %v1813, %v1818
    %v1821 = vadd.f32 %v1814, %v1819
    %v1822 = vmul.f32 %v1815, %v1803
    %v1823 = vmul.f32 %v1815, %v1804
    %v1824 = vadd.f32 %v1773, %v1822
    %v1825 = vadd.f32 %v1774, %v1823
    %v1826 = vmul.f32 %v1815, %v1809
    %v1827 = vsub.f32 %v1776, %v1826
    %v1828 = vand.u32 %v487, 32
    %v1829 = vand.u32 %v488, 32
    %v1830 = vand.u32 %v489, 32
    %v1831 = vand.u32 %v490, 32
    %vm1832 = vcmp.ne.s32.totalorder %v1828, 0
    %vm1833 = vcmp.ne.s32.totalorder %v1829, 0
    %vm1834 = vcmp.ne.s32.totalorder %v1830, 0
    %vm1835 = vcmp.ne.s32.totalorder %v1831, 0
    %v1836 = vsel %vm1832, 1, 0
    %v1837 = vsel %vm1833, 1, 0
    %v1838 = vsel %vm1834, 1, 0
    %v1839 = vsel %vm1835, 1, 0
    %v1840 = vcvt.s32.f32 %v1836
    %v1841 = vcvt.s32.f32 %v1837
    %v1842 = vcvt.s32.f32 %v1838
    %v1843 = vcvt.s32.f32 %v1839
    %v1848 = vrot.slane %v1842, 7
    %v1849 = vsel %vm512, %v1848, %v1840
    %v1850 = vrot.slane %v1843, 7
    %v1851 = vsel %vm512, %v1850, %v1841
    %v1854 = vmul.f32 %v1820, %v1849
    %v1855 = vmul.f32 %v1821, %v1851
    %v1856 = vsel %vm209, %v1854, 0.0
    %v1857 = vsel %vm209, %v1855, 0.0
    %v1858 = vadd.f32 %v1856, %v1857
    %1859 = vadd.xlane.f32.xlu0 %v1858
    %v1860 = vpop.xlane.xlu0 %1859
    %vm1861 = vcmp.ge.f32.partialorder %v1860, %v1827
    %v1862 = vsel %vm1861, 1, 0
    %v1863 = vcvt.s32.f32 %v1862
    %v1864 = vmul.f32 %v1863, %v1854
    %v1865 = vmul.f32 %v1863, %v1855
    %v1866 = vsub.f32 1.0, %v1863
    %v1867 = vsub.f32 %v1820, %v1854
    %v1868 = vsub.f32 %v1821, %v1855
    %v1869 = vmul.f32 %v1866, %v1867
    %v1870 = vmul.f32 %v1866, %v1868
    %v1871 = vadd.f32 %v1864, %v1869
    %v1872 = vadd.f32 %v1865, %v1870
    %v1873 = vmul.f32 %v1866, %v1854
    %v1874 = vmul.f32 %v1866, %v1855
    %v1875 = vadd.f32 %v1824, %v1873
    %v1876 = vadd.f32 %v1825, %v1874
    %v1877 = vmul.f32 %v1866, %v1860
    %v1878 = vsub.f32 %v1827, %v1877
    %v1879 = vand.u32 %v487, 16
    %v1880 = vand.u32 %v488, 16
    %v1881 = vand.u32 %v489, 16
    %v1882 = vand.u32 %v490, 16
    %vm1883 = vcmp.ne.s32.totalorder %v1879, 0
    %vm1884 = vcmp.ne.s32.totalorder %v1880, 0
    %vm1885 = vcmp.ne.s32.totalorder %v1881, 0
    %vm1886 = vcmp.ne.s32.totalorder %v1882, 0
    %v1887 = vsel %vm1883, 1, 0
    %v1888 = vsel %vm1884, 1, 0
    %v1889 = vsel %vm1885, 1, 0
    %v1890 = vsel %vm1886, 1, 0
    %v1891 = vcvt.s32.f32 %v1887
    %v1892 = vcvt.s32.f32 %v1888
    %v1893 = vcvt.s32.f32 %v1889
    %v1894 = vcvt.s32.f32 %v1890
    %v1899 = vrot.slane %v1893, 7
    %v1900 = vsel %vm512, %v1899, %v1891
    %v1901 = vrot.slane %v1894, 7
    %v1902 = vsel %vm512, %v1901, %v1892
    %v1905 = vmul.f32 %v1871, %v1900
    %v1906 = vmul.f32 %v1872, %v1902
    %v1907 = vsel %vm209, %v1905, 0.0
    %v1908 = vsel %vm209, %v1906, 0.0
    %v1909 = vadd.f32 %v1907, %v1908
    %1910 = vadd.xlane.f32.xlu0 %v1909
    %v1911 = vpop.xlane.xlu0 %1910
    %vm1912 = vcmp.ge.f32.partialorder %v1911, %v1878
    %v1913 = vsel %vm1912, 1, 0
    %v1914 = vcvt.s32.f32 %v1913
    %v1915 = vmul.f32 %v1914, %v1905
    %v1916 = vmul.f32 %v1914, %v1906
    %v1917 = vsub.f32 1.0, %v1914
    %v1918 = vsub.f32 %v1871, %v1905
    %v1919 = vsub.f32 %v1872, %v1906
    %v1920 = vmul.f32 %v1917, %v1918
    %v1921 = vmul.f32 %v1917, %v1919
    %v1922 = vadd.f32 %v1915, %v1920
    %v1923 = vadd.f32 %v1916, %v1921
    %v1924 = vmul.f32 %v1917, %v1905
    %v1925 = vmul.f32 %v1917, %v1906
    %v1926 = vadd.f32 %v1875, %v1924
    %v1927 = vadd.f32 %v1876, %v1925
    %v1928 = vmul.f32 %v1917, %v1911
    %v1929 = vsub.f32 %v1878, %v1928
    %v1930 = vand.u32 %v487, 8
    %v1931 = vand.u32 %v488, 8
    %v1932 = vand.u32 %v489, 8
    %v1933 = vand.u32 %v490, 8
    %vm1934 = vcmp.ne.s32.totalorder %v1930, 0
    %vm1935 = vcmp.ne.s32.totalorder %v1931, 0
    %vm1936 = vcmp.ne.s32.totalorder %v1932, 0
    %vm1937 = vcmp.ne.s32.totalorder %v1933, 0
    %v1938 = vsel %vm1934, 1, 0
    %v1939 = vsel %vm1935, 1, 0
    %v1940 = vsel %vm1936, 1, 0
    %v1941 = vsel %vm1937, 1, 0
    %v1942 = vcvt.s32.f32 %v1938
    %v1943 = vcvt.s32.f32 %v1939
    %v1944 = vcvt.s32.f32 %v1940
    %v1945 = vcvt.s32.f32 %v1941
    %v1950 = vrot.slane %v1944, 7
    %v1951 = vsel %vm512, %v1950, %v1942
    %v1952 = vrot.slane %v1945, 7
    %v1953 = vsel %vm512, %v1952, %v1943
    %v1956 = vmul.f32 %v1922, %v1951
    %v1957 = vmul.f32 %v1923, %v1953
    %v1958 = vsel %vm209, %v1956, 0.0
    %v1959 = vsel %vm209, %v1957, 0.0
    %v1960 = vadd.f32 %v1958, %v1959
    %1961 = vadd.xlane.f32.xlu0 %v1960
    %v1962 = vpop.xlane.xlu0 %1961
    %vm1963 = vcmp.ge.f32.partialorder %v1962, %v1929
    %v1964 = vsel %vm1963, 1, 0
    %v1965 = vcvt.s32.f32 %v1964
    %v1966 = vmul.f32 %v1965, %v1956
    %v1967 = vmul.f32 %v1965, %v1957
    %v1968 = vsub.f32 1.0, %v1965
    %v1969 = vsub.f32 %v1922, %v1956
    %v1970 = vsub.f32 %v1923, %v1957
    %v1971 = vmul.f32 %v1968, %v1969
    %v1972 = vmul.f32 %v1968, %v1970
    %v1973 = vadd.f32 %v1966, %v1971
    %v1974 = vadd.f32 %v1967, %v1972
    %v1975 = vmul.f32 %v1968, %v1956
    %v1976 = vmul.f32 %v1968, %v1957
    %v1977 = vadd.f32 %v1926, %v1975
    %v1978 = vadd.f32 %v1927, %v1976
    %v1979 = vmul.f32 %v1968, %v1962
    %v1980 = vsub.f32 %v1929, %v1979
    %v1981 = vand.u32 %v487, 4
    %v1982 = vand.u32 %v488, 4
    %v1983 = vand.u32 %v489, 4
    %v1984 = vand.u32 %v490, 4
    %vm1985 = vcmp.ne.s32.totalorder %v1981, 0
    %vm1986 = vcmp.ne.s32.totalorder %v1982, 0
    %vm1987 = vcmp.ne.s32.totalorder %v1983, 0
    %vm1988 = vcmp.ne.s32.totalorder %v1984, 0
    %v1989 = vsel %vm1985, 1, 0
    %v1990 = vsel %vm1986, 1, 0
    %v1991 = vsel %vm1987, 1, 0
    %v1992 = vsel %vm1988, 1, 0
    %v1993 = vcvt.s32.f32 %v1989
    %v1994 = vcvt.s32.f32 %v1990
    %v1995 = vcvt.s32.f32 %v1991
    %v1996 = vcvt.s32.f32 %v1992
    %v2001 = vrot.slane %v1995, 7
    %v2002 = vsel %vm512, %v2001, %v1993
    %v2003 = vrot.slane %v1996, 7
    %v2004 = vsel %vm512, %v2003, %v1994
    %v2007 = vmul.f32 %v1973, %v2002
    %v2008 = vmul.f32 %v1974, %v2004
    %v2009 = vsel %vm209, %v2007, 0.0
    %v2010 = vsel %vm209, %v2008, 0.0
    %v2011 = vadd.f32 %v2009, %v2010
    %2012 = vadd.xlane.f32.xlu0 %v2011
    %v2013 = vpop.xlane.xlu0 %2012
    %vm2014 = vcmp.ge.f32.partialorder %v2013, %v1980
    %v2015 = vsel %vm2014, 1, 0
    %v2016 = vcvt.s32.f32 %v2015
    %v2017 = vmul.f32 %v2016, %v2007
    %v2018 = vmul.f32 %v2016, %v2008
    %v2019 = vsub.f32 1.0, %v2016
    %v2020 = vsub.f32 %v1973, %v2007
    %v2021 = vsub.f32 %v1974, %v2008
    %v2022 = vmul.f32 %v2019, %v2020
    %v2023 = vmul.f32 %v2019, %v2021
    %v2024 = vadd.f32 %v2017, %v2022
    %v2025 = vadd.f32 %v2018, %v2023
    %v2026 = vmul.f32 %v2019, %v2007
    %v2027 = vmul.f32 %v2019, %v2008
    %v2028 = vadd.f32 %v1977, %v2026
    %v2029 = vadd.f32 %v1978, %v2027
    %v2030 = vmul.f32 %v2019, %v2013
    %v2031 = vsub.f32 %v1980, %v2030
    %v2032 = vand.u32 %v487, 2
    %v2033 = vand.u32 %v488, 2
    %v2034 = vand.u32 %v489, 2
    %v2035 = vand.u32 %v490, 2
    %vm2036 = vcmp.ne.s32.totalorder %v2032, 0
    %vm2037 = vcmp.ne.s32.totalorder %v2033, 0
    %vm2038 = vcmp.ne.s32.totalorder %v2034, 0
    %vm2039 = vcmp.ne.s32.totalorder %v2035, 0
    %v2040 = vsel %vm2036, 1, 0
    %v2041 = vsel %vm2037, 1, 0
    %v2042 = vsel %vm2038, 1, 0
    %v2043 = vsel %vm2039, 1, 0
    %v2044 = vcvt.s32.f32 %v2040
    %v2045 = vcvt.s32.f32 %v2041
    %v2046 = vcvt.s32.f32 %v2042
    %v2047 = vcvt.s32.f32 %v2043
    %v2052 = vrot.slane %v2046, 7
    %v2053 = vsel %vm512, %v2052, %v2044
    %v2054 = vrot.slane %v2047, 7
    %v2055 = vsel %vm512, %v2054, %v2045
    %v2058 = vmul.f32 %v2024, %v2053
    %v2059 = vmul.f32 %v2025, %v2055
    %v2060 = vsel %vm209, %v2058, 0.0
    %v2061 = vsel %vm209, %v2059, 0.0
    %v2062 = vadd.f32 %v2060, %v2061
    %2063 = vadd.xlane.f32.xlu0 %v2062
    %v2064 = vpop.xlane.xlu0 %2063
    %vm2065 = vcmp.ge.f32.partialorder %v2064, %v2031
    %v2066 = vsel %vm2065, 1, 0
    %v2067 = vcvt.s32.f32 %v2066
    %v2068 = vmul.f32 %v2067, %v2058
    %v2069 = vmul.f32 %v2067, %v2059
    %v2070 = vsub.f32 1.0, %v2067
    %v2071 = vsub.f32 %v2024, %v2058
    %v2072 = vsub.f32 %v2025, %v2059
    %v2073 = vmul.f32 %v2070, %v2071
    %v2074 = vmul.f32 %v2070, %v2072
    %v2075 = vadd.f32 %v2068, %v2073
    %v2076 = vadd.f32 %v2069, %v2074
    %v2077 = vmul.f32 %v2070, %v2058
    %v2078 = vmul.f32 %v2070, %v2059
    %v2079 = vadd.f32 %v2028, %v2077
    %v2080 = vadd.f32 %v2029, %v2078
    %v2081 = vmul.f32 %v2070, %v2064
    %v2082 = vsub.f32 %v2031, %v2081
    %v2083 = vand.u32 %v487, 1
    %v2084 = vand.u32 %v488, 1
    %v2085 = vand.u32 %v489, 1
    %v2086 = vand.u32 %v490, 1
    %vm2087 = vcmp.ne.s32.totalorder %v2083, 0
    %vm2088 = vcmp.ne.s32.totalorder %v2084, 0
    %vm2089 = vcmp.ne.s32.totalorder %v2085, 0
    %vm2090 = vcmp.ne.s32.totalorder %v2086, 0
    %v2091 = vsel %vm2087, 1, 0
    %v2092 = vsel %vm2088, 1, 0
    %v2093 = vsel %vm2089, 1, 0
    %v2094 = vsel %vm2090, 1, 0
    %v2095 = vcvt.s32.f32 %v2091
    %v2096 = vcvt.s32.f32 %v2092
    %v2097 = vcvt.s32.f32 %v2093
    %v2098 = vcvt.s32.f32 %v2094
    %v2103 = vrot.slane %v2097, 7
    %v2104 = vsel %vm512, %v2103, %v2095
    %v2105 = vrot.slane %v2098, 7
    %v2106 = vsel %vm512, %v2105, %v2096
    %v2109 = vmul.f32 %v2075, %v2104
    %v2110 = vmul.f32 %v2076, %v2106
    %v2111 = vsel %vm209, %v2109, 0.0
    %v2112 = vsel %vm209, %v2110, 0.0
    %v2113 = vadd.f32 %v2111, %v2112
    %2114 = vadd.xlane.f32.xlu0 %v2113
    %v2115 = vpop.xlane.xlu0 %2114
    %vm2116 = vcmp.ge.f32.partialorder %v2115, %v2082
    %v2117 = vsel %vm2116, 1, 0
    %v2118 = vcvt.s32.f32 %v2117
    %v2119 = vmul.f32 %v2118, %v2109
    %v2120 = vmul.f32 %v2118, %v2110
    %v2121 = vsub.f32 1.0, %v2118
    %v2122 = vsub.f32 %v2075, %v2109
    %v2123 = vsub.f32 %v2076, %v2110
    %v2124 = vmul.f32 %v2121, %v2122
    %v2125 = vmul.f32 %v2121, %v2123
    %v2126 = vadd.f32 %v2119, %v2124
    %v2127 = vadd.f32 %v2120, %v2125
    %v2128 = vmul.f32 %v2121, %v2109
    %v2129 = vmul.f32 %v2121, %v2110
    %v2130 = vadd.f32 %v2079, %v2128
    %v2131 = vadd.f32 %v2080, %v2129
    %v2132 = vmul.f32 %v2121, %v2115
    %v2133 = vsub.f32 %v2082, %v2132
    %v2134 = vlaneseq
    %v2135 = vand.u32 %v2134, 127
    %v2136 = vadd.s32 %v2135, 128
    %v2137 = vsub.s32 255, %v2135
    %v2138 = vsub.s32 255, %v2136
    %v2139 = vand.u32 %v2137, 128
    %v2140 = vand.u32 %v2138, 128
    %vm2141 = vcmp.ne.s32.totalorder %v2139, 0
    %vm2142 = vcmp.ne.s32.totalorder %v2140, 0
    %v2143 = vsel %vm2141, 1, 0
    %v2144 = vsel %vm2142, 1, 0
    %v2145 = vcvt.s32.f32 %v2143
    %v2146 = vcvt.s32.f32 %v2144
    %v2147 = vmul.f32 %v2126, %v2145
    %v2148 = vmul.f32 %v2127, %v2146
    %v2149 = vsel %vm209, %v2147, 0.0
    %v2150 = vsel %vm209, %v2148, 0.0
    %v2151 = vadd.f32 %v2149, %v2150
    %2152 = vadd.xlane.f32.xlu0 %v2151
    %v2153 = vpop.xlane.xlu0 %2152
    %vm2154 = vcmp.ge.f32.partialorder %v2153, %v2133
    %v2155 = vsel %vm2154, 1, 0
    %v2156 = vcvt.s32.f32 %v2155
    %v2157 = vmul.f32 %v2156, %v2147
    %v2158 = vmul.f32 %v2156, %v2148
    %v2159 = vsub.f32 1.0, %v2156
    %v2160 = vsub.f32 %v2126, %v2147
    %v2161 = vsub.f32 %v2127, %v2148
    %v2162 = vmul.f32 %v2159, %v2160
    %v2163 = vmul.f32 %v2159, %v2161
    %v2164 = vadd.f32 %v2157, %v2162
    %v2165 = vadd.f32 %v2158, %v2163
    %v2166 = vmul.f32 %v2159, %v2147
    %v2167 = vmul.f32 %v2159, %v2148
    %v2168 = vadd.f32 %v2130, %v2166
    %v2169 = vadd.f32 %v2131, %v2167
    %v2170 = vmul.f32 %v2159, %v2153
    %v2171 = vsub.f32 %v2133, %v2170
    %v2172 = vand.u32 %v2137, 64
    %v2173 = vand.u32 %v2138, 64
    %vm2174 = vcmp.ne.s32.totalorder %v2172, 0
    %vm2175 = vcmp.ne.s32.totalorder %v2173, 0
    %v2176 = vsel %vm2174, 1, 0
    %v2177 = vsel %vm2175, 1, 0
    %v2178 = vcvt.s32.f32 %v2176
    %v2179 = vcvt.s32.f32 %v2177
    %v2180 = vmul.f32 %v2164, %v2178
    %v2181 = vmul.f32 %v2165, %v2179
    %v2182 = vsel %vm209, %v2180, 0.0
    %v2183 = vsel %vm209, %v2181, 0.0
    %v2184 = vadd.f32 %v2182, %v2183
    %2185 = vadd.xlane.f32.xlu0 %v2184
    %v2186 = vpop.xlane.xlu0 %2185
    %vm2187 = vcmp.ge.f32.partialorder %v2186, %v2171
    %v2188 = vsel %vm2187, 1, 0
    %v2189 = vcvt.s32.f32 %v2188
    %v2190 = vmul.f32 %v2189, %v2180
    %v2191 = vmul.f32 %v2189, %v2181
    %v2192 = vsub.f32 1.0, %v2189
    %v2193 = vsub.f32 %v2164, %v2180
    %v2194 = vsub.f32 %v2165, %v2181
    %v2195 = vmul.f32 %v2192, %v2193
    %v2196 = vmul.f32 %v2192, %v2194
    %v2197 = vadd.f32 %v2190, %v2195
    %v2198 = vadd.f32 %v2191, %v2196
    %v2199 = vmul.f32 %v2192, %v2180
    %v2200 = vmul.f32 %v2192, %v2181
    %v2201 = vadd.f32 %v2168, %v2199
    %v2202 = vadd.f32 %v2169, %v2200
    %v2203 = vmul.f32 %v2192, %v2186
    %v2204 = vsub.f32 %v2171, %v2203
    %v2205 = vand.u32 %v2137, 32
    %v2206 = vand.u32 %v2138, 32
    %vm2207 = vcmp.ne.s32.totalorder %v2205, 0
    %vm2208 = vcmp.ne.s32.totalorder %v2206, 0
    %v2209 = vsel %vm2207, 1, 0
    %v2210 = vsel %vm2208, 1, 0
    %v2211 = vcvt.s32.f32 %v2209
    %v2212 = vcvt.s32.f32 %v2210
    %v2213 = vmul.f32 %v2197, %v2211
    %v2214 = vmul.f32 %v2198, %v2212
    %v2215 = vsel %vm209, %v2213, 0.0
    %v2216 = vsel %vm209, %v2214, 0.0
    %v2217 = vadd.f32 %v2215, %v2216
    %2218 = vadd.xlane.f32.xlu0 %v2217
    %v2219 = vpop.xlane.xlu0 %2218
    %vm2220 = vcmp.ge.f32.partialorder %v2219, %v2204
    %v2221 = vsel %vm2220, 1, 0
    %v2222 = vcvt.s32.f32 %v2221
    %v2223 = vmul.f32 %v2222, %v2213
    %v2224 = vmul.f32 %v2222, %v2214
    %v2225 = vsub.f32 1.0, %v2222
    %v2226 = vsub.f32 %v2197, %v2213
    %v2227 = vsub.f32 %v2198, %v2214
    %v2228 = vmul.f32 %v2225, %v2226
    %v2229 = vmul.f32 %v2225, %v2227
    %v2230 = vadd.f32 %v2223, %v2228
    %v2231 = vadd.f32 %v2224, %v2229
    %v2232 = vmul.f32 %v2225, %v2213
    %v2233 = vmul.f32 %v2225, %v2214
    %v2234 = vadd.f32 %v2201, %v2232
    %v2235 = vadd.f32 %v2202, %v2233
    %v2236 = vmul.f32 %v2225, %v2219
    %v2237 = vsub.f32 %v2204, %v2236
    %v2238 = vand.u32 %v2137, 16
    %v2239 = vand.u32 %v2138, 16
    %vm2240 = vcmp.ne.s32.totalorder %v2238, 0
    %vm2241 = vcmp.ne.s32.totalorder %v2239, 0
    %v2242 = vsel %vm2240, 1, 0
    %v2243 = vsel %vm2241, 1, 0
    %v2244 = vcvt.s32.f32 %v2242
    %v2245 = vcvt.s32.f32 %v2243
    %v2246 = vmul.f32 %v2230, %v2244
    %v2247 = vmul.f32 %v2231, %v2245
    %v2248 = vsel %vm209, %v2246, 0.0
    %v2249 = vsel %vm209, %v2247, 0.0
    %v2250 = vadd.f32 %v2248, %v2249
    %2251 = vadd.xlane.f32.xlu0 %v2250
    %v2252 = vpop.xlane.xlu0 %2251
    %vm2253 = vcmp.ge.f32.partialorder %v2252, %v2237
    %v2254 = vsel %vm2253, 1, 0
    %v2255 = vcvt.s32.f32 %v2254
    %v2256 = vmul.f32 %v2255, %v2246
    %v2257 = vmul.f32 %v2255, %v2247
    %v2258 = vsub.f32 1.0, %v2255
    %v2259 = vsub.f32 %v2230, %v2246
    %v2260 = vsub.f32 %v2231, %v2247
    %v2261 = vmul.f32 %v2258, %v2259
    %v2262 = vmul.f32 %v2258, %v2260
    %v2263 = vadd.f32 %v2256, %v2261
    %v2264 = vadd.f32 %v2257, %v2262
    %v2265 = vmul.f32 %v2258, %v2246
    %v2266 = vmul.f32 %v2258, %v2247
    %v2267 = vadd.f32 %v2234, %v2265
    %v2268 = vadd.f32 %v2235, %v2266
    %v2269 = vmul.f32 %v2258, %v2252
    %v2270 = vsub.f32 %v2237, %v2269
    %v2271 = vand.u32 %v2137, 8
    %v2272 = vand.u32 %v2138, 8
    %vm2273 = vcmp.ne.s32.totalorder %v2271, 0
    %vm2274 = vcmp.ne.s32.totalorder %v2272, 0
    %v2275 = vsel %vm2273, 1, 0
    %v2276 = vsel %vm2274, 1, 0
    %v2277 = vcvt.s32.f32 %v2275
    %v2278 = vcvt.s32.f32 %v2276
    %v2279 = vmul.f32 %v2263, %v2277
    %v2280 = vmul.f32 %v2264, %v2278
    %v2281 = vsel %vm209, %v2279, 0.0
    %v2282 = vsel %vm209, %v2280, 0.0
    %v2283 = vadd.f32 %v2281, %v2282
    %2284 = vadd.xlane.f32.xlu0 %v2283
    %v2285 = vpop.xlane.xlu0 %2284
    %vm2286 = vcmp.ge.f32.partialorder %v2285, %v2270
    %v2287 = vsel %vm2286, 1, 0
    %v2288 = vcvt.s32.f32 %v2287
    %v2289 = vmul.f32 %v2288, %v2279
    %v2290 = vmul.f32 %v2288, %v2280
    %v2291 = vsub.f32 1.0, %v2288
    %v2292 = vsub.f32 %v2263, %v2279
    %v2293 = vsub.f32 %v2264, %v2280
    %v2294 = vmul.f32 %v2291, %v2292
    %v2295 = vmul.f32 %v2291, %v2293
    %v2296 = vadd.f32 %v2289, %v2294
    %v2297 = vadd.f32 %v2290, %v2295
    %v2298 = vmul.f32 %v2291, %v2279
    %v2299 = vmul.f32 %v2291, %v2280
    %v2300 = vadd.f32 %v2267, %v2298
    %v2301 = vadd.f32 %v2268, %v2299
    %v2302 = vmul.f32 %v2291, %v2285
    %v2303 = vsub.f32 %v2270, %v2302
    %v2304 = vand.u32 %v2137, 4
    %v2305 = vand.u32 %v2138, 4
    %vm2306 = vcmp.ne.s32.totalorder %v2304, 0
    %vm2307 = vcmp.ne.s32.totalorder %v2305, 0
    %v2308 = vsel %vm2306, 1, 0
    %v2309 = vsel %vm2307, 1, 0
    %v2310 = vcvt.s32.f32 %v2308
    %v2311 = vcvt.s32.f32 %v2309
    %v2312 = vmul.f32 %v2296, %v2310
    %v2313 = vmul.f32 %v2297, %v2311
    %v2314 = vsel %vm209, %v2312, 0.0
    %v2315 = vsel %vm209, %v2313, 0.0
    %v2316 = vadd.f32 %v2314, %v2315
    %2317 = vadd.xlane.f32.xlu0 %v2316
    %v2318 = vpop.xlane.xlu0 %2317
    %vm2319 = vcmp.ge.f32.partialorder %v2318, %v2303
    %v2320 = vsel %vm2319, 1, 0
    %v2321 = vcvt.s32.f32 %v2320
    %v2322 = vmul.f32 %v2321, %v2312
    %v2323 = vmul.f32 %v2321, %v2313
    %v2324 = vsub.f32 1.0, %v2321
    %v2325 = vsub.f32 %v2296, %v2312
    %v2326 = vsub.f32 %v2297, %v2313
    %v2327 = vmul.f32 %v2324, %v2325
    %v2328 = vmul.f32 %v2324, %v2326
    %v2329 = vadd.f32 %v2322, %v2327
    %v2330 = vadd.f32 %v2323, %v2328
    %v2331 = vmul.f32 %v2324, %v2312
    %v2332 = vmul.f32 %v2324, %v2313
    %v2333 = vadd.f32 %v2300, %v2331
    %v2334 = vadd.f32 %v2301, %v2332
    %v2335 = vmul.f32 %v2324, %v2318
    %v2336 = vsub.f32 %v2303, %v2335
    %v2337 = vand.u32 %v2137, 2
    %v2338 = vand.u32 %v2138, 2
    %vm2339 = vcmp.ne.s32.totalorder %v2337, 0
    %vm2340 = vcmp.ne.s32.totalorder %v2338, 0
    %v2341 = vsel %vm2339, 1, 0
    %v2342 = vsel %vm2340, 1, 0
    %v2343 = vcvt.s32.f32 %v2341
    %v2344 = vcvt.s32.f32 %v2342
    %v2345 = vmul.f32 %v2329, %v2343
    %v2346 = vmul.f32 %v2330, %v2344
    %v2347 = vsel %vm209, %v2345, 0.0
    %v2348 = vsel %vm209, %v2346, 0.0
    %v2349 = vadd.f32 %v2347, %v2348
    %2350 = vadd.xlane.f32.xlu0 %v2349
    %v2351 = vpop.xlane.xlu0 %2350
    %vm2352 = vcmp.ge.f32.partialorder %v2351, %v2336
    %v2353 = vsel %vm2352, 1, 0
    %v2354 = vcvt.s32.f32 %v2353
    %v2355 = vmul.f32 %v2354, %v2345
    %v2356 = vmul.f32 %v2354, %v2346
    %v2357 = vsub.f32 1.0, %v2354
    %v2358 = vsub.f32 %v2329, %v2345
    %v2359 = vsub.f32 %v2330, %v2346
    %v2360 = vmul.f32 %v2357, %v2358
    %v2361 = vmul.f32 %v2357, %v2359
    %v2362 = vadd.f32 %v2355, %v2360
    %v2363 = vadd.f32 %v2356, %v2361
    %v2364 = vmul.f32 %v2357, %v2345
    %v2365 = vmul.f32 %v2357, %v2346
    %v2366 = vadd.f32 %v2333, %v2364
    %v2367 = vadd.f32 %v2334, %v2365
    %v2368 = vmul.f32 %v2357, %v2351
    %v2369 = vsub.f32 %v2336, %v2368
    %v2370 = vand.u32 %v2137, 1
    %v2371 = vand.u32 %v2138, 1
    %vm2372 = vcmp.ne.s32.totalorder %v2370, 0
    %vm2373 = vcmp.ne.s32.totalorder %v2371, 0
    %v2374 = vsel %vm2372, 1, 0
    %v2375 = vsel %vm2373, 1, 0
    %v2376 = vcvt.s32.f32 %v2374
    %v2377 = vcvt.s32.f32 %v2375
    %v2378 = vmul.f32 %v2362, %v2376
    %v2379 = vmul.f32 %v2363, %v2377
    %v2380 = vsel %vm209, %v2378, 0.0
    %v2381 = vsel %vm209, %v2379, 0.0
    %v2382 = vadd.f32 %v2380, %v2381
    %2383 = vadd.xlane.f32.xlu0 %v2382
    %v2384 = vpop.xlane.xlu0 %2383
    %vm2385 = vcmp.ge.f32.partialorder %v2384, %v2369
    %v2386 = vsel %vm2385, 1, 0
    %v2387 = vcvt.s32.f32 %v2386
    %v2388 = vmul.f32 %v2387, %v2378
    %v2389 = vmul.f32 %v2387, %v2379
    %v2390 = vsub.f32 1.0, %v2387
    %v2391 = vsub.f32 %v2362, %v2378
    %v2392 = vsub.f32 %v2363, %v2379
    %v2393 = vmul.f32 %v2390, %v2391
    %v2394 = vmul.f32 %v2390, %v2392
    %v2395 = vadd.f32 %v2388, %v2393
    %v2396 = vadd.f32 %v2389, %v2394
    %v2397 = vmul.f32 %v2390, %v2378
    %v2398 = vmul.f32 %v2390, %v2379
    %v2399 = vadd.f32 %v2366, %v2397
    %v2400 = vadd.f32 %v2367, %v2398
    %v2401 = vadd.f32 %v2399, %v2395
    %v2402 = vadd.f32 %v2400, %v2396
    %vm2403 = vcmp.gt.f32.partialorder %v456, 0.0
    %v2404 = vsel %vm2403, 1, 0
    %v2405 = vcvt.s32.f32 %v2404
    %v2406 = vmul.f32 %v2401, %v2405
    %v2407 = vmul.f32 %v2402, %v2405
    %v2410 = vcombine.low %v2406, %v2407
    %v2412 = vunpack.c.l.s4 1966171168
    %v2413 = vunpack.c.0.s8 %v2412
    %v2414 = vlaneseq
    %v2415 = vshrl.u32 %v2414, 7
    %v2416 = vsub.s32 %v2413, %v2415
    %v2417 = vrot.slane %v2410, %v2416
    %v2418 = vcombine.high %v2417, %v2417
    %v2420 = vunpack.c.l.s4 1966171168
    %v2421 = vunpack.c.0.s8 %v2420
    %v2422 = vlaneseq
    %v2423 = vshrl.u32 %v2422, 7
    %v2424 = vsub.s32 %v2421, %v2423
    %v2425 = vrot.slane %v2417, %v2424
    %v2427 = vunpack.c.l.s4 1966171168
    %v2428 = vunpack.c.0.s8 %v2427
    %v2429 = vlaneseq
    %v2430 = vshrl.u32 %v2429, 7
    %v2431 = vsub.s32 %v2428, %v2430
    %v2432 = vrot.slane %v2418, %v2431
    %v2435 = vadd.f32 %v180, %v2425
    %v2436 = vadd.f32 %v181, %v2432
    %v2439 = vlaneseq
    %v2440 = vshrl.u32 %v2439, 7
    %v2441 = vsub.s32 0, %v2440
    %v2442 = vrot.slane %v2435, %v2441
    %v2443 = vlaneseq
    %v2444 = vshrl.u32 %v2443, 7
    %v2445 = vsub.s32 1, %v2444
    %v2446 = vrot.slane %v2435, %v2445
    %v2447 = vlaneseq
    %v2448 = vshrl.u32 %v2447, 7
    %v2449 = vsub.s32 0, %v2448
    %v2450 = vrot.slane %v2436, %v2449
    %v2451 = vlaneseq
    %v2452 = vshrl.u32 %v2451, 7
    %v2453 = vsub.s32 1, %v2452
    %v2454 = vrot.slane %v2436, %v2453
    %v2459 = vmul.f32 %v413, %v2442
    %v2460 = vmul.f32 %v414, %v2446
    %v2461 = vmul.f32 %v415, %v2450
    %v2462 = vmul.f32 %v416, %v2454
    %v2467 = vrot.slane %v2461, 7
    %v2468 = vsel %vm512, %v2467, %v2459
    %v2469 = vrot.slane %v2462, 7
    %v2470 = vsel %vm512, %v2469, %v2460
    %v2473 = vsel %vm209, %v2468, 0.0
    %v2474 = vsel %vm209, %v2470, 0.0
    %v2475 = vadd.f32 %v2473, %v2474
    %2476 = vadd.xlane.f32.xlu0 %v2475
    %v2477 = vpop.xlane.xlu0 %2476
    %v2478 = vadd.f32 %v284, %v2477
    %vm2479 = vcmp.gt.f32.partialorder %v214, 0.0
    %v2480 = vsel %vm2479, 1, 0
    %v2481 = vcvt.s32.f32 %v2480
    %v2482 = vmax.f32 %v214, 1e-06
    %v2483 = vmul.f32 %v2478, %v2481
    %v2484 = vrcp.pop %v2482
    %v2485 = vmul.f32 %v2483, %v2484
    %2486 = vst [vmem:[#allocation10] sm:$0x3] %v2485
    // Predicated region
    $region38: #{tpu_custom_call.1} parent=1 // pred_check
      _
    $region39: #{tpu_custom_call.1} parent=1 // pred_check_branch
      %2488 = sbr.rel (0) target = $region41
    $region40: #{tpu_custom_call.1} parent=1 // pred_region
      %s2490 = ssub.s32 32, 32
      %2491 = vsyncadd [#allocation4], %s2490
      %s2493 = sshll.u32 [#allocation10], 4
      %s2494 = int_to_ptr.vmem [resolvable:$true] %s2493
      %2496 = dma.vmem_to_hbm [thread:$0]  %s2494, 32, %s5, [#allocation4]
    $region41: #{tpu_custom_call.1} parent=1 // pred_fallthru
      _
    // Predicated region
    $region42: #{tpu_custom_call.1} parent=1 // pred_check
      _
    $region43: #{tpu_custom_call.1} parent=1 // pred_check_branch
      %2498 = sbr.rel (0) target = $region45
    $region44: #{tpu_custom_call.1} parent=1 // pred_region
      %2499 = dma.done [#allocation4], 32
    $region45: #{tpu_custom_call.1} parent=1 // pred_fallthru
      _
    %2500 = vsyncpa [#allocation3], 1
    %2501 = vsyncpa [#allocation6], 1
    %2502 = vsyncpa [#allocation9], 1
    %2503 = vsyncpa [#allocation4], 1

</llo_original>
